<compile_context>
chip_gen: v5e
topology: v5e:2x2
jax: 0.10.0
libtpu: 0.0.40
codegen_flags: <defaults>
</compile_context>

<pallas_src>
import functools

import jax
import jax.numpy as jnp
from jax.experimental import pallas as pl
from jax.experimental.pallas import tpu as pltpu


def _softplus(x):
    # matches torch.nn.Softplus(beta=1, threshold=20)
    return jnp.where(x > 20.0, x, jnp.log1p(jnp.exp(jnp.minimum(x, 20.0))))


def _bf16(x):
    return x.astype(jnp.bfloat16)


# ----------------------------------------------------------------------------
# Hoisted input projections: row-tiled GEMMs (parallel grid, resident weights).
# ----------------------------------------------------------------------------
def _proj_single_kernel(x_ref, w_ref, b_ref, out_ref):
    acc = jnp.dot(_bf16(x_ref[...]), w_ref[...], preferred_element_type=jnp.float32)
    out_ref[...] = (acc + b_ref[...]).astype(out_ref.dtype)


def proj_single(x2d, w_bf16, bias, *, tile_r=512):
    """(R, I) @ (I, N) + (1, N) -> (R, N), row-tiled."""
    R, I = x2d.shape
    N = w_bf16.shape[1]
    tr = R if R <= tile_r else tile_r
    return pl.pallas_call(
        _proj_single_kernel,
        out_shape=jax.ShapeDtypeStruct((R, N), jnp.float32),
        grid_spec=pltpu.PrefetchScalarGridSpec(
            num_scalar_prefetch=0,
            grid=(pl.cdiv(R, tr),),
            in_specs=[
                pl.BlockSpec((tr, I), lambda r: (r, 0)),
                # constant index_map -> weights DMA'd once and stay resident
                pl.BlockSpec((I, N), lambda r: (0, 0)),
                pl.BlockSpec((1, N), lambda r: (0, 0)),
            ],
            out_specs=pl.BlockSpec((tr, N), lambda r: (r, 0)),
        ),
        compiler_params=pltpu.CompilerParams(dimension_semantics=("parallel",)),
    )(x2d, w_bf16, bias)


def _proj_dual_kernel(x_ref, wa_ref, wb_ref, b_ref, out_ref):
    # implicit concat of the (fwd, bwd) stacked input via split weights
    acc = jnp.dot(_bf16(x_ref[0]), wa_ref[...], preferred_element_type=jnp.float32)
    acc = acc + jnp.dot(_bf16(x_ref[1]), wb_ref[...], preferred_element_type=jnp.float32)
    out_ref[...] = (acc + b_ref[...]).astype(out_ref.dtype)


def proj_dual(x_stacked, wa_bf16, wb_bf16, bias, *, tile_r=512):
    """concat(x[0], x[1], -1) @ W + b without materialising the concat."""
    _, R, H = x_stacked.shape
    N = wa_bf16.shape[1]
    tr = R if R <= tile_r else tile_r
    return pl.pallas_call(
        _proj_dual_kernel,
        out_shape=jax.ShapeDtypeStruct((R, N), jnp.float32),
        grid_spec=pltpu.PrefetchScalarGridSpec(
            num_scalar_prefetch=0,
            grid=(pl.cdiv(R, tr),),
            in_specs=[
                pl.BlockSpec((2, tr, H), lambda r: (0, r, 0)),
                pl.BlockSpec((H, N), lambda r: (0, 0)),
                pl.BlockSpec((H, N), lambda r: (0, 0)),
                pl.BlockSpec((1, N), lambda r: (0, 0)),
            ],
            out_specs=pl.BlockSpec((tr, N), lambda r: (r, 0)),
        ),
        compiler_params=pltpu.CompilerParams(dimension_semantics=("parallel",)),
    )(x_stacked, wa_bf16, wb_bf16, bias)


# ----------------------------------------------------------------------------
# Bidirectional GRU recurrence.  grid = (direction, time); the input gates gi
# are precomputed (hoisted), so per step only h @ W_hh runs on the MXU.
# PyTorch gate order: r, z, n.
# ----------------------------------------------------------------------------
def _gru_step_kernel(gi_ref, whh_ref, bhh_ref, out_ref, h_scr):
    t = pl.program_id(1)

    @pl.when(t == 0)
    def _():
        h_scr[...] = jnp.zeros_like(h_scr)

    H = whh_ref.shape[1]                 # whh block is (1, H, 3H)
    gi = gi_ref[0]                       # (B, 3H) f32, already has b_ih
    h = h_scr[...]                       # (B, H)  f32
    gh = jnp.dot(_bf16(h), whh_ref[0],
                 preferred_element_type=jnp.float32) + bhh_ref[0]

    # gate slices are lane-tile aligned whenever H % 128 == 0 (true for the
    # demo H=128 and for the production hdim=768).
    r = jax.nn.sigmoid(gi[:, 0:H] + gh[:, 0:H])
    z = jax.nn.sigmoid(gi[:, H:2 * H] + gh[:, H:2 * H])
    n = jnp.tanh(gi[:, 2 * H:3 * H] + r * gh[:, 2 * H:3 * H])
    h_new = (1.0 - z) * n + z * h

    h_scr[...] = h_new
    out_ref[0, 0] = h_new.astype(out_ref.dtype)


def gru_bidirectional(gi, whh_stack, bhh_stack):
    """gi: (T, B, 6H) f32 (cols 0:3H fwd gates, 3H:6H bwd gates);
    whh_stack: (2, H, 3H) bf16; bhh_stack: (2, 1, 3H) f32.
    Returns stacked hidden states (2, T, B, H): [0]=forward, [1]=backward,
    both stored at their original time indices (no flips anywhere)."""
    T, B, _ = gi.shape
    H = whh_stack.shape[1]

    def t_eff(d, t):                    # d==0 -> t ; d==1 -> T-1-t
        return t + d * (T - 1 - 2 * t)

    return pl.pallas_call(
        _gru_step_kernel,
        out_shape=jax.ShapeDtypeStruct((2, T, B, H), jnp.float32),
        grid_spec=pltpu.PrefetchScalarGridSpec(
            num_scalar_prefetch=0,
            grid=(2, T),
            in_specs=[
                pl.BlockSpec((1, B, 3 * H), lambda d, t: (t_eff(d, t), 0, d)),
                pl.BlockSpec((1, H, 3 * H), lambda d, t: (d, 0, 0)),
                pl.BlockSpec((1, 1, 3 * H), lambda d, t: (d, 0, 0)),
            ],
            out_specs=pl.BlockSpec((1, 1, B, H),
                                   lambda d, t: (d, t_eff(d, t), 0, 0)),
            scratch_shapes=[pltpu.VMEM((B, H), jnp.float32)],
        ),
        compiler_params=pltpu.CompilerParams(
            # direction axis is independent -> shardable across v7x TensorCores;
            # the time axis carries the recurrence and must stay sequential.
            dimension_semantics=("parallel", "arbitrary")),
    )(gi, whh_stack, bhh_stack)


# ----------------------------------------------------------------------------
# Entity classifier: linear1 -> (dropout = identity in eval) -> Mish ->
# linear2 (padded to a lane-dense 128 cols) -> LogSoftmax.  Row-tiled.
# Only log-probs are produced (logits feed only the CRF branch).
# ----------------------------------------------------------------------------
def _classifier_kernel(x_ref, w1a_ref, w1b_ref, b1_ref, w2_ref, b2_ref, logp_ref):
    h = jnp.dot(_bf16(x_ref[0]), w1a_ref[...], preferred_element_type=jnp.float32)
    h = h + jnp.dot(_bf16(x_ref[1]), w1b_ref[...], preferred_element_type=jnp.float32)
    h = h + b1_ref[...]
    # TODO(synk): nn.Dropout(p=0.2) is identity in eval mode; training-mode RNG
    # masking is not reproduced here.
    h = h * jnp.tanh(_softplus(h))
    logits = jnp.dot(_bf16(h), w2_ref[...],
                     preferred_element_type=jnp.float32) + b2_ref[...]
    m = jnp.max(logits, axis=-1, keepdims=True)
    s = logits - m
    lse = jnp.log(jnp.sum(jnp.exp(s), axis=-1, keepdims=True))
    logp_ref[...] = (s - lse).astype(logp_ref.dtype)


def classifier_forward(x_stacked, w1a, w1b, b1, w2_pad, b2_pad, *, tile_r=512):
    _, R, H = x_stacked.shape
    D = w1a.shape[1]
    Ep = w2_pad.shape[1]          # lane-dense padded entity dim (128)
    tr = R if R <= tile_r else tile_r
    return pl.pallas_call(
        _classifier_kernel,
        out_shape=jax.ShapeDtypeStruct((R, Ep), jnp.float32),
        grid_spec=pltpu.PrefetchScalarGridSpec(
            num_scalar_prefetch=0,
            grid=(pl.cdiv(R, tr),),
            in_specs=[
                pl.BlockSpec((2, tr, H), lambda r: (0, r, 0)),
                pl.BlockSpec((H, D), lambda r: (0, 0)),
                pl.BlockSpec((H, D), lambda r: (0, 0)),
                pl.BlockSpec((1, D), lambda r: (0, 0)),
                pl.BlockSpec((D, Ep), lambda r: (0, 0)),
                pl.BlockSpec((1, Ep), lambda r: (0, 0)),
            ],
            out_specs=pl.BlockSpec((tr, Ep), lambda r: (r, 0)),
        ),
        compiler_params=pltpu.CompilerParams(dimension_semantics=("parallel",)),
    )(x_stacked, w1a, w1b, b1, w2_pad, b2_pad)


# ----------------------------------------------------------------------------
# Full forward (labels=None): 2-layer bidirectional GRU + entity Classifier.
# ----------------------------------------------------------------------------
@functools.partial(jax.jit, static_argnames=("edim",))
def joint_entity_relation_forward(embeddings, kp, *, edim):
    # embeddings: (T, B, 4*hdim) -- stand-in for torch.cat of the last 4 BERT
    # hidden states.
    T, B, _ = embeddings.shape
    H = kp["l1"]["whh"].shape[1]
    R = T * B

    # ---- GRU layer 1: hoisted input projection, then the recurrence ----
    gi1 = proj_single(embeddings.reshape(R, -1),
                      kp["l1"]["wih_cat"], kp["l1"]["bias_cat"])         # (R, 6H)
    out1 = gru_bidirectional(gi1.reshape(T, B, 6 * H),
                             kp["l1"]["whh"], kp["l1"]["bhh"])           # (2,T,B,H)

    # ---- GRU layer 2: consumes fwd/bwd halves directly (no concat pass) ----
    s1 = out1.reshape(2, R, H)
    gi2 = proj_dual(s1, kp["l2"]["wih_a"], kp["l2"]["wih_b"], kp["l2"]["bias_cat"])
    out2 = gru_bidirectional(gi2.reshape(T, B, 6 * H),
                             kp["l2"]["whh"], kp["l2"]["bhh"])           # (2,T,B,H)

    # ---- entity classifier: log-probs only, lane-dense padded output ----
    s2 = out2.reshape(2, R, H)
    logp = classifier_forward(s2, kp["cls"]["w1a"], kp["cls"]["w1b"],
                              kp["cls"]["b1"], kp["cls"]["w2_pad"], kp["cls"]["b2_pad"])
    # TODO(synk): CRF loss branch (labels != None) not implemented; only the
    # inference path returning `entity` is reproduced.
    return logp[:, :edim].reshape(T, B, edim)


# ----------------------------------------------------------------------------
# Parameters: PyTorch-style raw init, then a kernel-ready packing
# (bf16 weights, fwd/bwd concat along the 6H axis, stacked W_hh, padded head).
# ----------------------------------------------------------------------------
def init_params(key, hdim, edim):
    H = hdim

    def u(k, shape, bound):
        return jax.random.uniform(k, shape, jnp.float32, -bound, bound)

    bound = 1.0 / float(H) ** 0.5
    params = {"gru": []}
    in_sizes = [4 * H, 2 * H]
    k = key
    for layer in range(2):
        I = in_sizes[layer]
        dirs = []
        for _ in range(2):  # forward / reverse
            k, k1, k2, k3, k4 = jax.random.split(k, 5)
            dirs.append((u(k1, (I, 3 * H), bound),     # W_ih^T
                         u(k2, (H, 3 * H), bound),     # W_hh^T
                         u(k3, (1, 3 * H), bound),     # b_ih
                         u(k4, (1, 3 * H), bound)))    # b_hh
        params["gru"].append(tuple(dirs))

    D = 2 * H
    bd = 1.0 / float(D) ** 0.5
    k, k1, k2, k3, k4 = jax.random.split(k, 5)
    params["cls"] = dict(w1_t=u(k1, (D, D), bd), b1=u(k2, (1, D), bd),
                         w2_t=u(k3, (D, edim), bd), b2=u(k4, (1, edim), bd))
    return params


def pack_params(raw, hdim, edim, e_pad=128):
    H = hdim
    layers = []
    for fwd, bwd in raw["gru"]:
        wih_f, whh_f, bih_f, bhh_f = fwd
        wih_b, whh_b, bih_b, bhh_b = bwd
        layers.append(dict(
            wih_cat=jnp.concatenate([wih_f, wih_b], axis=1).astype(jnp.bfloat16),
            bias_cat=jnp.concatenate([bih_f, bih_b], axis=1),     # f32 (1, 6H)
            whh=jnp.stack([whh_f, whh_b], axis=0).astype(jnp.bfloat16),
            bhh=jnp.stack([bhh_f, bhh_b], axis=0),                # f32 (2, 1, 3H)
        ))
    l1, l2 = layers
    # layer-2 input is the stacked (fwd, bwd) layer-1 output: split W_ih rows
    # so the concat never has to be materialised.
    l2["wih_a"] = l2["wih_cat"][:H]
    l2["wih_b"] = l2["wih_cat"][H:]
    del l2["wih_cat"]

    c = raw["cls"]
    w1 = c["w1_t"].astype(jnp.bfloat16)
    D = c["w1_t"].shape[0]
    w2_pad = jnp.zeros((D, e_pad), jnp.float32).at[:, :edim].set(c["w2_t"]).astype(jnp.bfloat16)
    # padded bias lanes -> -1e30 so the padded logits underflow to 0 in the
    # logsumexp; the caller slices logp[:, :edim].
    b2_pad = jnp.full((1, e_pad), -1e30, jnp.float32).at[:, :edim].set(c["b2"])
    cls = dict(w1a=w1[:H], w1b=w1[H:], b1=c["b1"], w2_pad=w2_pad, b2_pad=b2_pad)
    return dict(l1=l1, l2=l2, cls=cls)


# ----------------------------------------------------------------------------
# Pure-JAX reference (same math: bf16 matmul operands, f32 accumulation).
# ----------------------------------------------------------------------------
def _bf16_dot(a, b):
    return jnp.dot(a.astype(jnp.bfloat16), b.astype(jnp.bfloat16),
                   preferred_element_type=jnp.float32)


def _gru_dir_ref(x, wih_t, whh_t, bih, bhh):
    H = whh_t.shape[0]

    def step(h, xt):
        gi = _bf16_dot(xt, wih_t) + bih[0]
        gh = _bf16_dot(h, whh_t) + bhh[0]
        r = jax.nn.sigmoid(gi[:, :H] + gh[:, :H])
        z = jax.nn.sigmoid(gi[:, H:2 * H] + gh[:, H:2 * H])
        n = jnp.tanh(gi[:, 2 * H:] + r * gh[:, 2 * H:])
        h_new = (1.0 - z) * n + z * h
        return h_new, h_new

    h0 = jnp.zeros((x.shape[1], H), jnp.float32)
    _, ys = jax.lax.scan(step, h0, x)
    return ys


def reference_forward(embeddings, raw):
    x = embeddings
    for fwd, bwd in raw["gru"]:
        of = _gru_dir_ref(x, *fwd)
        ob = jnp.flip(_gru_dir_ref(jnp.flip(x, 0), *bwd), 0)
        x = jnp.concatenate([of, ob], -1)
    c = raw["cls"]
    h = _bf16_dot(x, c["w1_t"]) + c["b1"][0]
    h = h * jnp.tanh(_softplus(h))
    logits = _bf16_dot(h, c["w2_t"]) + c["b2"][0]
    return jax.nn.log_softmax(logits, axis=-1)


if __name__ == "__main__":
    hdim, edim = 128, 5          # small-scale stand-ins for 768 / len(ENTITIES)
    batch, seq = 2, 8

    key = jax.random.PRNGKey(0)
    k_emb, k_par = jax.random.split(key)

    # TODO(synk): tokenizer + pretrained BERT encoder have no Pallas
    # equivalent; synthetic concatenated hidden-state embeddings stand in.
    embeddings = jax.random.normal(k_emb, (batch, seq, 4 * hdim), jnp.float32)
    raw = init_params(k_par, hdim, edim)
    packed = pack_params(raw, hdim, edim)

    entity = joint_entity_relation_forward(embeddings, packed, edim=edim)
    entity = jax.block_until_ready(entity)

    assert entity.shape == (batch, seq, edim)
    assert bool(jnp.all(jnp.isfinite(entity)))
    ref = reference_forward(embeddings, raw)
    err = float(jnp.max(jnp.abs(entity - ref)))
    assert bool(jnp.allclose(entity, ref, atol=2e-3, rtol=2e-3)), err
    print("KERNEL_OK")
</pallas_src>

<mosaic_0001>
module attributes {stable_mosaic.version = 11 : i64} {
  func.func @_proj_single_kernel(%arg0: i32, %arg1: memref<16x512xf32, #tpu.memory_space<vmem>>, %arg2: memref<512x768xbf16, #tpu.memory_space<vmem>>, %arg3: memref<1x768xf32, #tpu.memory_space<vmem>>, %arg4: memref<16x768xf32, #tpu.memory_space<vmem>>) attributes {dimension_semantics = [#tpu.dimension_semantics<parallel>], iteration_bounds = array<i64: 1>, scalar_prefetch = 0 : i64, scratch_operands = 0 : i64, tpu.core_type = #tpu.core_type<tc>, window_params = [{transform_indices = @transform_0, window_bounds = array<i64: 16, 512>}, {pipeline_mode = #tpu.pipeline_mode<synchronous>, transform_indices = @transform_1, window_bounds = array<i64: 512, 768>}, {pipeline_mode = #tpu.pipeline_mode<synchronous>, transform_indices = @transform_2, window_bounds = array<i64: 1, 768>}, {transform_indices = @transform_3, window_bounds = array<i64: 16, 768>}]} {
    %c0 = arith.constant 0 : index
    %c0_0 = arith.constant 0 : index
    %0 = vector.load %arg1[%c0, %c0_0] : memref<16x512xf32, #tpu.memory_space<vmem>>, vector<16x512xf32>
    %1 = arith.truncf %0 : vector<16x512xf32> to vector<16x512xbf16>
    %c0_1 = arith.constant 0 : index
    %c0_2 = arith.constant 0 : index
    %2 = vector.load %arg2[%c0_1, %c0_2] : memref<512x768xbf16, #tpu.memory_space<vmem>>, vector<512x768xbf16>
    %cst = arith.constant dense<0.000000e+00> : vector<16x768xf32>
    %3 = tpu.matmul %1, %2, %cst {dimension_numbers = #tpu.dot_dimension_numbers<[1], [0], [0], [1], [0, 0, 1, 1], [], []>} : vector<16x512xbf16>, vector<512x768xbf16>, vector<16x768xf32> -> vector<16x768xf32>
    %c0_3 = arith.constant 0 : index
    %c0_4 = arith.constant 0 : index
    %4 = vector.load %arg3[%c0_3, %c0_4] : memref<1x768xf32, #tpu.memory_space<vmem>>, vector<1x768xf32>
    %5 = vector.broadcast %4 : vector<1x768xf32> to vector<16x768xf32>
    %6 = arith.addf %3, %5 : vector<16x768xf32>
    %c0_5 = arith.constant 0 : index
    %c0_6 = arith.constant 0 : index
    %7 = vector.load %arg4[%c0_5, %c0_6] : memref<16x768xf32, #tpu.memory_space<vmem>>, vector<16x768xf32>
    tpu.vector_store %arg4[%c0_5, %c0_6], %6 {strides = array<i32>} : memref<16x768xf32, #tpu.memory_space<vmem>>, vector<16x768xf32>,
    return
  }
  func.func @transform_0(%arg0: i32) -> (i32, i32) {
    %c0_i32 = arith.constant 0 : i32
    %c0_i32_0 = arith.constant 0 : i32
    return %arg0, %c0_i32 : i32, i32
  }
  func.func @transform_1(%arg0: i32) -> (i32, i32) {
    %c0_i32 = arith.constant 0 : i32
    %c0_i32_0 = arith.constant 0 : i32
    %c0_i32_1 = arith.constant 0 : i32
    return %c0_i32, %c0_i32_0 : i32, i32
  }
  func.func @transform_2(%arg0: i32) -> (i32, i32) {
    %c0_i32 = arith.constant 0 : i32
    %c0_i32_0 = arith.constant 0 : i32
    %c0_i32_1 = arith.constant 0 : i32
    return %c0_i32, %c0_i32_0 : i32, i32
  }
  func.func @transform_3(%arg0: i32) -> (i32, i32) {
    %c0_i32 = arith.constant 0 : i32
    %c0_i32_0 = arith.constant 0 : i32
    return %arg0, %c0_i32 : i32, i32
  }
}

module attributes {stable_mosaic.version = 11 : i64} {
  func.func @_gru_step_kernel(%arg0: i32, %arg1: i32, %arg2: memref<1x8x384xf32, #tpu.memory_space<vmem>>, %arg3: memref<1x128x384xbf16, #tpu.memory_space<vmem>>, %arg4: memref<1x1x384xf32, #tpu.memory_space<vmem>>, %arg5: memref<1x1x8x128xf32, #tpu.memory_space<vmem>>, %arg6: memref<8x128xf32, #tpu.memory_space<vmem>>) attributes {dimension_semantics = [#tpu.dimension_semantics<parallel>, #tpu.dimension_semantics<arbitrary>], iteration_bounds = array<i64: 2, 2>, scalar_prefetch = 0 : i64, scratch_operands = 1 : i64, tpu.core_type = #tpu.core_type<tc>, window_params = [{transform_indices = @transform_0, window_bounds = array<i64: 1, 8, 384>}, {transform_indices = @transform_1, window_bounds = array<i64: 1, 128, 384>}, {transform_indices = @transform_2, window_bounds = array<i64: 1, 1, 384>}, {transform_indices = @transform_3, window_bounds = array<i64: 1, 1, 8, 128>}]} {
    %c0_i32 = arith.constant 0 : i32
    %0 = arith.cmpi eq, %arg1, %c0_i32 : i32
    %1 = arith.extui %0 : i1 to i32
    %c0_i32_0 = arith.constant 0 : i32
    %2 = arith.cmpi ne, %1, %c0_i32_0 : i32
    scf.if %2 {
      %cst_20 = arith.constant 0.000000e+00 : f32
      %44 = vector.broadcast %cst_20 : f32 to vector<8x128xf32>
      %c0_21 = arith.constant 0 : index
      %c0_22 = arith.constant 0 : index
      %45 = vector.load %arg6[%c0_21, %c0_22] : memref<8x128xf32, #tpu.memory_space<vmem>>, vector<8x128xf32>
      tpu.vector_store %arg6[%c0_21, %c0_22], %44 {strides = array<i32>} : memref<8x128xf32, #tpu.memory_space<vmem>>, vector<8x128xf32>,
    } else {
    }
    %c0 = arith.constant 0 : index
    %c0_1 = arith.constant 0 : index
    %c0_2 = arith.constant 0 : index
    %3 = vector.load %arg2[%c0, %c0_1, %c0_2] : memref<1x8x384xf32, #tpu.memory_space<vmem>>, vector<1x8x384xf32>
    %4 = vector.shape_cast %3 : vector<1x8x384xf32> to vector<8x384xf32>
    %c0_3 = arith.constant 0 : index
    %c0_4 = arith.constant 0 : index
    %5 = vector.load %arg6[%c0_3, %c0_4] : memref<8x128xf32, #tpu.memory_space<vmem>>, vector<8x128xf32>
    %6 = arith.truncf %5 : vector<8x128xf32> to vector<8x128xbf16>
    %c0_5 = arith.constant 0 : index
    %c0_6 = arith.constant 0 : index
    %c0_7 = arith.constant 0 : index
    %7 = vector.load %arg3[%c0_5, %c0_6, %c0_7] : memref<1x128x384xbf16, #tpu.memory_space<vmem>>, vector<1x128x384xbf16>
    %8 = vector.shape_cast %7 : vector<1x128x384xbf16> to vector<128x384xbf16>
    %cst = arith.constant dense<0.000000e+00> : vector<8x384xf32>
    %9 = tpu.matmul %6, %8, %cst {dimension_numbers = #tpu.dot_dimension_numbers<[1], [0], [0], [1], [0, 0, 1, 1], [], []>} : vector<8x128xbf16>, vector<128x384xbf16>, vector<8x384xf32> -> vector<8x384xf32>
    %c0_8 = arith.constant 0 : index
    %c0_9 = arith.constant 0 : index
    %c0_10 = arith.constant 0 : index
    %10 = vector.load %arg4[%c0_8, %c0_9, %c0_10] : memref<1x1x384xf32, #tpu.memory_space<vmem>>, vector<1x1x384xf32>
    %11 = vector.shape_cast %10 : vector<1x1x384xf32> to vector<1x384xf32>
    %12 = vector.broadcast %11 : vector<1x384xf32> to vector<8x384xf32>
    %13 = arith.addf %9, %12 : vector<8x384xf32>
    %14 = vector.extract_strided_slice %4 {offsets = [0, 0], sizes = [8, 128], strides = [1, 1]} : vector<8x384xf32> to vector<8x128xf32>
    %15 = vector.extract_strided_slice %13 {offsets = [0, 0], sizes = [8, 128], strides = [1, 1]} : vector<8x384xf32> to vector<8x128xf32>
    %16 = arith.addf %14, %15 : vector<8x128xf32>
    %17 = arith.negf %16 : vector<8x128xf32>
    %18 = math.exp %17 : vector<8x128xf32>
    %cst_11 = arith.constant 1.000000e+00 : f32
    %19 = vector.broadcast %cst_11 : f32 to vector<8x128xf32>
    %20 = arith.addf %19, %18 : vector<8x128xf32>
    %21 = arith.divf %19, %20 : vector<8x128xf32>
    %22 = vector.extract_strided_slice %4 {offsets = [0, 128], sizes = [8, 128], strides = [1, 1]} : vector<8x384xf32> to vector<8x128xf32>
    %23 = vector.extract_strided_slice %13 {offsets = [0, 128], sizes = [8, 128], strides = [1, 1]} : vector<8x384xf32> to vector<8x128xf32>
    %24 = arith.addf %22, %23 : vector<8x128xf32>
    %25 = arith.negf %24 : vector<8x128xf32>
    %26 = math.exp %25 : vector<8x128xf32>
    %cst_12 = arith.constant 1.000000e+00 : f32
    %27 = vector.broadcast %cst_12 : f32 to vector<8x128xf32>
    %28 = arith.addf %27, %26 : vector<8x128xf32>
    %29 = arith.divf %27, %28 : vector<8x128xf32>
    %30 = vector.extract_strided_slice %4 {offsets = [0, 256], sizes = [8, 128], strides = [1, 1]} : vector<8x384xf32> to vector<8x128xf32>
    %31 = vector.extract_strided_slice %13 {offsets = [0, 256], sizes = [8, 128], strides = [1, 1]} : vector<8x384xf32> to vector<8x128xf32>
    %32 = arith.mulf %21, %31 : vector<8x128xf32>
    %33 = arith.addf %30, %32 : vector<8x128xf32>
    %34 = math.tanh %33 : vector<8x128xf32>
    %cst_13 = arith.constant 1.000000e+00 : f32
    %35 = vector.broadcast %cst_13 : f32 to vector<8x128xf32>
    %36 = arith.subf %35, %29 : vector<8x128xf32>
    %37 = arith.mulf %36, %34 : vector<8x128xf32>
    %38 = arith.mulf %29, %5 : vector<8x128xf32>
    %39 = arith.addf %37, %38 : vector<8x128xf32>
    %c0_14 = arith.constant 0 : index
    %c0_15 = arith.constant 0 : index
    %40 = vector.load %arg6[%c0_14, %c0_15] : memref<8x128xf32, #tpu.memory_space<vmem>>, vector<8x128xf32>
    tpu.vector_store %arg6[%c0_14, %c0_15], %39 {strides = array<i32>} : memref<8x128xf32, #tpu.memory_space<vmem>>, vector<8x128xf32>,
    %c0_16 = arith.constant 0 : index
    %c0_17 = arith.constant 0 : index
    %c0_18 = arith.constant 0 : index
    %c0_19 = arith.constant 0 : index
    %41 = vector.load %arg5[%c0_16, %c0_17, %c0_18, %c0_19] : memref<1x1x8x128xf32, #tpu.memory_space<vmem>>, vector<1x1x8x128xf32>
    %42 = vector.shape_cast %41 : vector<1x1x8x128xf32> to vector<8x128xf32>
    %43 = vector.shape_cast %39 : vector<8x128xf32> to vector<1x1x8x128xf32>
    tpu.vector_store %arg5[%c0_16, %c0_17, %c0_18, %c0_19], %43 {strides = array<i32>} : memref<1x1x8x128xf32, #tpu.memory_space<vmem>>, vector<1x1x8x128xf32>,
    return
  }
  func.func @transform_0(%arg0: i32, %arg1: i32) -> (i32, i32, i32) {
    %c2_i32 = arith.constant 2 : i32
    %0 = arith.muli %c2_i32, %arg1 : i32
    %c1_i32 = arith.constant 1 : i32
    %1 = arith.subi %c1_i32, %0 : i32
    %2 = arith.muli %arg0, %1 : i32
    %3 = arith.addi %arg1, %2 : i32
    %c0_i32 = arith.constant 0 : i32
    %c0_i32_0 = arith.constant 0 : i32
    return %3, %c0_i32, %arg0 : i32, i32, i32
  }
  func.func @transform_1(%arg0: i32, %arg1: i32) -> (i32, i32, i32) {
    %c0_i32 = arith.constant 0 : i32
    %c0_i32_0 = arith.constant 0 : i32
    %c0_i32_1 = arith.constant 0 : i32
    return %arg0, %c0_i32, %c0_i32_0 : i32, i32, i32
  }
  func.func @transform_2(%arg0: i32, %arg1: i32) -> (i32, i32, i32) {
    %c0_i32 = arith.constant 0 : i32
    %c0_i32_0 = arith.constant 0 : i32
    %c0_i32_1 = arith.constant 0 : i32
    return %arg0, %c0_i32, %c0_i32_0 : i32, i32, i32
  }
  func.func @transform_3(%arg0: i32, %arg1: i32) -> (i32, i32, i32, i32) {
    %c2_i32 = arith.constant 2 : i32
    %0 = arith.muli %c2_i32, %arg1 : i32
    %c1_i32 = arith.constant 1 : i32
    %1 = arith.subi %c1_i32, %0 : i32
    %2 = arith.muli %arg0, %1 : i32
    %3 = arith.addi %arg1, %2 : i32
    %c0_i32 = arith.constant 0 : i32
    %c0_i32_0 = arith.constant 0 : i32
    %c0_i32_1 = arith.constant 0 : i32
    return %arg0, %3, %c0_i32, %c0_i32_0 : i32, i32, i32, i32
  }
}

module attributes {stable_mosaic.version = 11 : i64} {
  func.func @_proj_dual_kernel(%arg0: i32, %arg1: memref<2x16x128xf32, #tpu.memory_space<vmem>>, %arg2: memref<128x768xbf16, #tpu.memory_space<vmem>>, %arg3: memref<128x768xbf16, #tpu.memory_space<vmem>>, %arg4: memref<1x768xf32, #tpu.memory_space<vmem>>, %arg5: memref<16x768xf32, #tpu.memory_space<vmem>>) attributes {dimension_semantics = [#tpu.dimension_semantics<parallel>], iteration_bounds = array<i64: 1>, scalar_prefetch = 0 : i64, scratch_operands = 0 : i64, tpu.core_type = #tpu.core_type<tc>, window_params = [{transform_indices = @transform_0, window_bounds = array<i64: 2, 16, 128>}, {pipeline_mode = #tpu.pipeline_mode<synchronous>, transform_indices = @transform_1, window_bounds = array<i64: 128, 768>}, {pipeline_mode = #tpu.pipeline_mode<synchronous>, transform_indices = @transform_2, window_bounds = array<i64: 128, 768>}, {pipeline_mode = #tpu.pipeline_mode<synchronous>, transform_indices = @transform_3, window_bounds = array<i64: 1, 768>}, {transform_indices = @transform_4, window_bounds = array<i64: 16, 768>}]} {
    %c0 = arith.constant 0 : index
    %c0_0 = arith.constant 0 : index
    %c0_1 = arith.constant 0 : index
    %0 = vector.load %arg1[%c0, %c0_0, %c0_1] : memref<2x16x128xf32, #tpu.memory_space<vmem>>, vector<1x16x128xf32>
    %1 = vector.shape_cast %0 : vector<1x16x128xf32> to vector<16x128xf32>
    %2 = arith.truncf %1 : vector<16x128xf32> to vector<16x128xbf16>
    %c0_2 = arith.constant 0 : index
    %c0_3 = arith.constant 0 : index
    %3 = vector.load %arg2[%c0_2, %c0_3] : memref<128x768xbf16, #tpu.memory_space<vmem>>, vector<128x768xbf16>
    %cst = arith.constant dense<0.000000e+00> : vector<16x768xf32>
    %4 = tpu.matmul %2, %3, %cst {dimension_numbers = #tpu.dot_dimension_numbers<[1], [0], [0], [1], [0, 0, 1, 1], [], []>} : vector<16x128xbf16>, vector<128x768xbf16>, vector<16x768xf32> -> vector<16x768xf32>
    %c1 = arith.constant 1 : index
    %c0_4 = arith.constant 0 : index
    %c0_5 = arith.constant 0 : index
    %5 = vector.load %arg1[%c1, %c0_4, %c0_5] : memref<2x16x128xf32, #tpu.memory_space<vmem>>, vector<1x16x128xf32>
    %6 = vector.shape_cast %5 : vector<1x16x128xf32> to vector<16x128xf32>
    %7 = arith.truncf %6 : vector<16x128xf32> to vector<16x128xbf16>
    %c0_6 = arith.constant 0 : index
    %c0_7 = arith.constant 0 : index
    %8 = vector.load %arg3[%c0_6, %c0_7] : memref<128x768xbf16, #tpu.memory_space<vmem>>, vector<128x768xbf16>
    %cst_8 = arith.constant dense<0.000000e+00> : vector<16x768xf32>
    %9 = tpu.matmul %7, %8, %cst_8 {dimension_numbers = #tpu.dot_dimension_numbers<[1], [0], [0], [1], [0, 0, 1, 1], [], []>} : vector<16x128xbf16>, vector<128x768xbf16>, vector<16x768xf32> -> vector<16x768xf32>
    %10 = arith.addf %4, %9 : vector<16x768xf32>
    %c0_9 = arith.constant 0 : index
    %c0_10 = arith.constant 0 : index
    %11 = vector.load %arg4[%c0_9, %c0_10] : memref<1x768xf32, #tpu.memory_space<vmem>>, vector<1x768xf32>
    %12 = vector.broadcast %11 : vector<1x768xf32> to vector<16x768xf32>
    %13 = arith.addf %10, %12 : vector<16x768xf32>
    %c0_11 = arith.constant 0 : index
    %c0_12 = arith.constant 0 : index
    %14 = vector.load %arg5[%c0_11, %c0_12] : memref<16x768xf32, #tpu.memory_space<vmem>>, vector<16x768xf32>
    tpu.vector_store %arg5[%c0_11, %c0_12], %13 {strides = array<i32>} : memref<16x768xf32, #tpu.memory_space<vmem>>, vector<16x768xf32>,
    return
  }
  func.func @transform_0(%arg0: i32) -> (i32, i32, i32) {
    %c0_i32 = arith.constant 0 : i32
    %c0_i32_0 = arith.constant 0 : i32
    %c0_i32_1 = arith.constant 0 : i32
    return %c0_i32, %arg0, %c0_i32_0 : i32, i32, i32
  }
  func.func @transform_1(%arg0: i32) -> (i32, i32) {
    %c0_i32 = arith.constant 0 : i32
    %c0_i32_0 = arith.constant 0 : i32
    %c0_i32_1 = arith.constant 0 : i32
    return %c0_i32, %c0_i32_0 : i32, i32
  }
  func.func @transform_2(%arg0: i32) -> (i32, i32) {
    %c0_i32 = arith.constant 0 : i32
    %c0_i32_0 = arith.constant 0 : i32
    %c0_i32_1 = arith.constant 0 : i32
    return %c0_i32, %c0_i32_0 : i32, i32
  }
  func.func @transform_3(%arg0: i32) -> (i32, i32) {
    %c0_i32 = arith.constant 0 : i32
    %c0_i32_0 = arith.constant 0 : i32
    %c0_i32_1 = arith.constant 0 : i32
    return %c0_i32, %c0_i32_0 : i32, i32
  }
  func.func @transform_4(%arg0: i32) -> (i32, i32) {
    %c0_i32 = arith.constant 0 : i32
    %c0_i32_0 = arith.constant 0 : i32
    return %arg0, %c0_i32 : i32, i32
  }
}

module attributes {stable_mosaic.version = 11 : i64} {
  func.func @_gru_step_kernel(%arg0: i32, %arg1: i32, %arg2: memref<1x8x384xf32, #tpu.memory_space<vmem>>, %arg3: memref<1x128x384xbf16, #tpu.memory_space<vmem>>, %arg4: memref<1x1x384xf32, #tpu.memory_space<vmem>>, %arg5: memref<1x1x8x128xf32, #tpu.memory_space<vmem>>, %arg6: memref<8x128xf32, #tpu.memory_space<vmem>>) attributes {dimension_semantics = [#tpu.dimension_semantics<parallel>, #tpu.dimension_semantics<arbitrary>], iteration_bounds = array<i64: 2, 2>, scalar_prefetch = 0 : i64, scratch_operands = 1 : i64, tpu.core_type = #tpu.core_type<tc>, window_params = [{transform_indices = @transform_0, window_bounds = array<i64: 1, 8, 384>}, {transform_indices = @transform_1, window_bounds = array<i64: 1, 128, 384>}, {transform_indices = @transform_2, window_bounds = array<i64: 1, 1, 384>}, {transform_indices = @transform_3, window_bounds = array<i64: 1, 1, 8, 128>}]} {
    %c0_i32 = arith.constant 0 : i32
    %0 = arith.cmpi eq, %arg1, %c0_i32 : i32
    %1 = arith.extui %0 : i1 to i32
    %c0_i32_0 = arith.constant 0 : i32
    %2 = arith.cmpi ne, %1, %c0_i32_0 : i32
    scf.if %2 {
      %cst_20 = arith.constant 0.000000e+00 : f32
      %44 = vector.broadcast %cst_20 : f32 to vector<8x128xf32>
      %c0_21 = arith.constant 0 : index
      %c0_22 = arith.constant 0 : index
      %45 = vector.load %arg6[%c0_21, %c0_22] : memref<8x128xf32, #tpu.memory_space<vmem>>, vector<8x128xf32>
      tpu.vector_store %arg6[%c0_21, %c0_22], %44 {strides = array<i32>} : memref<8x128xf32, #tpu.memory_space<vmem>>, vector<8x128xf32>,
    } else {
    }
    %c0 = arith.constant 0 : index
    %c0_1 = arith.constant 0 : index
    %c0_2 = arith.constant 0 : index
    %3 = vector.load %arg2[%c0, %c0_1, %c0_2] : memref<1x8x384xf32, #tpu.memory_space<vmem>>, vector<1x8x384xf32>
    %4 = vector.shape_cast %3 : vector<1x8x384xf32> to vector<8x384xf32>
    %c0_3 = arith.constant 0 : index
    %c0_4 = arith.constant 0 : index
    %5 = vector.load %arg6[%c0_3, %c0_4] : memref<8x128xf32, #tpu.memory_space<vmem>>, vector<8x128xf32>
    %6 = arith.truncf %5 : vector<8x128xf32> to vector<8x128xbf16>
    %c0_5 = arith.constant 0 : index
    %c0_6 = arith.constant 0 : index
    %c0_7 = arith.constant 0 : index
    %7 = vector.load %arg3[%c0_5, %c0_6, %c0_7] : memref<1x128x384xbf16, #tpu.memory_space<vmem>>, vector<1x128x384xbf16>
    %8 = vector.shape_cast %7 : vector<1x128x384xbf16> to vector<128x384xbf16>
    %cst = arith.constant dense<0.000000e+00> : vector<8x384xf32>
    %9 = tpu.matmul %6, %8, %cst {dimension_numbers = #tpu.dot_dimension_numbers<[1], [0], [0], [1], [0, 0, 1, 1], [], []>} : vector<8x128xbf16>, vector<128x384xbf16>, vector<8x384xf32> -> vector<8x384xf32>
    %c0_8 = arith.constant 0 : index
    %c0_9 = arith.constant 0 : index
    %c0_10 = arith.constant 0 : index
    %10 = vector.load %arg4[%c0_8, %c0_9, %c0_10] : memref<1x1x384xf32, #tpu.memory_space<vmem>>, vector<1x1x384xf32>
    %11 = vector.shape_cast %10 : vector<1x1x384xf32> to vector<1x384xf32>
    %12 = vector.broadcast %11 : vector<1x384xf32> to vector<8x384xf32>
    %13 = arith.addf %9, %12 : vector<8x384xf32>
    %14 = vector.extract_strided_slice %4 {offsets = [0, 0], sizes = [8, 128], strides = [1, 1]} : vector<8x384xf32> to vector<8x128xf32>
    %15 = vector.extract_strided_slice %13 {offsets = [0, 0], sizes = [8, 128], strides = [1, 1]} : vector<8x384xf32> to vector<8x128xf32>
    %16 = arith.addf %14, %15 : vector<8x128xf32>
    %17 = arith.negf %16 : vector<8x128xf32>
    %18 = math.exp %17 : vector<8x128xf32>
    %cst_11 = arith.constant 1.000000e+00 : f32
    %19 = vector.broadcast %cst_11 : f32 to vector<8x128xf32>
    %20 = arith.addf %19, %18 : vector<8x128xf32>
    %21 = arith.divf %19, %20 : vector<8x128xf32>
    %22 = vector.extract_strided_slice %4 {offsets = [0, 128], sizes = [8, 128], strides = [1, 1]} : vector<8x384xf32> to vector<8x128xf32>
    %23 = vector.extract_strided_slice %13 {offsets = [0, 128], sizes = [8, 128], strides = [1, 1]} : vector<8x384xf32> to vector<8x128xf32>
    %24 = arith.addf %22, %23 : vector<8x128xf32>
    %25 = arith.negf %24 : vector<8x128xf32>
    %26 = math.exp %25 : vector<8x128xf32>
    %cst_12 = arith.constant 1.000000e+00 : f32
    %27 = vector.broadcast %cst_12 : f32 to vector<8x128xf32>
    %28 = arith.addf %27, %26 : vector<8x128xf32>
    %29 = arith.divf %27, %28 : vector<8x128xf32>
    %30 = vector.extract_strided_slice %4 {offsets = [0, 256], sizes = [8, 128], strides = [1, 1]} : vector<8x384xf32> to vector<8x128xf32>
    %31 = vector.extract_strided_slice %13 {offsets = [0, 256], sizes = [8, 128], strides = [1, 1]} : vector<8x384xf32> to vector<8x128xf32>
    %32 = arith.mulf %21, %31 : vector<8x128xf32>
    %33 = arith.addf %30, %32 : vector<8x128xf32>
    %34 = math.tanh %33 : vector<8x128xf32>
    %cst_13 = arith.constant 1.000000e+00 : f32
    %35 = vector.broadcast %cst_13 : f32 to vector<8x128xf32>
    %36 = arith.subf %35, %29 : vector<8x128xf32>
    %37 = arith.mulf %36, %34 : vector<8x128xf32>
    %38 = arith.mulf %29, %5 : vector<8x128xf32>
    %39 = arith.addf %37, %38 : vector<8x128xf32>
    %c0_14 = arith.constant 0 : index
    %c0_15 = arith.constant 0 : index
    %40 = vector.load %arg6[%c0_14, %c0_15] : memref<8x128xf32, #tpu.memory_space<vmem>>, vector<8x128xf32>
    tpu.vector_store %arg6[%c0_14, %c0_15], %39 {strides = array<i32>} : memref<8x128xf32, #tpu.memory_space<vmem>>, vector<8x128xf32>,
    %c0_16 = arith.constant 0 : index
    %c0_17 = arith.constant 0 : index
    %c0_18 = arith.constant 0 : index
    %c0_19 = arith.constant 0 : index
    %41 = vector.load %arg5[%c0_16, %c0_17, %c0_18, %c0_19] : memref<1x1x8x128xf32, #tpu.memory_space<vmem>>, vector<1x1x8x128xf32>
    %42 = vector.shape_cast %41 : vector<1x1x8x128xf32> to vector<8x128xf32>
    %43 = vector.shape_cast %39 : vector<8x128xf32> to vector<1x1x8x128xf32>
    tpu.vector_store %arg5[%c0_16, %c0_17, %c0_18, %c0_19], %43 {strides = array<i32>} : memref<1x1x8x128xf32, #tpu.memory_space<vmem>>, vector<1x1x8x128xf32>,
    return
  }
  func.func @transform_0(%arg0: i32, %arg1: i32) -> (i32, i32, i32) {
    %c2_i32 = arith.constant 2 : i32
    %0 = arith.muli %c2_i32, %arg1 : i32
    %c1_i32 = arith.constant 1 : i32
    %1 = arith.subi %c1_i32, %0 : i32
    %2 = arith.muli %arg0, %1 : i32
    %3 = arith.addi %arg1, %2 : i32
    %c0_i32 = arith.constant 0 : i32
    %c0_i32_0 = arith.constant 0 : i32
    return %3, %c0_i32, %arg0 : i32, i32, i32
  }
  func.func @transform_1(%arg0: i32, %arg1: i32) -> (i32, i32, i32) {
    %c0_i32 = arith.constant 0 : i32
    %c0_i32_0 = arith.constant 0 : i32
    %c0_i32_1 = arith.constant 0 : i32
    return %arg0, %c0_i32, %c0_i32_0 : i32, i32, i32
  }
  func.func @transform_2(%arg0: i32, %arg1: i32) -> (i32, i32, i32) {
    %c0_i32 = arith.constant 0 : i32
    %c0_i32_0 = arith.constant 0 : i32
    %c0_i32_1 = arith.constant 0 : i32
    return %arg0, %c0_i32, %c0_i32_0 : i32, i32, i32
  }
  func.func @transform_3(%arg0: i32, %arg1: i32) -> (i32, i32, i32, i32) {
    %c2_i32 = arith.constant 2 : i32
    %0 = arith.muli %c2_i32, %arg1 : i32
    %c1_i32 = arith.constant 1 : i32
    %1 = arith.subi %c1_i32, %0 : i32
    %2 = arith.muli %arg0, %1 : i32
    %3 = arith.addi %arg1, %2 : i32
    %c0_i32 = arith.constant 0 : i32
    %c0_i32_0 = arith.constant 0 : i32
    %c0_i32_1 = arith.constant 0 : i32
    return %arg0, %3, %c0_i32, %c0_i32_0 : i32, i32, i32, i32
  }
}

module attributes {stable_mosaic.version = 11 : i64} {
  func.func @_classifier_kernel(%arg0: i32, %arg1: memref<2x16x128xf32, #tpu.memory_space<vmem>>, %arg2: memref<128x256xbf16, #tpu.memory_space<vmem>>, %arg3: memref<128x256xbf16, #tpu.memory_space<vmem>>, %arg4: memref<1x256xf32, #tpu.memory_space<vmem>>, %arg5: memref<256x128xbf16, #tpu.memory_space<vmem>>, %arg6: memref<1x128xf32, #tpu.memory_space<vmem>>, %arg7: memref<16x128xf32, #tpu.memory_space<vmem>>) attributes {dimension_semantics = [#tpu.dimension_semantics<parallel>], iteration_bounds = array<i64: 1>, scalar_prefetch = 0 : i64, scratch_operands = 0 : i64, tpu.core_type = #tpu.core_type<tc>, window_params = [{transform_indices = @transform_0, window_bounds = array<i64: 2, 16, 128>}, {pipeline_mode = #tpu.pipeline_mode<synchronous>, transform_indices = @transform_1, window_bounds = array<i64: 128, 256>}, {pipeline_mode = #tpu.pipeline_mode<synchronous>, transform_indices = @transform_2, window_bounds = array<i64: 128, 256>}, {pipeline_mode = #tpu.pipeline_mode<synchronous>, transform_indices = @transform_3, window_bounds = array<i64: 1, 256>}, {pipeline_mode = #tpu.pipeline_mode<synchronous>, transform_indices = @transform_4, window_bounds = array<i64: 256, 128>}, {pipeline_mode = #tpu.pipeline_mode<synchronous>, transform_indices = @transform_5, window_bounds = array<i64: 1, 128>}, {transform_indices = @transform_6, window_bounds = array<i64: 16, 128>}]} {
    %c0 = arith.constant 0 : index
    %c0_0 = arith.constant 0 : index
    %c0_1 = arith.constant 0 : index
    %0 = vector.load %arg1[%c0, %c0_0, %c0_1] : memref<2x16x128xf32, #tpu.memory_space<vmem>>, vector<1x16x128xf32>
    %1 = vector.shape_cast %0 : vector<1x16x128xf32> to vector<16x128xf32>
    %2 = arith.truncf %1 : vector<16x128xf32> to vector<16x128xbf16>
    %c0_2 = arith.constant 0 : index
    %c0_3 = arith.constant 0 : index
    %3 = vector.load %arg2[%c0_2, %c0_3] : memref<128x256xbf16, #tpu.memory_space<vmem>>, vector<128x256xbf16>
    %cst = arith.constant dense<0.000000e+00> : vector<16x256xf32>
    %4 = tpu.matmul %2, %3, %cst {dimension_numbers = #tpu.dot_dimension_numbers<[1], [0], [0], [1], [0, 0, 1, 1], [], []>} : vector<16x128xbf16>, vector<128x256xbf16>, vector<16x256xf32> -> vector<16x256xf32>
    %c1 = arith.constant 1 : index
    %c0_4 = arith.constant 0 : index
    %c0_5 = arith.constant 0 : index
    %5 = vector.load %arg1[%c1, %c0_4, %c0_5] : memref<2x16x128xf32, #tpu.memory_space<vmem>>, vector<1x16x128xf32>
    %6 = vector.shape_cast %5 : vector<1x16x128xf32> to vector<16x128xf32>
    %7 = arith.truncf %6 : vector<16x128xf32> to vector<16x128xbf16>
    %c0_6 = arith.constant 0 : index
    %c0_7 = arith.constant 0 : index
    %8 = vector.load %arg3[%c0_6, %c0_7] : memref<128x256xbf16, #tpu.memory_space<vmem>>, vector<128x256xbf16>
    %cst_8 = arith.constant dense<0.000000e+00> : vector<16x256xf32>
    %9 = tpu.matmul %7, %8, %cst_8 {dimension_numbers = #tpu.dot_dimension_numbers<[1], [0], [0], [1], [0, 0, 1, 1], [], []>} : vector<16x128xbf16>, vector<128x256xbf16>, vector<16x256xf32> -> vector<16x256xf32>
    %10 = arith.addf %4, %9 : vector<16x256xf32>
    %c0_9 = arith.constant 0 : index
    %c0_10 = arith.constant 0 : index
    %11 = vector.load %arg4[%c0_9, %c0_10] : memref<1x256xf32, #tpu.memory_space<vmem>>, vector<1x256xf32>
    %12 = vector.broadcast %11 : vector<1x256xf32> to vector<16x256xf32>
    %13 = arith.addf %10, %12 : vector<16x256xf32>
    %cst_11 = arith.constant 2.000000e+01 : f32
    %14 = vector.broadcast %cst_11 : f32 to vector<16x256xf32>
    %15 = arith.cmpf ogt, %13, %14 : vector<16x256xf32>
    %cst_12 = arith.constant 2.000000e+01 : f32
    %16 = vector.broadcast %cst_12 : f32 to vector<16x256xf32>
    %17 = arith.minimumf %13, %16 : vector<16x256xf32>
    %18 = math.exp %17 : vector<16x256xf32>
    %19 = math.log1p %18 : vector<16x256xf32>
    %20 = arith.select %15, %13, %19 : vector<16x256xi1>, vector<16x256xf32>
    %21 = math.tanh %20 : vector<16x256xf32>
    %22 = arith.mulf %13, %21 : vector<16x256xf32>
    %23 = arith.truncf %22 : vector<16x256xf32> to vector<16x256xbf16>
    %c0_13 = arith.constant 0 : index
    %c0_14 = arith.constant 0 : index
    %24 = vector.load %arg5[%c0_13, %c0_14] : memref<256x128xbf16, #tpu.memory_space<vmem>>, vector<256x128xbf16>
    %cst_15 = arith.constant dense<0.000000e+00> : vector<16x128xf32>
    %25 = tpu.matmul %23, %24, %cst_15 {dimension_numbers = #tpu.dot_dimension_numbers<[1], [0], [0], [1], [0, 0, 1, 1], [], []>} : vector<16x256xbf16>, vector<256x128xbf16>, vector<16x128xf32> -> vector<16x128xf32>
    %c0_16 = arith.constant 0 : index
    %c0_17 = arith.constant 0 : index
    %26 = vector.load %arg6[%c0_16, %c0_17] : memref<1x128xf32, #tpu.memory_space<vmem>>, vector<1x128xf32>
    %27 = vector.broadcast %26 : vector<1x128xf32> to vector<16x128xf32>
    %28 = arith.addf %25, %27 : vector<16x128xf32>
    %cst_18 = arith.constant dense<0xFF800000> : vector<16xf32>
    %29 = vector.multi_reduction <maximumf>, %28, %cst_18 [1] : vector<16x128xf32> to vector<16xf32>
    %30 = vector.shape_cast %29 : vector<16xf32> to vector<16x1xf32>
    %31 = vector.broadcast %30 : vector<16x1xf32> to vector<16x128xf32>
    %32 = arith.subf %28, %31 : vector<16x128xf32>
    %33 = math.exp %32 : vector<16x128xf32>
    %cst_19 = arith.constant dense<0.000000e+00> : vector<16xf32>
    %34 = vector.multi_reduction <add>, %33, %cst_19 [1] : vector<16x128xf32> to vector<16xf32>
    %35 = vector.shape_cast %34 : vector<16xf32> to vector<16x1xf32>
    %36 = math.log %35 : vector<16x1xf32>
    %37 = vector.broadcast %36 : vector<16x1xf32> to vector<16x128xf32>
    %38 = arith.subf %32, %37 : vector<16x128xf32>
    %c0_20 = arith.constant 0 : index
    %c0_21 = arith.constant 0 : index
    %39 = vector.load %arg7[%c0_20, %c0_21] : memref<16x128xf32, #tpu.memory_space<vmem>>, vector<16x128xf32>
    tpu.vector_store %arg7[%c0_20, %c0_21], %38 {strides = array<i32>} : memref<16x128xf32, #tpu.memory_space<vmem>>, vector<16x128xf32>,
    return
  }
  func.func @transform_0(%arg0: i32) -> (i32, i32, i32) {
    %c0_i32 = arith.constant 0 : i32
    %c0_i32_0 = arith.constant 0 : i32
    %c0_i32_1 = arith.constant 0 : i32
    return %c0_i32, %arg0, %c0_i32_0 : i32, i32, i32
  }
  func.func @transform_1(%arg0: i32) -> (i32, i32) {
    %c0_i32 = arith.constant 0 : i32
    %c0_i32_0 = arith.constant 0 : i32
    %c0_i32_1 = arith.constant 0 : i32
    return %c0_i32, %c0_i32_0 : i32, i32
  }
  func.func @transform_2(%arg0: i32) -> (i32, i32) {
    %c0_i32 = arith.constant 0 : i32
    %c0_i32_0 = arith.constant 0 : i32
    %c0_i32_1 = arith.constant 0 : i32
    return %c0_i32, %c0_i32_0 : i32, i32
  }
  func.func @transform_3(%arg0: i32) -> (i32, i32) {
    %c0_i32 = arith.constant 0 : i32
    %c0_i32_0 = arith.constant 0 : i32
    %c0_i32_1 = arith.constant 0 : i32
    return %c0_i32, %c0_i32_0 : i32, i32
  }
  func.func @transform_4(%arg0: i32) -> (i32, i32) {
    %c0_i32 = arith.constant 0 : i32
    %c0_i32_0 = arith.constant 0 : i32
    %c0_i32_1 = arith.constant 0 : i32
    return %c0_i32, %c0_i32_0 : i32, i32
  }
  func.func @transform_5(%arg0: i32) -> (i32, i32) {
    %c0_i32 = arith.constant 0 : i32
    %c0_i32_0 = arith.constant 0 : i32
    %c0_i32_1 = arith.constant 0 : i32
    return %c0_i32, %c0_i32_0 : i32, i32
  }
  func.func @transform_6(%arg0: i32) -> (i32, i32) {
    %c0_i32 = arith.constant 0 : i32
    %c0_i32_0 = arith.constant 0 : i32
    return %arg0, %c0_i32 : i32, i32
  }
}

</mosaic_0001>

<llo_original>
// kernel: joint_entity_relation_forward.6
$region0: #{joint_entity_relation_forward.6}
  #allocation0 [shape = 'u32[]', space=smem, size = 0x4, offset = 0x4, fixed_abs, tag = 'smem constant byte address 0x4 - core index']
  #allocation1 [shape = 'u32[72,128]{1,0:T(1,128)}', space=vmem, size = 0x9000, scoped, tag = 'internal scratch']
  #allocation2 [shape = 'f32[8,128]{1,0:T(8,128)}', space=vmem, size = 0x1000, scoped, tag = 'scratch operand']
  %s0 = inlined_call_operand.vmem [shape: f32[2,8,768], index: 0, kind: input, shape index: {}]
  %s1 = inlined_call_operand.hbm [shape: bf16[2,128,384], index: 1, kind: input, shape index: {}]
  %s2 = inlined_call_operand.hbm [shape: f32[2,1,384], index: 2, kind: input, shape index: {}]
  %s3 = inlined_call_operand.vmem [shape: f32[2,2,8,128], index: 3, kind: output, shape index: {}]
  %s4 = sld [smem:[#allocation0]]
  $region57: #{joint_entity_relation_forward.6} parent=0
    _
  %s6 = ssub.s32 1, %s4
  %s7 = scalar_select 0, %s6, %s4
  $region1: #{joint_entity_relation_forward.6} parent=0
    #allocation3 [shape = 'u8[196608]{0}', space=vmem, size = 0x30000, scoped, tag = 'input window, operand 1']
    #allocation4 [shape = 's32[2]{0}', space=sflag, size = 0x8, scoped, tag = 'scoped memory for joint_entity_relation_forward.6']
    #allocation5 [shape = 'u8[3072]{0}', space=vmem, size = 0xc00, scoped, tag = 'input window, operand 2']
    #allocation6 [shape = 's32[2]{0}', space=sflag, size = 0x8, scoped, tag = 'scoped memory for joint_entity_relation_forward.6']
    %8 = vsyncpa [#allocation4], 0
    %s9 = scalar_lea.sflag [#allocation4], 1
    %10 = vsyncpa %s9, 0
    %11 = vsyncpa [#allocation6], 0
    %s12 = scalar_lea.sflag [#allocation6], 1
    %13 = vsyncpa %s12, 0
    loop: start=0, step=1, limit=6
    $region2: #{joint_entity_relation_forward.6} parent=1 // loop_pre_header
      _
    $region3: #{joint_entity_relation_forward.6} parent=1 // loop_header
      %s15 = sphi 0, %s19
      %p16 = scmp.ge.s32.totalorder %s15, 6
      %s22 = sphi 0, %s34
      %s23 = sphi 0, %s30
      %s24 = sphi 0, %s22
      %s25 = sphi 0, %s23
      %s26 = sphi 0, %s24
      %s27 = sphi 0, %s25
      %s47 = sphi 0, %s49
      %s50 = sphi 0, %s47
      %s51 = sphi 0, %s50
      %s67 = sphi 0, %s51
      %s73 = sphi 0, %s75
      %s76 = sphi 0, %s73
      %s77 = sphi 0, %s76
      %s93 = sphi 0, %s77
      %s99 = sphi 0, %s101
      %s102 = sphi 0, %s99
      %s103 = sphi 0, %s102
      %s119 = sphi 0, %s103
      %s135 = sphi 0, %s137
      %s138 = sphi 0, %s135
      %s139 = sphi 0, %s138
      %s155 = sphi 0, %s139
    $region4: #{joint_entity_relation_forward.6} parent=1 // loop_header_branch
      %18 = sbr.rel (%p16) target = $region8
    $region5: #{joint_entity_relation_forward.6} parent=1 // loop_body
      %s20 = ssub.s32 %s15, 1
      %s21 = ssub.s32 %s15, 2
      %s28 = sadd.s32 1, %s23
      %p29 = scmp.ge.s32.totalorder %s28, 2
      %s30 = scalar_select %p29, 0, %s28
      %s31 = sadd.s32 1, %s22
      %s32 = scalar_select %p29, %s31, %s22
      %p33 = scmp.ge.s32.totalorder %s32, 2
      %s34 = scalar_select %p33, 0, %s32
      %s35 = smul.u32 %s23, 2
      %s36 = ssub.s32 1, %s35
      %s37 = smul.u32 %s22, %s36
      %s38 = sadd.s32 %s23, %s37
      %s39 = smul.u32 %s30, 2
      %s40 = ssub.s32 1, %s39
      %s41 = smul.u32 %s34, %s40
      %s42 = sadd.s32 %s30, %s41
      %s43 = ssub.s32 %s38, %s42
      %s44 = ssub.s32 %s22, %s34
      %s45 = sor.u32 %s43, %s44
      %p46 = scmp.eq.s32.totalorder %s45, 0
      %s48 = sadd.s32 %s47, 1
      %s49 = scalar_select %p46, %s47, %s48
      %p52 = pneg %p46
      %p53 = scmp.eq.s32.totalorder %s15, 3
      %p54 = por %p52, %p53
      %p55 = scmp.ne.s32.totalorder %s47, %s50
      %p56 = scmp.eq.s32.totalorder %s15, 0
      %p57 = por %p55, %p56
      %p58 = scmp.ne.s32.totalorder %s47, %s50
      %p59 = scmp.eq.s32.totalorder %s20, 3
      %p60 = por %p58, %p59
      %p61 = scmp.ne.s32.totalorder %s50, %s51
      %p62 = scmp.eq.s32.totalorder %s20, 0
      %p63 = por %p61, %p62
      %p64 = scmp.ne.s32.totalorder %s50, %s51
      %p65 = scmp.eq.s32.totalorder %s21, 3
      %p66 = por %p64, %p65
      %p68 = scmp.ne.s32.totalorder %s51, %s67
      %p69 = scmp.eq.s32.totalorder %s21, 0
      %p70 = por %p68, %p69
      %s71 = ssub.s32 %s22, %s34
      %p72 = scmp.eq.s32.totalorder %s71, 0
      %s74 = sadd.s32 %s73, 1
      %s75 = scalar_select %p72, %s73, %s74
      %p78 = pneg %p72
      %p79 = scmp.eq.s32.totalorder %s15, 3
      %p80 = por %p78, %p79
      %p81 = scmp.ne.s32.totalorder %s73, %s76
      %p82 = scmp.eq.s32.totalorder %s15, 0
      %p83 = por %p81, %p82
      %p84 = scmp.ne.s32.totalorder %s73, %s76
      %p85 = scmp.eq.s32.totalorder %s20, 3
      %p86 = por %p84, %p85
      %p87 = scmp.ne.s32.totalorder %s76, %s77
      %p88 = scmp.eq.s32.totalorder %s20, 0
      %p89 = por %p87, %p88
      %p90 = scmp.ne.s32.totalorder %s76, %s77
      %p91 = scmp.eq.s32.totalorder %s21, 3
      %p92 = por %p90, %p91
      %p94 = scmp.ne.s32.totalorder %s77, %s93
      %p95 = scmp.eq.s32.totalorder %s21, 0
      %p96 = por %p94, %p95
      %s97 = ssub.s32 %s22, %s34
      %p98 = scmp.eq.s32.totalorder %s97, 0
      %s100 = sadd.s32 %s99, 1
      %s101 = scalar_select %p98, %s99, %s100
      %p104 = pneg %p98
      %p105 = scmp.eq.s32.totalorder %s15, 3
      %p106 = por %p104, %p105
      %p107 = scmp.ne.s32.totalorder %s99, %s102
      %p108 = scmp.eq.s32.totalorder %s15, 0
      %p109 = por %p107, %p108
      %p110 = scmp.ne.s32.totalorder %s99, %s102
      %p111 = scmp.eq.s32.totalorder %s20, 3
      %p112 = por %p110, %p111
      %p113 = scmp.ne.s32.totalorder %s102, %s103
      %p114 = scmp.eq.s32.totalorder %s20, 0
      %p115 = por %p113, %p114
      %p116 = scmp.ne.s32.totalorder %s102, %s103
      %p117 = scmp.eq.s32.totalorder %s21, 3
      %p118 = por %p116, %p117
      %p120 = scmp.ne.s32.totalorder %s103, %s119
      %p121 = scmp.eq.s32.totalorder %s21, 0
      %p122 = por %p120, %p121
      %s123 = smul.u32 %s23, 2
      %s124 = ssub.s32 1, %s123
      %s125 = smul.u32 %s22, %s124
      %s126 = sadd.s32 %s23, %s125
      %s127 = smul.u32 %s30, 2
      %s128 = ssub.s32 1, %s127
      %s129 = smul.u32 %s34, %s128
      %s130 = sadd.s32 %s30, %s129
      %s131 = ssub.s32 %s22, %s34
      %s132 = ssub.s32 %s126, %s130
      %s133 = sor.u32 %s131, %s132
      %p134 = scmp.eq.s32.totalorder %s133, 0
      %s136 = sadd.s32 %s135, 1
      %s137 = scalar_select %p134, %s135, %s136
      %p140 = pneg %p134
      %p141 = scmp.eq.s32.totalorder %s15, 3
      %p142 = por %p140, %p141
      %p143 = scmp.ne.s32.totalorder %s135, %s138
      %p144 = scmp.eq.s32.totalorder %s15, 0
      %p145 = por %p143, %p144
      %p146 = scmp.ne.s32.totalorder %s135, %s138
      %p147 = scmp.eq.s32.totalorder %s20, 3
      %p148 = por %p146, %p147
      %p149 = scmp.ne.s32.totalorder %s138, %s139
      %p150 = scmp.eq.s32.totalorder %s20, 0
      %p151 = por %p149, %p150
      %p152 = scmp.ne.s32.totalorder %s138, %s139
      %p153 = scmp.eq.s32.totalorder %s21, 3
      %p154 = por %p152, %p153
      %p156 = scmp.ne.s32.totalorder %s139, %s155
      %p157 = scmp.eq.s32.totalorder %s21, 0
      %p158 = por %p156, %p157
      %p159 = scmp.le.s32.totalorder 1, %s15
      %p160 = scmp.lt.s32.totalorder %s15, 5
      %p161 = pnand %p159, %p160
      %p162 = pneg %p161
      // Predicated region
      $region9: #{joint_entity_relation_forward.6} parent=5 // pred_check
        _
      $region10: #{joint_entity_relation_forward.6} parent=5 // pred_check_branch
        %164 = sbr.rel (%p161) target = $region12
      $region11: #{joint_entity_relation_forward.6} parent=5 // pred_region
        %s165 = ssub.s32 %s15, 1
      $region12: #{joint_entity_relation_forward.6} parent=5 // pred_fallthru
        _
      %p166 = scmp.lt.s32.totalorder %s15, 4
      // Predicated region
      $region13: #{joint_entity_relation_forward.6} parent=5 // pred_check
        %p167 = pneg %p166
      $region14: #{joint_entity_relation_forward.6} parent=5 // pred_check_branch
        %169 = sbr.rel (%p167) target = $region16
      $region15: #{joint_entity_relation_forward.6} parent=5 // pred_region
        // Predicated region
        $region17: #{joint_entity_relation_forward.6} parent=15 // pred_check
          %p170 = pneg %p57
        $region18: #{joint_entity_relation_forward.6} parent=15 // pred_check_branch
          %172 = sbr.rel (%p170) target = $region20
        $region19: #{joint_entity_relation_forward.6} parent=15 // pred_region
          %s173 = smul.u32 %s23, 2
          %s174 = ssub.s32 1, %s173
          %s175 = smul.u32 %s22, %s174
          %s176 = sadd.s32 %s23, %s175
          %s177 = smul.u32 3, %s22
          %p178 = scmp.lt.s32.totalorder %s176, 1
          %s179 = scalar_select %p178, %s176, 1
          %p180 = scmp.lt.s32.totalorder %s177, 5
          %s181 = scalar_select %p180, %s177, 5
          %s182 = smul.addr %s179, 6
          %s183 = sadd.s32 %s181, %s182
          %s184 = smul.addr %s183, 8
          %s185 = scalar_lea.vmem %s0, %s184
          %s186 = smul.u32 %s23, 2
          %s187 = ssub.s32 1, %s186
          %s188 = smul.u32 %s22, %s187
          %s189 = sadd.s32 %s23, %s188
          %s190 = smul.u32 3, %s22
        $region20: #{joint_entity_relation_forward.6} parent=15 // pred_fallthru
          _
        // Predicated region
        $region21: #{joint_entity_relation_forward.6} parent=15 // pred_check
          %p191 = pneg %p83
        $region22: #{joint_entity_relation_forward.6} parent=15 // pred_check_branch
          %193 = sbr.rel (%p191) target = $region24
        $region23: #{joint_entity_relation_forward.6} parent=15 // pred_region
          %s194 = sand.u32 %s73, 1
          %s195 = scalar_lea.sflag [#allocation4], %s194
          %s196 = sand.u32 %s73, 1
          %s197 = smul.addr %s196, 192
          %s198 = scalar_lea.vmem [#allocation3], %s197
          %200 = vsyncadd %s195, 0
          %s201 = smul.addr %s22, 48
          %s202 = smul.addr %s201, 4
          %s203 = scalar_lea.hbm %s1, %s202
          %s204 = sshll.u32 %s203, 4
          %s205 = int_to_ptr.hbm [resolvable:$true] %s204
          %s206 = sshll.u32 %s198, 4
          %s207 = int_to_ptr.vmem [resolvable:$true] %s206
          %212 = dma.hbm_to_vmem [thread:$0]  %s205, 3072, %s207, %s195, 192, 192, 12
        $region24: #{joint_entity_relation_forward.6} parent=15 // pred_fallthru
          _
        // Predicated region
        $region25: #{joint_entity_relation_forward.6} parent=15 // pred_check
          %p213 = pneg %p109
        $region26: #{joint_entity_relation_forward.6} parent=15 // pred_check_branch
          %215 = sbr.rel (%p213) target = $region28
        $region27: #{joint_entity_relation_forward.6} parent=15 // pred_region
          %s216 = sand.u32 %s99, 1
          %s217 = scalar_lea.sflag [#allocation6], %s216
          %s218 = sand.u32 %s99, 1
          %s219 = smul.addr %s218, 3
          %s220 = scalar_lea.vmem [#allocation5], %s219
          %222 = vsyncadd %s217, 0
          %s223 = smul.addr %s22, 3
          %s224 = scalar_lea.hbm %s2, %s223
          %s226 = sshll.u32 %s224, 4
          %s227 = int_to_ptr.hbm [resolvable:$true] %s226
          %s228 = sshll.u32 %s220, 4
          %s229 = int_to_ptr.vmem [resolvable:$true] %s228
          %231 = dma.hbm_to_vmem [thread:$0]  %s227, 48, %s229, %s217
        $region28: #{joint_entity_relation_forward.6} parent=15 // pred_fallthru
          _
      $region16: #{joint_entity_relation_forward.6} parent=5 // pred_fallthru
        _
      %p232 = scmp.le.s32.totalorder 1, %s15
      %p233 = scmp.lt.s32.totalorder %s15, 5
      %p234 = pnand %p232, %p233
      %p235 = pneg %p234
      // Predicated region
      $region29: #{joint_entity_relation_forward.6} parent=5 // pred_check
        _
      $region30: #{joint_entity_relation_forward.6} parent=5 // pred_check_branch
        %237 = sbr.rel (%p234) target = $region32
      $region31: #{joint_entity_relation_forward.6} parent=5 // pred_region
        %s238 = ssub.s32 %s15, 1
        %s239 = sand.u32 %s76, 1
        %s240 = scalar_lea.sflag [#allocation4], %s239
        %s241 = sand.u32 %s76, 1
        %s242 = smul.addr %s241, 192
        %s243 = scalar_lea.vmem [#allocation3], %s242
        // Predicated region
        $region33: #{joint_entity_relation_forward.6} parent=31 // pred_check
          %p244 = pneg %p89
        $region34: #{joint_entity_relation_forward.6} parent=31 // pred_check_branch
          %246 = sbr.rel (%p244) target = $region36
        $region35: #{joint_entity_relation_forward.6} parent=31 // pred_region
          %248 = dma.done %s240, 3072
        $region36: #{joint_entity_relation_forward.6} parent=31 // pred_fallthru
          _
        %s249 = sand.u32 %s102, 1
        %s250 = scalar_lea.sflag [#allocation6], %s249
        %s251 = sand.u32 %s102, 1
        %s252 = smul.addr %s251, 3
        %s253 = scalar_lea.vmem [#allocation5], %s252
        // Predicated region
        $region37: #{joint_entity_relation_forward.6} parent=31 // pred_check
          %p254 = pneg %p115
        $region38: #{joint_entity_relation_forward.6} parent=31 // pred_check_branch
          %256 = sbr.rel (%p254) target = $region40
        $region39: #{joint_entity_relation_forward.6} parent=31 // pred_region
          %258 = dma.done %s250, 48
        $region40: #{joint_entity_relation_forward.6} parent=31 // pred_fallthru
          _
        %s259 = smul.u32 %s25, 2
        %s260 = ssub.s32 1, %s259
        %s261 = smul.u32 %s24, %s260
        %s262 = sadd.s32 %s25, %s261
        %s263 = smul.u32 3, %s24
        %p264 = scmp.lt.s32.totalorder %s262, 1
        %s265 = scalar_select %p264, %s262, 1
        %p266 = scmp.lt.s32.totalorder %s263, 5
        %s267 = scalar_select %p266, %s263, 5
        %s268 = smul.addr %s265, 6
        %s269 = sadd.s32 %s267, %s268
        %s270 = smul.addr %s269, 8
        %s271 = scalar_lea.vmem %s0, %s270
        %p272 = pneg %p63
        %p273 = pneg %p60
        %s274 = sand.u32 %s76, 1
        %s275 = scalar_lea.sflag [#allocation4], %s274
        %s276 = sand.u32 %s76, 1
        %s277 = smul.addr %s276, 192
        %s278 = scalar_lea.vmem [#allocation3], %s277
        %p279 = pneg %p89
        %p280 = pneg %p86
        %s281 = sand.u32 %s102, 1
        %s282 = scalar_lea.sflag [#allocation6], %s281
        %s283 = sand.u32 %s102, 1
        %s284 = smul.addr %s283, 3
        %s285 = scalar_lea.vmem [#allocation5], %s284
        %p286 = pneg %p115
        %p287 = pneg %p112
        %p288 = pneg %p151
        %p289 = pneg %p148
        %s290 = smul.u32 %s25, 2
        %s291 = ssub.s32 1, %s290
        %s292 = smul.u32 %s24, %s291
        %s293 = sadd.s32 %s25, %s292
        %p294 = scmp.lt.s32.totalorder %s24, 1
        %s295 = scalar_select %p294, %s24, 1
        %p296 = scmp.lt.s32.totalorder %s293, 1
        %s297 = scalar_select %p296, %s293, 1
        %s298 = smul.addr %s295, 2
        %s299 = sadd.s32 %s297, %s298
        %s300 = smul.addr %s299, 8
        %s301 = scalar_lea.vmem %s3, %s300
        %s302 = smul.u32 %s25, 2
        %s303 = ssub.s32 1, %s302
        %s304 = smul.u32 %s24, %s303
        %s305 = sadd.s32 %s25, %s304
        %s306 = smul.u32 3, %s24
        %p307 = scmp.lt.s32.totalorder %s305, 1
        %s308 = scalar_select %p307, %s305, 1
        %p309 = scmp.lt.s32.totalorder %s306, 5
        %s310 = scalar_select %p309, %s306, 5
        %s311 = smul.addr %s308, 6
        %s312 = sadd.s32 %s310, %s311
        %s313 = smul.addr %s312, 8
        %s314 = scalar_lea.vmem %s0, %s313
        %s315 = smul.u32 %s25, 2
        %s316 = ssub.s32 1, %s315
        %s317 = smul.u32 %s24, %s316
        %s318 = sadd.s32 %s25, %s317
        %s319 = smul.u32 3, %s24
        %s320 = smul.u32 %s25, 2
        %s321 = ssub.s32 1, %s320
        %s322 = smul.u32 %s24, %s321
        %s323 = sadd.s32 %s25, %s322
        %p324 = scmp.lt.s32.totalorder %s24, 1
        %s325 = scalar_select %p324, %s24, 1
        %p326 = scmp.lt.s32.totalorder %s323, 1
        %s327 = scalar_select %p326, %s323, 1
        %s328 = smul.addr %s325, 2
        %s329 = sadd.s32 %s327, %s328
        %s330 = smul.addr %s329, 8
        %s331 = scalar_lea.vmem %s3, %s330
        %s332 = smul.u32 %s25, 2
        %s333 = ssub.s32 1, %s332
        %s334 = smul.u32 %s24, %s333
        %s335 = sadd.s32 %s25, %s334
        %p336 = scmp.eq.s32.totalorder %s25, 0
        // Predicated region
        $region41: #{joint_entity_relation_forward.6} parent=31 // pred_check
          %p337 = pneg %p336
        $region42: #{joint_entity_relation_forward.6} parent=31 // pred_check_branch
          %339 = sbr.rel (%p337) target = $region44
        $region43: #{joint_entity_relation_forward.6} parent=31 // pred_region
          %340 = vst [vmem:[#allocation2] sm:$0xff] 0.0
        $region44: #{joint_entity_relation_forward.6} parent=31 // pred_fallthru
          _
        %v341 = vld [vmem:[%s314] sm:$0xff]
        %v342 = vld [vmem:[%s314 + $0x8] sm:$0xff]
        %v343 = vld [vmem:[%s314 + $0x10] sm:$0xff]
        %v344 = vld [vmem:[#allocation2] sm:$0xff]
        %v345 = vpack.c.bf16 %v344, %v344
        %v346 = vld [vmem:[%s243] sm:$0xff]
        %v347 = vld [vmem:[%s243 + $0x8] sm:$0xf]
        %v348 = vld [vmem:[%s243 + $0xc] sm:$0xff]
        %v349 = vld [vmem:[%s243 + $0x14] sm:$0xf]
        %v350 = vld [vmem:[%s243 + $0x18] sm:$0xff]
        %v351 = vld [vmem:[%s243 + $0x20] sm:$0xf]
        %v352 = vld [vmem:[%s243 + $0x24] sm:$0xff]
        %v353 = vld [vmem:[%s243 + $0x2c] sm:$0xf]
        %v354 = vld [vmem:[%s243 + $0x30] sm:$0xff]
        %v355 = vld [vmem:[%s243 + $0x38] sm:$0xf]
        %v356 = vld [vmem:[%s243 + $0x3c] sm:$0xff]
        %v357 = vld [vmem:[%s243 + $0x44] sm:$0xf]
        %v358 = vld [vmem:[%s243 + $0x48] sm:$0xff]
        %v359 = vld [vmem:[%s243 + $0x50] sm:$0xf]
        %v360 = vld [vmem:[%s243 + $0x54] sm:$0xff]
        %v361 = vld [vmem:[%s243 + $0x5c] sm:$0xf]
        %v362 = vld [vmem:[%s243 + $0x60] sm:$0xff]
        %v363 = vld [vmem:[%s243 + $0x68] sm:$0xf]
        %v364 = vld [vmem:[%s243 + $0x6c] sm:$0xff]
        %v365 = vld [vmem:[%s243 + $0x74] sm:$0xf]
        %v366 = vld [vmem:[%s243 + $0x78] sm:$0xff]
        %v367 = vld [vmem:[%s243 + $0x80] sm:$0xf]
        %v368 = vld [vmem:[%s243 + $0x84] sm:$0xff]
        %v369 = vld [vmem:[%s243 + $0x8c] sm:$0xf]
        %v370 = vld [vmem:[%s243 + $0x90] sm:$0xff]
        %v371 = vld [vmem:[%s243 + $0x98] sm:$0xf]
        %v372 = vld [vmem:[%s243 + $0x9c] sm:$0xff]
        %v373 = vld [vmem:[%s243 + $0xa4] sm:$0xf]
        %v374 = vld [vmem:[%s243 + $0xa8] sm:$0xff]
        %v375 = vld [vmem:[%s243 + $0xb0] sm:$0xf]
        %v376 = vld [vmem:[%s243 + $0xb4] sm:$0xff]
        %v377 = vld [vmem:[%s243 + $0xbc] sm:$0xf]
        %v378 = vld [vmem:[%s253] sm:$0x7]
        %v380 = vperm.slane %v378, 0
        %v381 = vperm.slane %v378, 1
        %v382 = vperm.slane %v378, 2
        %v418 = vunpack.c.l.b16 %v346
        %v419 = vunpack.c.h.b16 %v346
        %v420 = vunpack.c.l.b16 %v347
        %v421 = vunpack.c.l.b16 %v348
        %v422 = vunpack.c.h.b16 %v348
        %v423 = vunpack.c.l.b16 %v349
        %v424 = vunpack.c.l.b16 %v350
        %v425 = vunpack.c.h.b16 %v350
        %v426 = vunpack.c.l.b16 %v351
        %v427 = vunpack.c.l.b16 %v352
        %v428 = vunpack.c.h.b16 %v352
        %v429 = vunpack.c.l.b16 %v353
        %v430 = vunpack.c.l.b16 %v354
        %v431 = vunpack.c.h.b16 %v354
        %v432 = vunpack.c.l.b16 %v355
        %v433 = vunpack.c.l.b16 %v356
        %v434 = vunpack.c.h.b16 %v356
        %v435 = vunpack.c.l.b16 %v357
        %v436 = vunpack.c.l.b16 %v358
        %v437 = vunpack.c.h.b16 %v358
        %v438 = vunpack.c.l.b16 %v359
        %v439 = vunpack.c.l.b16 %v360
        %v440 = vunpack.c.h.b16 %v360
        %v441 = vunpack.c.l.b16 %v361
        %v442 = vunpack.c.l.b16 %v362
        %v443 = vunpack.c.h.b16 %v362
        %v444 = vunpack.c.l.b16 %v363
        %v445 = vunpack.c.l.b16 %v364
        %v446 = vunpack.c.h.b16 %v364
        %v447 = vunpack.c.l.b16 %v365
        %v448 = vunpack.c.l.b16 %v366
        %v449 = vunpack.c.h.b16 %v366
        %v450 = vunpack.c.l.b16 %v367
        %v451 = vunpack.c.l.b16 %v368
        %v452 = vunpack.c.h.b16 %v368
        %v453 = vunpack.c.l.b16 %v369
        %v454 = vunpack.c.l.b16 %v370
        %v455 = vunpack.c.h.b16 %v370
        %v456 = vunpack.c.l.b16 %v371
        %v457 = vunpack.c.l.b16 %v372
        %v458 = vunpack.c.h.b16 %v372
        %v459 = vunpack.c.l.b16 %v373
        %v460 = vunpack.c.l.b16 %v374
        %v461 = vunpack.c.h.b16 %v374
        %v462 = vunpack.c.l.b16 %v375
        %v463 = vunpack.c.l.b16 %v376
        %v464 = vunpack.c.h.b16 %v376
        %v465 = vunpack.c.l.b16 %v377
        %v466 = vpack.c.b16 %v421, %v418
        %v467 = vpack.c.b16 %v422, %v419
        %v468 = vpack.c.b16 %v423, %v420
        %v469 = vpack.c.b16 %v427, %v424
        %v470 = vpack.c.b16 %v428, %v425
        %v471 = vpack.c.b16 %v429, %v426
        %v472 = vpack.c.b16 %v433, %v430
        %v473 = vpack.c.b16 %v434, %v431
        %v474 = vpack.c.b16 %v435, %v432
        %v475 = vpack.c.b16 %v439, %v436
        %v476 = vpack.c.b16 %v440, %v437
        %v477 = vpack.c.b16 %v441, %v438
        %v478 = vpack.c.b16 %v445, %v442
        %v479 = vpack.c.b16 %v446, %v443
        %v480 = vpack.c.b16 %v447, %v444
        %v481 = vpack.c.b16 %v451, %v448
        %v482 = vpack.c.b16 %v452, %v449
        %v483 = vpack.c.b16 %v453, %v450
        %v484 = vpack.c.b16 %v457, %v454
        %v485 = vpack.c.b16 %v458, %v455
        %v486 = vpack.c.b16 %v459, %v456
        %v487 = vpack.c.b16 %v463, %v460
        %v488 = vpack.c.b16 %v464, %v461
        %v489 = vpack.c.b16 %v465, %v462
        %514 = vmatpush.bf16.msra.mxu0 %v487
        %515 = vmatpush.bf16.msra.mxu0 %v484
        %516 = vmatpush.bf16.msra.mxu0 %v481
        %517 = vmatpush.bf16.msra.mxu0 %v478
        %518 = vmatpush.bf16.msra.mxu0 %v475
        %519 = vmatpush.bf16.msra.mxu0 %v472
        %520 = vmatpush.bf16.msra.mxu0 %v469
        %521 = vmatpush.bf16.msra.mxu0 %v466
        %522 = vmatmul.bf16.gmra.mxu0 %v345
        %v523 = vpop.f32.mrf.mxu0
        %v524 = vadd.f32 %v380, %v523
        %v525 = vpop.f32.mrf.mxu0
        %526 = vdwg.mxu0
        %527 = vmatpush.bf16.msra.mxu0 %v488
        %528 = vmatpush.bf16.msra.mxu0 %v485
        %529 = vmatpush.bf16.msra.mxu0 %v482
        %530 = vmatpush.bf16.msra.mxu0 %v479
        %531 = vmatpush.bf16.msra.mxu0 %v476
        %532 = vmatpush.bf16.msra.mxu0 %v473
        %533 = vmatpush.bf16.msra.mxu0 %v470
        %534 = vmatpush.bf16.msra.mxu0 %v467
        %535 = vmatmul.bf16.gmra.mxu0 %v345
        %v536 = vpop.f32.mrf.mxu0
        %v537 = vadd.f32 %v381, %v536
        %v538 = vpop.f32.mrf.mxu0
        %539 = vdwg.mxu0
        %540 = vmatpush.bf16.msra.mxu0 %v489
        %541 = vmatpush.bf16.msra.mxu0 %v486
        %542 = vmatpush.bf16.msra.mxu0 %v483
        %543 = vmatpush.bf16.msra.mxu0 %v480
        %544 = vmatpush.bf16.msra.mxu0 %v477
        %545 = vmatpush.bf16.msra.mxu0 %v474
        %546 = vmatpush.bf16.msra.mxu0 %v471
        %547 = vmatpush.bf16.msra.mxu0 %v468
        %548 = vmatmul.bf16.gmra.mxu0 %v345
        %v549 = vpop.f32.mrf.mxu0
        %v550 = vadd.f32 %v382, %v549
        %v551 = vpop.f32.mrf.mxu0
        %552 = vdwg.mxu0
        %v553 = vadd.f32 %v341, %v524
        %v554 = vxor.u32 %v553, 2147483648
        %v555 = vmul.f32 %v554, 1.442695
        %v556 = vpow.pop %v555
        %v557 = vadd.f32 %v556, 1.0
        %v558 = vrcp.pop %v557
        %v559 = vmul.f32 %v557, %v558
        %v560 = vsub.f32 1.0, %v559
        %v561 = vmul.f32 %v558, %v560
        %v562 = vadd.f32 %v558, %v561
        %vm563 = vweird.f32 %v557
        %vm564 = vweird.f32 %v558
        %vm565 = vmor %vm563, %vm564
        %v566 = vsel %vm565, %v558, %v562
        %v567 = vand.u32 2147483647, %v557
        %vm568 = vcmp.eq.f32.partialorder %v567, 8.507059e+37
        %v569 = vand.u32 %v557, 2147483648
        %v570 = vor.u32 1.1754944e-38, %v569
        %v571 = vsel %vm568, %v570, %v566
        %v572 = vmul.f32 1.0, %v571
        %v573 = vadd.f32 %v342, %v537
        %v574 = vxor.u32 %v573, 2147483648
        %v575 = vmul.f32 %v574, 1.442695
        %v576 = vpow.pop %v575
        %v577 = vadd.f32 %v576, 1.0
        %v578 = vrcp.pop %v577
        %v579 = vmul.f32 %v577, %v578
        %v580 = vsub.f32 1.0, %v579
        %v581 = vmul.f32 %v578, %v580
        %v582 = vadd.f32 %v578, %v581
        %vm583 = vweird.f32 %v577
        %vm584 = vweird.f32 %v578
        %vm585 = vmor %vm583, %vm584
        %v586 = vsel %vm585, %v578, %v582
        %v587 = vand.u32 2147483647, %v577
        %vm588 = vcmp.eq.f32.partialorder %v587, 8.507059e+37
        %v589 = vand.u32 %v577, 2147483648
        %v590 = vor.u32 1.1754944e-38, %v589
        %v591 = vsel %vm588, %v590, %v586
        %v592 = vmul.f32 1.0, %v591
        %v593 = vmul.f32 %v572, %v550
        %v594 = vadd.f32 %v343, %v593
        %v595 = vtanh.pop %v594
        %v596 = vsub.f32 1.0, %v592
        %v597 = vmul.f32 %v596, %v595
        %v598 = vmul.f32 %v592, %v344
        %v599 = vadd.f32 %v597, %v598
        %600 = vst [vmem:[#allocation2] sm:$0xff] %v599
        %601 = vst [vmem:[%s331] sm:$0xff] %v599
        %s602 = smul.u32 %s25, 2
        %s603 = ssub.s32 1, %s602
        %s604 = smul.u32 %s24, %s603
        %s605 = sadd.s32 %s25, %s604
        %p606 = scmp.lt.s32.totalorder %s24, 1
        %s607 = scalar_select %p606, %s24, 1
        %p608 = scmp.lt.s32.totalorder %s605, 1
        %s609 = scalar_select %p608, %s605, 1
        %s610 = smul.addr %s607, 2
        %s611 = sadd.s32 %s609, %s610
        %s612 = smul.addr %s611, 8
        %s613 = scalar_lea.vmem %s3, %s612
        // Predicated region
        $region45: #{joint_entity_relation_forward.6} parent=31 // pred_check
          %p614 = pneg %p148
        $region46: #{joint_entity_relation_forward.6} parent=31 // pred_check_branch
          %616 = sbr.rel (%p614) target = $region48
        $region47: #{joint_entity_relation_forward.6} parent=31 // pred_region
          %s617 = smul.u32 %s25, 2
          %s618 = ssub.s32 1, %s617
          %s619 = smul.u32 %s24, %s618
          %s620 = sadd.s32 %s25, %s619
        $region48: #{joint_entity_relation_forward.6} parent=31 // pred_fallthru
          _
      $region32: #{joint_entity_relation_forward.6} parent=5 // pred_fallthru
        _
      %p621 = scmp.le.s32.totalorder 2, %s15
      // Predicated region
      $region49: #{joint_entity_relation_forward.6} parent=5 // pred_check
        %p622 = pneg %p621
      $region50: #{joint_entity_relation_forward.6} parent=5 // pred_check_branch
        %624 = sbr.rel (%p622) target = $region52
      $region51: #{joint_entity_relation_forward.6} parent=5 // pred_region
        %s625 = ssub.s32 %s15, 2
        // Predicated region
        $region53: #{joint_entity_relation_forward.6} parent=51 // pred_check
          %p626 = pneg %p154
        $region54: #{joint_entity_relation_forward.6} parent=51 // pred_check_branch
          %628 = sbr.rel (%p626) target = $region56
        $region55: #{joint_entity_relation_forward.6} parent=51 // pred_region
          %s629 = smul.u32 %s27, 2
          %s630 = ssub.s32 1, %s629
          %s631 = smul.u32 %s26, %s630
          %s632 = sadd.s32 %s27, %s631
          %p633 = scmp.lt.s32.totalorder %s26, 1
          %s634 = scalar_select %p633, %s26, 1
          %p635 = scmp.lt.s32.totalorder %s632, 1
          %s636 = scalar_select %p635, %s632, 1
          %s637 = smul.addr %s634, 2
          %s638 = sadd.s32 %s636, %s637
          %s639 = smul.addr %s638, 8
          %s640 = scalar_lea.vmem %s3, %s639
        $region56: #{joint_entity_relation_forward.6} parent=51 // pred_fallthru
          _
      $region52: #{joint_entity_relation_forward.6} parent=5 // pred_fallthru
        _
    $region6: #{joint_entity_relation_forward.6} parent=1 // loop_footer
      %s19 = sadd.s32 1, %s15
    $region7: #{joint_entity_relation_forward.6} parent=1 // loop_footer_branch
      %14 = sbr.rel target = $region3
    $region8: #{joint_entity_relation_forward.6} parent=1 // loop_exit
      _
    %641 = vsyncpa [#allocation4], 1
    %s642 = scalar_lea.sflag [#allocation4], 1
    %643 = vsyncpa %s642, 1
    %644 = vsyncpa [#allocation6], 1
    %s645 = scalar_lea.sflag [#allocation6], 1
    %646 = vsyncpa %s645, 1

// kernel: joint_entity_relation_forward.8
$region0: #{joint_entity_relation_forward.8}
  #allocation0 [shape = 'u32[]', space=smem, size = 0x4, offset = 0x4, fixed_abs, tag = 'smem constant byte address 0x4 - core index']
  #allocation1 [shape = 'u32[72,128]{1,0:T(1,128)}', space=vmem, size = 0x9000, scoped, tag = 'internal scratch']
  #allocation2 [shape = 'f32[8,128]{1,0:T(8,128)}', space=vmem, size = 0x1000, scoped, tag = 'scratch operand']
  %s0 = inlined_call_operand.vmem [shape: f32[2,8,768], index: 0, kind: input, shape index: {}]
  %s1 = inlined_call_operand.hbm [shape: bf16[2,128,384], index: 1, kind: input, shape index: {}]
  %s2 = inlined_call_operand.vmem [shape: f32[2,1,384], index: 2, kind: input, shape index: {}]
  %s3 = inlined_call_operand.vmem [shape: f32[2,2,8,128], index: 3, kind: output, shape index: {}]
  %s4 = sld [smem:[#allocation0]]
  $region53: #{joint_entity_relation_forward.8} parent=0
    _
  %s6 = ssub.s32 1, %s4
  %s7 = scalar_select 0, %s6, %s4
  $region1: #{joint_entity_relation_forward.8} parent=0
    #allocation3 [shape = 'u8[196608]{0}', space=vmem, size = 0x30000, scoped, tag = 'input window, operand 1']
    #allocation4 [shape = 's32[2]{0}', space=sflag, size = 0x8, scoped, tag = 'scoped memory for joint_entity_relation_forward.8']
    %8 = vsyncpa [#allocation4], 0
    %s9 = scalar_lea.sflag [#allocation4], 1
    %10 = vsyncpa %s9, 0
    loop: start=0, step=1, limit=6
    $region2: #{joint_entity_relation_forward.8} parent=1 // loop_pre_header
      _
    $region3: #{joint_entity_relation_forward.8} parent=1 // loop_header
      %s12 = sphi 0, %s16
      %p13 = scmp.ge.s32.totalorder %s12, 6
      %s19 = sphi 0, %s31
      %s20 = sphi 0, %s27
      %s21 = sphi 0, %s19
      %s22 = sphi 0, %s20
      %s23 = sphi 0, %s21
      %s24 = sphi 0, %s22
      %s44 = sphi 0, %s46
      %s47 = sphi 0, %s44
      %s48 = sphi 0, %s47
      %s64 = sphi 0, %s48
      %s70 = sphi 0, %s72
      %s73 = sphi 0, %s70
      %s74 = sphi 0, %s73
      %s90 = sphi 0, %s74
      %s96 = sphi 0, %s98
      %s99 = sphi 0, %s96
      %s100 = sphi 0, %s99
      %s116 = sphi 0, %s100
      %s132 = sphi 0, %s134
      %s135 = sphi 0, %s132
      %s136 = sphi 0, %s135
      %s152 = sphi 0, %s136
    $region4: #{joint_entity_relation_forward.8} parent=1 // loop_header_branch
      %15 = sbr.rel (%p13) target = $region8
    $region5: #{joint_entity_relation_forward.8} parent=1 // loop_body
      %s17 = ssub.s32 %s12, 1
      %s18 = ssub.s32 %s12, 2
      %s25 = sadd.s32 1, %s20
      %p26 = scmp.ge.s32.totalorder %s25, 2
      %s27 = scalar_select %p26, 0, %s25
      %s28 = sadd.s32 1, %s19
      %s29 = scalar_select %p26, %s28, %s19
      %p30 = scmp.ge.s32.totalorder %s29, 2
      %s31 = scalar_select %p30, 0, %s29
      %s32 = smul.u32 %s20, 2
      %s33 = ssub.s32 1, %s32
      %s34 = smul.u32 %s19, %s33
      %s35 = sadd.s32 %s20, %s34
      %s36 = smul.u32 %s27, 2
      %s37 = ssub.s32 1, %s36
      %s38 = smul.u32 %s31, %s37
      %s39 = sadd.s32 %s27, %s38
      %s40 = ssub.s32 %s35, %s39
      %s41 = ssub.s32 %s19, %s31
      %s42 = sor.u32 %s40, %s41
      %p43 = scmp.eq.s32.totalorder %s42, 0
      %s45 = sadd.s32 %s44, 1
      %s46 = scalar_select %p43, %s44, %s45
      %p49 = pneg %p43
      %p50 = scmp.eq.s32.totalorder %s12, 3
      %p51 = por %p49, %p50
      %p52 = scmp.ne.s32.totalorder %s44, %s47
      %p53 = scmp.eq.s32.totalorder %s12, 0
      %p54 = por %p52, %p53
      %p55 = scmp.ne.s32.totalorder %s44, %s47
      %p56 = scmp.eq.s32.totalorder %s17, 3
      %p57 = por %p55, %p56
      %p58 = scmp.ne.s32.totalorder %s47, %s48
      %p59 = scmp.eq.s32.totalorder %s17, 0
      %p60 = por %p58, %p59
      %p61 = scmp.ne.s32.totalorder %s47, %s48
      %p62 = scmp.eq.s32.totalorder %s18, 3
      %p63 = por %p61, %p62
      %p65 = scmp.ne.s32.totalorder %s48, %s64
      %p66 = scmp.eq.s32.totalorder %s18, 0
      %p67 = por %p65, %p66
      %s68 = ssub.s32 %s19, %s31
      %p69 = scmp.eq.s32.totalorder %s68, 0
      %s71 = sadd.s32 %s70, 1
      %s72 = scalar_select %p69, %s70, %s71
      %p75 = pneg %p69
      %p76 = scmp.eq.s32.totalorder %s12, 3
      %p77 = por %p75, %p76
      %p78 = scmp.ne.s32.totalorder %s70, %s73
      %p79 = scmp.eq.s32.totalorder %s12, 0
      %p80 = por %p78, %p79
      %p81 = scmp.ne.s32.totalorder %s70, %s73
      %p82 = scmp.eq.s32.totalorder %s17, 3
      %p83 = por %p81, %p82
      %p84 = scmp.ne.s32.totalorder %s73, %s74
      %p85 = scmp.eq.s32.totalorder %s17, 0
      %p86 = por %p84, %p85
      %p87 = scmp.ne.s32.totalorder %s73, %s74
      %p88 = scmp.eq.s32.totalorder %s18, 3
      %p89 = por %p87, %p88
      %p91 = scmp.ne.s32.totalorder %s74, %s90
      %p92 = scmp.eq.s32.totalorder %s18, 0
      %p93 = por %p91, %p92
      %s94 = ssub.s32 %s19, %s31
      %p95 = scmp.eq.s32.totalorder %s94, 0
      %s97 = sadd.s32 %s96, 1
      %s98 = scalar_select %p95, %s96, %s97
      %p101 = pneg %p95
      %p102 = scmp.eq.s32.totalorder %s12, 3
      %p103 = por %p101, %p102
      %p104 = scmp.ne.s32.totalorder %s96, %s99
      %p105 = scmp.eq.s32.totalorder %s12, 0
      %p106 = por %p104, %p105
      %p107 = scmp.ne.s32.totalorder %s96, %s99
      %p108 = scmp.eq.s32.totalorder %s17, 3
      %p109 = por %p107, %p108
      %p110 = scmp.ne.s32.totalorder %s99, %s100
      %p111 = scmp.eq.s32.totalorder %s17, 0
      %p112 = por %p110, %p111
      %p113 = scmp.ne.s32.totalorder %s99, %s100
      %p114 = scmp.eq.s32.totalorder %s18, 3
      %p115 = por %p113, %p114
      %p117 = scmp.ne.s32.totalorder %s100, %s116
      %p118 = scmp.eq.s32.totalorder %s18, 0
      %p119 = por %p117, %p118
      %s120 = smul.u32 %s20, 2
      %s121 = ssub.s32 1, %s120
      %s122 = smul.u32 %s19, %s121
      %s123 = sadd.s32 %s20, %s122
      %s124 = smul.u32 %s27, 2
      %s125 = ssub.s32 1, %s124
      %s126 = smul.u32 %s31, %s125
      %s127 = sadd.s32 %s27, %s126
      %s128 = ssub.s32 %s19, %s31
      %s129 = ssub.s32 %s123, %s127
      %s130 = sor.u32 %s128, %s129
      %p131 = scmp.eq.s32.totalorder %s130, 0
      %s133 = sadd.s32 %s132, 1
      %s134 = scalar_select %p131, %s132, %s133
      %p137 = pneg %p131
      %p138 = scmp.eq.s32.totalorder %s12, 3
      %p139 = por %p137, %p138
      %p140 = scmp.ne.s32.totalorder %s132, %s135
      %p141 = scmp.eq.s32.totalorder %s12, 0
      %p142 = por %p140, %p141
      %p143 = scmp.ne.s32.totalorder %s132, %s135
      %p144 = scmp.eq.s32.totalorder %s17, 3
      %p145 = por %p143, %p144
      %p146 = scmp.ne.s32.totalorder %s135, %s136
      %p147 = scmp.eq.s32.totalorder %s17, 0
      %p148 = por %p146, %p147
      %p149 = scmp.ne.s32.totalorder %s135, %s136
      %p150 = scmp.eq.s32.totalorder %s18, 3
      %p151 = por %p149, %p150
      %p153 = scmp.ne.s32.totalorder %s136, %s152
      %p154 = scmp.eq.s32.totalorder %s18, 0
      %p155 = por %p153, %p154
      %p156 = scmp.le.s32.totalorder 1, %s12
      %p157 = scmp.lt.s32.totalorder %s12, 5
      %p158 = pnand %p156, %p157
      %p159 = pneg %p158
      // Predicated region
      $region9: #{joint_entity_relation_forward.8} parent=5 // pred_check
        _
      $region10: #{joint_entity_relation_forward.8} parent=5 // pred_check_branch
        %161 = sbr.rel (%p158) target = $region12
      $region11: #{joint_entity_relation_forward.8} parent=5 // pred_region
        %s162 = ssub.s32 %s12, 1
      $region12: #{joint_entity_relation_forward.8} parent=5 // pred_fallthru
        _
      %p163 = scmp.lt.s32.totalorder %s12, 4
      // Predicated region
      $region13: #{joint_entity_relation_forward.8} parent=5 // pred_check
        %p164 = pneg %p163
      $region14: #{joint_entity_relation_forward.8} parent=5 // pred_check_branch
        %166 = sbr.rel (%p164) target = $region16
      $region15: #{joint_entity_relation_forward.8} parent=5 // pred_region
        // Predicated region
        $region17: #{joint_entity_relation_forward.8} parent=15 // pred_check
          %p167 = pneg %p54
        $region18: #{joint_entity_relation_forward.8} parent=15 // pred_check_branch
          %169 = sbr.rel (%p167) target = $region20
        $region19: #{joint_entity_relation_forward.8} parent=15 // pred_region
          %s170 = smul.u32 %s20, 2
          %s171 = ssub.s32 1, %s170
          %s172 = smul.u32 %s19, %s171
          %s173 = sadd.s32 %s20, %s172
          %s174 = smul.u32 3, %s19
          %p175 = scmp.lt.s32.totalorder %s173, 1
          %s176 = scalar_select %p175, %s173, 1
          %p177 = scmp.lt.s32.totalorder %s174, 5
          %s178 = scalar_select %p177, %s174, 5
          %s179 = smul.addr %s176, 6
          %s180 = sadd.s32 %s178, %s179
          %s181 = smul.addr %s180, 8
          %s182 = scalar_lea.vmem %s0, %s181
          %s183 = smul.u32 %s20, 2
          %s184 = ssub.s32 1, %s183
          %s185 = smul.u32 %s19, %s184
          %s186 = sadd.s32 %s20, %s185
          %s187 = smul.u32 3, %s19
        $region20: #{joint_entity_relation_forward.8} parent=15 // pred_fallthru
          _
        // Predicated region
        $region21: #{joint_entity_relation_forward.8} parent=15 // pred_check
          %p188 = pneg %p80
        $region22: #{joint_entity_relation_forward.8} parent=15 // pred_check_branch
          %190 = sbr.rel (%p188) target = $region24
        $region23: #{joint_entity_relation_forward.8} parent=15 // pred_region
          %s191 = sand.u32 %s70, 1
          %s192 = scalar_lea.sflag [#allocation4], %s191
          %s193 = sand.u32 %s70, 1
          %s194 = smul.addr %s193, 192
          %s195 = scalar_lea.vmem [#allocation3], %s194
          %197 = vsyncadd %s192, 0
          %s198 = smul.addr %s19, 48
          %s199 = smul.addr %s198, 4
          %s200 = scalar_lea.hbm %s1, %s199
          %s201 = sshll.u32 %s200, 4
          %s202 = int_to_ptr.hbm [resolvable:$true] %s201
          %s203 = sshll.u32 %s195, 4
          %s204 = int_to_ptr.vmem [resolvable:$true] %s203
          %209 = dma.hbm_to_vmem [thread:$0]  %s202, 3072, %s204, %s192, 192, 192, 12
        $region24: #{joint_entity_relation_forward.8} parent=15 // pred_fallthru
          _
        // Predicated region
        $region25: #{joint_entity_relation_forward.8} parent=15 // pred_check
          %p210 = pneg %p106
        $region26: #{joint_entity_relation_forward.8} parent=15 // pred_check_branch
          %212 = sbr.rel (%p210) target = $region28
        $region27: #{joint_entity_relation_forward.8} parent=15 // pred_region
          %p213 = scmp.lt.s32.totalorder %s19, 1
          %s214 = scalar_select %p213, %s19, 1
          %s215 = smul.addr %s214, 3
          %s216 = scalar_lea.vmem %s2, %s215
        $region28: #{joint_entity_relation_forward.8} parent=15 // pred_fallthru
          _
      $region16: #{joint_entity_relation_forward.8} parent=5 // pred_fallthru
        _
      %p217 = scmp.le.s32.totalorder 1, %s12
      %p218 = scmp.lt.s32.totalorder %s12, 5
      %p219 = pnand %p217, %p218
      %p220 = pneg %p219
      // Predicated region
      $region29: #{joint_entity_relation_forward.8} parent=5 // pred_check
        _
      $region30: #{joint_entity_relation_forward.8} parent=5 // pred_check_branch
        %222 = sbr.rel (%p219) target = $region32
      $region31: #{joint_entity_relation_forward.8} parent=5 // pred_region
        %s223 = ssub.s32 %s12, 1
        %s224 = sand.u32 %s73, 1
        %s225 = scalar_lea.sflag [#allocation4], %s224
        %s226 = sand.u32 %s73, 1
        %s227 = smul.addr %s226, 192
        %s228 = scalar_lea.vmem [#allocation3], %s227
        // Predicated region
        $region33: #{joint_entity_relation_forward.8} parent=31 // pred_check
          %p229 = pneg %p86
        $region34: #{joint_entity_relation_forward.8} parent=31 // pred_check_branch
          %231 = sbr.rel (%p229) target = $region36
        $region35: #{joint_entity_relation_forward.8} parent=31 // pred_region
          %233 = dma.done %s225, 3072
        $region36: #{joint_entity_relation_forward.8} parent=31 // pred_fallthru
          _
        %s234 = smul.u32 %s22, 2
        %s235 = ssub.s32 1, %s234
        %s236 = smul.u32 %s21, %s235
        %s237 = sadd.s32 %s22, %s236
        %s238 = smul.u32 3, %s21
        %p239 = scmp.lt.s32.totalorder %s237, 1
        %s240 = scalar_select %p239, %s237, 1
        %p241 = scmp.lt.s32.totalorder %s238, 5
        %s242 = scalar_select %p241, %s238, 5
        %s243 = smul.addr %s240, 6
        %s244 = sadd.s32 %s242, %s243
        %s245 = smul.addr %s244, 8
        %s246 = scalar_lea.vmem %s0, %s245
        %p247 = pneg %p60
        %p248 = pneg %p57
        %s249 = sand.u32 %s73, 1
        %s250 = scalar_lea.sflag [#allocation4], %s249
        %s251 = sand.u32 %s73, 1
        %s252 = smul.addr %s251, 192
        %s253 = scalar_lea.vmem [#allocation3], %s252
        %p254 = pneg %p86
        %p255 = pneg %p83
        %p256 = scmp.lt.s32.totalorder %s21, 1
        %s257 = scalar_select %p256, %s21, 1
        %s258 = smul.addr %s257, 3
        %s259 = scalar_lea.vmem %s2, %s258
        %p260 = pneg %p112
        %p261 = pneg %p109
        %p262 = pneg %p148
        %p263 = pneg %p145
        %s264 = smul.u32 %s22, 2
        %s265 = ssub.s32 1, %s264
        %s266 = smul.u32 %s21, %s265
        %s267 = sadd.s32 %s22, %s266
        %p268 = scmp.lt.s32.totalorder %s21, 1
        %s269 = scalar_select %p268, %s21, 1
        %p270 = scmp.lt.s32.totalorder %s267, 1
        %s271 = scalar_select %p270, %s267, 1
        %s272 = smul.addr %s269, 2
        %s273 = sadd.s32 %s271, %s272
        %s274 = smul.addr %s273, 8
        %s275 = scalar_lea.vmem %s3, %s274
        %s276 = smul.u32 %s22, 2
        %s277 = ssub.s32 1, %s276
        %s278 = smul.u32 %s21, %s277
        %s279 = sadd.s32 %s22, %s278
        %s280 = smul.u32 3, %s21
        %p281 = scmp.lt.s32.totalorder %s279, 1
        %s282 = scalar_select %p281, %s279, 1
        %p283 = scmp.lt.s32.totalorder %s280, 5
        %s284 = scalar_select %p283, %s280, 5
        %s285 = smul.addr %s282, 6
        %s286 = sadd.s32 %s284, %s285
        %s287 = smul.addr %s286, 8
        %s288 = scalar_lea.vmem %s0, %s287
        %s289 = smul.u32 %s22, 2
        %s290 = ssub.s32 1, %s289
        %s291 = smul.u32 %s21, %s290
        %s292 = sadd.s32 %s22, %s291
        %s293 = smul.u32 3, %s21
        %p294 = scmp.lt.s32.totalorder %s21, 1
        %s295 = scalar_select %p294, %s21, 1
        %s296 = smul.addr %s295, 3
        %s297 = scalar_lea.vmem %s2, %s296
        %s298 = smul.u32 %s22, 2
        %s299 = ssub.s32 1, %s298
        %s300 = smul.u32 %s21, %s299
        %s301 = sadd.s32 %s22, %s300
        %p302 = scmp.lt.s32.totalorder %s21, 1
        %s303 = scalar_select %p302, %s21, 1
        %p304 = scmp.lt.s32.totalorder %s301, 1
        %s305 = scalar_select %p304, %s301, 1
        %s306 = smul.addr %s303, 2
        %s307 = sadd.s32 %s305, %s306
        %s308 = smul.addr %s307, 8
        %s309 = scalar_lea.vmem %s3, %s308
        %s310 = smul.u32 %s22, 2
        %s311 = ssub.s32 1, %s310
        %s312 = smul.u32 %s21, %s311
        %s313 = sadd.s32 %s22, %s312
        %p314 = scmp.eq.s32.totalorder %s22, 0
        // Predicated region
        $region37: #{joint_entity_relation_forward.8} parent=31 // pred_check
          %p315 = pneg %p314
        $region38: #{joint_entity_relation_forward.8} parent=31 // pred_check_branch
          %317 = sbr.rel (%p315) target = $region40
        $region39: #{joint_entity_relation_forward.8} parent=31 // pred_region
          %318 = vst [vmem:[#allocation2] sm:$0xff] 0.0
        $region40: #{joint_entity_relation_forward.8} parent=31 // pred_fallthru
          _
        %v319 = vld [vmem:[%s288] sm:$0xff]
        %v320 = vld [vmem:[%s288 + $0x8] sm:$0xff]
        %v321 = vld [vmem:[%s288 + $0x10] sm:$0xff]
        %v322 = vld [vmem:[#allocation2] sm:$0xff]
        %v323 = vpack.c.bf16 %v322, %v322
        %v324 = vld [vmem:[%s228] sm:$0xff]
        %v325 = vld [vmem:[%s228 + $0x8] sm:$0xf]
        %v326 = vld [vmem:[%s228 + $0xc] sm:$0xff]
        %v327 = vld [vmem:[%s228 + $0x14] sm:$0xf]
        %v328 = vld [vmem:[%s228 + $0x18] sm:$0xff]
        %v329 = vld [vmem:[%s228 + $0x20] sm:$0xf]
        %v330 = vld [vmem:[%s228 + $0x24] sm:$0xff]
        %v331 = vld [vmem:[%s228 + $0x2c] sm:$0xf]
        %v332 = vld [vmem:[%s228 + $0x30] sm:$0xff]
        %v333 = vld [vmem:[%s228 + $0x38] sm:$0xf]
        %v334 = vld [vmem:[%s228 + $0x3c] sm:$0xff]
        %v335 = vld [vmem:[%s228 + $0x44] sm:$0xf]
        %v336 = vld [vmem:[%s228 + $0x48] sm:$0xff]
        %v337 = vld [vmem:[%s228 + $0x50] sm:$0xf]
        %v338 = vld [vmem:[%s228 + $0x54] sm:$0xff]
        %v339 = vld [vmem:[%s228 + $0x5c] sm:$0xf]
        %v340 = vld [vmem:[%s228 + $0x60] sm:$0xff]
        %v341 = vld [vmem:[%s228 + $0x68] sm:$0xf]
        %v342 = vld [vmem:[%s228 + $0x6c] sm:$0xff]
        %v343 = vld [vmem:[%s228 + $0x74] sm:$0xf]
        %v344 = vld [vmem:[%s228 + $0x78] sm:$0xff]
        %v345 = vld [vmem:[%s228 + $0x80] sm:$0xf]
        %v346 = vld [vmem:[%s228 + $0x84] sm:$0xff]
        %v347 = vld [vmem:[%s228 + $0x8c] sm:$0xf]
        %v348 = vld [vmem:[%s228 + $0x90] sm:$0xff]
        %v349 = vld [vmem:[%s228 + $0x98] sm:$0xf]
        %v350 = vld [vmem:[%s228 + $0x9c] sm:$0xff]
        %v351 = vld [vmem:[%s228 + $0xa4] sm:$0xf]
        %v352 = vld [vmem:[%s228 + $0xa8] sm:$0xff]
        %v353 = vld [vmem:[%s228 + $0xb0] sm:$0xf]
        %v354 = vld [vmem:[%s228 + $0xb4] sm:$0xff]
        %v355 = vld [vmem:[%s228 + $0xbc] sm:$0xf]
        %v356 = vld [vmem:[%s297] sm:$0x7]
        %v358 = vperm.slane %v356, 0
        %v359 = vperm.slane %v356, 1
        %v360 = vperm.slane %v356, 2
        %v396 = vunpack.c.l.b16 %v324
        %v397 = vunpack.c.h.b16 %v324
        %v398 = vunpack.c.l.b16 %v325
        %v399 = vunpack.c.l.b16 %v326
        %v400 = vunpack.c.h.b16 %v326
        %v401 = vunpack.c.l.b16 %v327
        %v402 = vunpack.c.l.b16 %v328
        %v403 = vunpack.c.h.b16 %v328
        %v404 = vunpack.c.l.b16 %v329
        %v405 = vunpack.c.l.b16 %v330
        %v406 = vunpack.c.h.b16 %v330
        %v407 = vunpack.c.l.b16 %v331
        %v408 = vunpack.c.l.b16 %v332
        %v409 = vunpack.c.h.b16 %v332
        %v410 = vunpack.c.l.b16 %v333
        %v411 = vunpack.c.l.b16 %v334
        %v412 = vunpack.c.h.b16 %v334
        %v413 = vunpack.c.l.b16 %v335
        %v414 = vunpack.c.l.b16 %v336
        %v415 = vunpack.c.h.b16 %v336
        %v416 = vunpack.c.l.b16 %v337
        %v417 = vunpack.c.l.b16 %v338
        %v418 = vunpack.c.h.b16 %v338
        %v419 = vunpack.c.l.b16 %v339
        %v420 = vunpack.c.l.b16 %v340
        %v421 = vunpack.c.h.b16 %v340
        %v422 = vunpack.c.l.b16 %v341
        %v423 = vunpack.c.l.b16 %v342
        %v424 = vunpack.c.h.b16 %v342
        %v425 = vunpack.c.l.b16 %v343
        %v426 = vunpack.c.l.b16 %v344
        %v427 = vunpack.c.h.b16 %v344
        %v428 = vunpack.c.l.b16 %v345
        %v429 = vunpack.c.l.b16 %v346
        %v430 = vunpack.c.h.b16 %v346
        %v431 = vunpack.c.l.b16 %v347
        %v432 = vunpack.c.l.b16 %v348
        %v433 = vunpack.c.h.b16 %v348
        %v434 = vunpack.c.l.b16 %v349
        %v435 = vunpack.c.l.b16 %v350
        %v436 = vunpack.c.h.b16 %v350
        %v437 = vunpack.c.l.b16 %v351
        %v438 = vunpack.c.l.b16 %v352
        %v439 = vunpack.c.h.b16 %v352
        %v440 = vunpack.c.l.b16 %v353
        %v441 = vunpack.c.l.b16 %v354
        %v442 = vunpack.c.h.b16 %v354
        %v443 = vunpack.c.l.b16 %v355
        %v444 = vpack.c.b16 %v399, %v396
        %v445 = vpack.c.b16 %v400, %v397
        %v446 = vpack.c.b16 %v401, %v398
        %v447 = vpack.c.b16 %v405, %v402
        %v448 = vpack.c.b16 %v406, %v403
        %v449 = vpack.c.b16 %v407, %v404
        %v450 = vpack.c.b16 %v411, %v408
        %v451 = vpack.c.b16 %v412, %v409
        %v452 = vpack.c.b16 %v413, %v410
        %v453 = vpack.c.b16 %v417, %v414
        %v454 = vpack.c.b16 %v418, %v415
        %v455 = vpack.c.b16 %v419, %v416
        %v456 = vpack.c.b16 %v423, %v420
        %v457 = vpack.c.b16 %v424, %v421
        %v458 = vpack.c.b16 %v425, %v422
        %v459 = vpack.c.b16 %v429, %v426
        %v460 = vpack.c.b16 %v430, %v427
        %v461 = vpack.c.b16 %v431, %v428
        %v462 = vpack.c.b16 %v435, %v432
        %v463 = vpack.c.b16 %v436, %v433
        %v464 = vpack.c.b16 %v437, %v434
        %v465 = vpack.c.b16 %v441, %v438
        %v466 = vpack.c.b16 %v442, %v439
        %v467 = vpack.c.b16 %v443, %v440
        %492 = vmatpush.bf16.msra.mxu0 %v465
        %493 = vmatpush.bf16.msra.mxu0 %v462
        %494 = vmatpush.bf16.msra.mxu0 %v459
        %495 = vmatpush.bf16.msra.mxu0 %v456
        %496 = vmatpush.bf16.msra.mxu0 %v453
        %497 = vmatpush.bf16.msra.mxu0 %v450
        %498 = vmatpush.bf16.msra.mxu0 %v447
        %499 = vmatpush.bf16.msra.mxu0 %v444
        %500 = vmatmul.bf16.gmra.mxu0 %v323
        %v501 = vpop.f32.mrf.mxu0
        %v502 = vadd.f32 %v358, %v501
        %v503 = vpop.f32.mrf.mxu0
        %504 = vdwg.mxu0
        %505 = vmatpush.bf16.msra.mxu0 %v466
        %506 = vmatpush.bf16.msra.mxu0 %v463
        %507 = vmatpush.bf16.msra.mxu0 %v460
        %508 = vmatpush.bf16.msra.mxu0 %v457
        %509 = vmatpush.bf16.msra.mxu0 %v454
        %510 = vmatpush.bf16.msra.mxu0 %v451
        %511 = vmatpush.bf16.msra.mxu0 %v448
        %512 = vmatpush.bf16.msra.mxu0 %v445
        %513 = vmatmul.bf16.gmra.mxu0 %v323
        %v514 = vpop.f32.mrf.mxu0
        %v515 = vadd.f32 %v359, %v514
        %v516 = vpop.f32.mrf.mxu0
        %517 = vdwg.mxu0
        %518 = vmatpush.bf16.msra.mxu0 %v467
        %519 = vmatpush.bf16.msra.mxu0 %v464
        %520 = vmatpush.bf16.msra.mxu0 %v461
        %521 = vmatpush.bf16.msra.mxu0 %v458
        %522 = vmatpush.bf16.msra.mxu0 %v455
        %523 = vmatpush.bf16.msra.mxu0 %v452
        %524 = vmatpush.bf16.msra.mxu0 %v449
        %525 = vmatpush.bf16.msra.mxu0 %v446
        %526 = vmatmul.bf16.gmra.mxu0 %v323
        %v527 = vpop.f32.mrf.mxu0
        %v528 = vadd.f32 %v360, %v527
        %v529 = vpop.f32.mrf.mxu0
        %530 = vdwg.mxu0
        %v531 = vadd.f32 %v319, %v502
        %v532 = vxor.u32 %v531, 2147483648
        %v533 = vmul.f32 %v532, 1.442695
        %v534 = vpow.pop %v533
        %v535 = vadd.f32 %v534, 1.0
        %v536 = vrcp.pop %v535
        %v537 = vmul.f32 %v535, %v536
        %v538 = vsub.f32 1.0, %v537
        %v539 = vmul.f32 %v536, %v538
        %v540 = vadd.f32 %v536, %v539
        %vm541 = vweird.f32 %v535
        %vm542 = vweird.f32 %v536
        %vm543 = vmor %vm541, %vm542
        %v544 = vsel %vm543, %v536, %v540
        %v545 = vand.u32 2147483647, %v535
        %vm546 = vcmp.eq.f32.partialorder %v545, 8.507059e+37
        %v547 = vand.u32 %v535, 2147483648
        %v548 = vor.u32 1.1754944e-38, %v547
        %v549 = vsel %vm546, %v548, %v544
        %v550 = vmul.f32 1.0, %v549
        %v551 = vadd.f32 %v320, %v515
        %v552 = vxor.u32 %v551, 2147483648
        %v553 = vmul.f32 %v552, 1.442695
        %v554 = vpow.pop %v553
        %v555 = vadd.f32 %v554, 1.0
        %v556 = vrcp.pop %v555
        %v557 = vmul.f32 %v555, %v556
        %v558 = vsub.f32 1.0, %v557
        %v559 = vmul.f32 %v556, %v558
        %v560 = vadd.f32 %v556, %v559
        %vm561 = vweird.f32 %v555
        %vm562 = vweird.f32 %v556
        %vm563 = vmor %vm561, %vm562
        %v564 = vsel %vm563, %v556, %v560
        %v565 = vand.u32 2147483647, %v555
        %vm566 = vcmp.eq.f32.partialorder %v565, 8.507059e+37
        %v567 = vand.u32 %v555, 2147483648
        %v568 = vor.u32 1.1754944e-38, %v567
        %v569 = vsel %vm566, %v568, %v564
        %v570 = vmul.f32 1.0, %v569
        %v571 = vmul.f32 %v550, %v528
        %v572 = vadd.f32 %v321, %v571
        %v573 = vtanh.pop %v572
        %v574 = vsub.f32 1.0, %v570
        %v575 = vmul.f32 %v574, %v573
        %v576 = vmul.f32 %v570, %v322
        %v577 = vadd.f32 %v575, %v576
        %578 = vst [vmem:[#allocation2] sm:$0xff] %v577
        %579 = vst [vmem:[%s309] sm:$0xff] %v577
        %s580 = smul.u32 %s22, 2
        %s581 = ssub.s32 1, %s580
        %s582 = smul.u32 %s21, %s581
        %s583 = sadd.s32 %s22, %s582
        %p584 = scmp.lt.s32.totalorder %s21, 1
        %s585 = scalar_select %p584, %s21, 1
        %p586 = scmp.lt.s32.totalorder %s583, 1
        %s587 = scalar_select %p586, %s583, 1
        %s588 = smul.addr %s585, 2
        %s589 = sadd.s32 %s587, %s588
        %s590 = smul.addr %s589, 8
        %s591 = scalar_lea.vmem %s3, %s590
        // Predicated region
        $region41: #{joint_entity_relation_forward.8} parent=31 // pred_check
          %p592 = pneg %p145
        $region42: #{joint_entity_relation_forward.8} parent=31 // pred_check_branch
          %594 = sbr.rel (%p592) target = $region44
        $region43: #{joint_entity_relation_forward.8} parent=31 // pred_region
          %s595 = smul.u32 %s22, 2
          %s596 = ssub.s32 1, %s595
          %s597 = smul.u32 %s21, %s596
          %s598 = sadd.s32 %s22, %s597
        $region44: #{joint_entity_relation_forward.8} parent=31 // pred_fallthru
          _
      $region32: #{joint_entity_relation_forward.8} parent=5 // pred_fallthru
        _
      %p599 = scmp.le.s32.totalorder 2, %s12
      // Predicated region
      $region45: #{joint_entity_relation_forward.8} parent=5 // pred_check
        %p600 = pneg %p599
      $region46: #{joint_entity_relation_forward.8} parent=5 // pred_check_branch
        %602 = sbr.rel (%p600) target = $region48
      $region47: #{joint_entity_relation_forward.8} parent=5 // pred_region
        %s603 = ssub.s32 %s12, 2
        // Predicated region
        $region49: #{joint_entity_relation_forward.8} parent=47 // pred_check
          %p604 = pneg %p151
        $region50: #{joint_entity_relation_forward.8} parent=47 // pred_check_branch
          %606 = sbr.rel (%p604) target = $region52
        $region51: #{joint_entity_relation_forward.8} parent=47 // pred_region
          %s607 = smul.u32 %s24, 2
          %s608 = ssub.s32 1, %s607
          %s609 = smul.u32 %s23, %s608
          %s610 = sadd.s32 %s24, %s609
          %p611 = scmp.lt.s32.totalorder %s23, 1
          %s612 = scalar_select %p611, %s23, 1
          %p613 = scmp.lt.s32.totalorder %s610, 1
          %s614 = scalar_select %p613, %s610, 1
          %s615 = smul.addr %s612, 2
          %s616 = sadd.s32 %s614, %s615
          %s617 = smul.addr %s616, 8
          %s618 = scalar_lea.vmem %s3, %s617
        $region52: #{joint_entity_relation_forward.8} parent=47 // pred_fallthru
          _
      $region48: #{joint_entity_relation_forward.8} parent=5 // pred_fallthru
        _
    $region6: #{joint_entity_relation_forward.8} parent=1 // loop_footer
      %s16 = sadd.s32 1, %s12
    $region7: #{joint_entity_relation_forward.8} parent=1 // loop_footer_branch
      %11 = sbr.rel target = $region3
    $region8: #{joint_entity_relation_forward.8} parent=1 // loop_exit
      _
    %619 = vsyncpa [#allocation4], 1
    %s620 = scalar_lea.sflag [#allocation4], 1
    %621 = vsyncpa %s620, 1

// kernel: joint_entity_relation_forward.7
$region0: #{joint_entity_relation_forward.7}
  #allocation0 [shape = 'u32[]', space=smem, size = 0x4, offset = 0x4, fixed_abs, tag = 'smem constant byte address 0x4 - core index']
  #allocation1 [shape = 'u32[72,128]{1,0:T(1,128)}', space=vmem, size = 0x9000, scoped, tag = 'internal scratch']
  %s0 = inlined_call_operand.vmem [shape: f32[2,16,128], index: 0, kind: input, shape index: {}]
  %s1 = inlined_call_operand.hbm [shape: bf16[128,768], index: 1, kind: input, shape index: {}]
  %s2 = inlined_call_operand.hbm [shape: bf16[128,768], index: 2, kind: input, shape index: {}]
  %s3 = inlined_call_operand.hbm [shape: f32[1,768], index: 3, kind: input, shape index: {}]
  %s4 = inlined_call_operand.vmem [shape: f32[16,768], index: 4, kind: output, shape index: {}]
  %s5 = sld [smem:[#allocation0]]
  $region38: #{joint_entity_relation_forward.7} parent=0
    _
  %s7 = ssub.s32 1, %s5
  %s8 = scalar_select 0, %s7, %s5
  $region1: #{joint_entity_relation_forward.7} parent=0
    #allocation2 [shape = 'u8[196608]{0}', space=vmem, size = 0x30000, scoped, tag = 'input window, operand 1, single buffered']
    #allocation3 [shape = 's32[1]{0}', space=sflag, size = 0x4, scoped, tag = 'scoped memory for joint_entity_relation_forward.7']
    #allocation4 [shape = 'u8[196608]{0}', space=vmem, size = 0x30000, scoped, tag = 'input window, operand 2, single buffered']
    #allocation5 [shape = 's32[1]{0}', space=sflag, size = 0x4, scoped, tag = 'scoped memory for joint_entity_relation_forward.7']
    #allocation6 [shape = 'u8[3072]{0}', space=vmem, size = 0xc00, scoped, tag = 'input window, operand 3, single buffered']
    %9 = vsyncpa [#allocation3], 0
    %10 = vsyncpa [#allocation5], 0
    // Predicated region
    $region2: #{joint_entity_relation_forward.7} parent=1 // pred_check
      _
    $region3: #{joint_entity_relation_forward.7} parent=1 // pred_check_branch
      %12 = sbr.rel (0) target = $region5
    $region4: #{joint_entity_relation_forward.7} parent=1 // pred_region
      _
    $region5: #{joint_entity_relation_forward.7} parent=1 // pred_fallthru
      _
    // Predicated region
    $region6: #{joint_entity_relation_forward.7} parent=1 // pred_check
      _
    $region7: #{joint_entity_relation_forward.7} parent=1 // pred_check_branch
      %14 = sbr.rel (0) target = $region9
    $region8: #{joint_entity_relation_forward.7} parent=1 // pred_region
      %16 = vsyncadd [#allocation3], 0
      %s17 = sshll.u32 %s1, 4
      %s18 = int_to_ptr.hbm [resolvable:$true] %s17
      %s19 = sshll.u32 [#allocation2], 4
      %s20 = int_to_ptr.vmem [resolvable:$true] %s19
      %25 = dma.hbm_to_vmem [thread:$0]  %s18, 6144, %s20, [#allocation3], 384, 384, 24
    $region9: #{joint_entity_relation_forward.7} parent=1 // pred_fallthru
      _
    // Predicated region
    $region10: #{joint_entity_relation_forward.7} parent=1 // pred_check
      _
    $region11: #{joint_entity_relation_forward.7} parent=1 // pred_check_branch
      %27 = sbr.rel (0) target = $region13
    $region12: #{joint_entity_relation_forward.7} parent=1 // pred_region
      %29 = vsyncadd [#allocation5], 0
      %s30 = sshll.u32 %s2, 4
      %s31 = int_to_ptr.hbm [resolvable:$true] %s30
      %s32 = sshll.u32 [#allocation4], 4
      %s33 = int_to_ptr.vmem [resolvable:$true] %s32
      %38 = dma.hbm_to_vmem [thread:$0]  %s31, 6144, %s33, [#allocation5], 384, 384, 24
    $region13: #{joint_entity_relation_forward.7} parent=1 // pred_fallthru
      _
    // Predicated region
    $region14: #{joint_entity_relation_forward.7} parent=1 // pred_check
      _
    $region15: #{joint_entity_relation_forward.7} parent=1 // pred_check_branch
      %40 = sbr.rel (0) target = $region17
    $region16: #{joint_entity_relation_forward.7} parent=1 // pred_region
      %42 = vsyncadd [#allocation5], 0
      %s44 = sshll.u32 %s3, 4
      %s45 = int_to_ptr.hbm [resolvable:$true] %s44
      %s46 = sshll.u32 [#allocation6], 4
      %s47 = int_to_ptr.vmem [resolvable:$true] %s46
      %49 = dma.hbm_to_vmem [thread:$0]  %s45, 96, %s47, [#allocation5]
    $region17: #{joint_entity_relation_forward.7} parent=1 // pred_fallthru
      _
    // Predicated region
    $region18: #{joint_entity_relation_forward.7} parent=1 // pred_check
      _
    $region19: #{joint_entity_relation_forward.7} parent=1 // pred_check_branch
      %51 = sbr.rel (0) target = $region21
    $region20: #{joint_entity_relation_forward.7} parent=1 // pred_region
      %53 = dma.done [#allocation3], 6144
    $region21: #{joint_entity_relation_forward.7} parent=1 // pred_fallthru
      _
    // Predicated region
    $region22: #{joint_entity_relation_forward.7} parent=1 // pred_check
      _
    $region23: #{joint_entity_relation_forward.7} parent=1 // pred_check_branch
      %55 = sbr.rel (0) target = $region25
    $region24: #{joint_entity_relation_forward.7} parent=1 // pred_region
      %57 = dma.done [#allocation5], 6144
    $region25: #{joint_entity_relation_forward.7} parent=1 // pred_fallthru
      _
    // Predicated region
    $region26: #{joint_entity_relation_forward.7} parent=1 // pred_check
      _
    $region27: #{joint_entity_relation_forward.7} parent=1 // pred_check_branch
      %59 = sbr.rel (0) target = $region29
    $region28: #{joint_entity_relation_forward.7} parent=1 // pred_region
      %61 = dma.done [#allocation5], 96
    $region29: #{joint_entity_relation_forward.7} parent=1 // pred_fallthru
      _
    %v62 = vld [vmem:[%s0] sm:$0xff]
    %v63 = vld [vmem:[%s0 + $0x8] sm:$0xff]
    %v64 = vpack.c.bf16 %v63, %v62
    %v65 = vld [vmem:[#allocation2] sm:$0xff]
    %v66 = vld [vmem:[#allocation2 + $0x8] sm:$0xff]
    %v67 = vld [vmem:[#allocation2 + $0x10] sm:$0xff]
    %v68 = vld [vmem:[#allocation2 + $0x18] sm:$0xff]
    %v69 = vld [vmem:[#allocation2 + $0x20] sm:$0xff]
    %v70 = vld [vmem:[#allocation2 + $0x28] sm:$0xff]
    %v71 = vld [vmem:[#allocation2 + $0x30] sm:$0xff]
    %v72 = vld [vmem:[#allocation2 + $0x38] sm:$0xff]
    %v73 = vld [vmem:[#allocation2 + $0x40] sm:$0xff]
    %v74 = vld [vmem:[#allocation2 + $0x48] sm:$0xff]
    %v75 = vld [vmem:[#allocation2 + $0x50] sm:$0xff]
    %v76 = vld [vmem:[#allocation2 + $0x58] sm:$0xff]
    %v77 = vld [vmem:[#allocation2 + $0x60] sm:$0xff]
    %v78 = vld [vmem:[#allocation2 + $0x68] sm:$0xff]
    %v79 = vld [vmem:[#allocation2 + $0x70] sm:$0xff]
    %v80 = vld [vmem:[#allocation2 + $0x78] sm:$0xff]
    %v81 = vld [vmem:[#allocation2 + $0x80] sm:$0xff]
    %v82 = vld [vmem:[#allocation2 + $0x88] sm:$0xff]
    %v83 = vld [vmem:[#allocation2 + $0x90] sm:$0xff]
    %v84 = vld [vmem:[#allocation2 + $0x98] sm:$0xff]
    %v85 = vld [vmem:[#allocation2 + $0xa0] sm:$0xff]
    %v86 = vld [vmem:[#allocation2 + $0xa8] sm:$0xff]
    %v87 = vld [vmem:[#allocation2 + $0xb0] sm:$0xff]
    %v88 = vld [vmem:[#allocation2 + $0xb8] sm:$0xff]
    %v89 = vld [vmem:[#allocation2 + $0xc0] sm:$0xff]
    %v90 = vld [vmem:[#allocation2 + $0xc8] sm:$0xff]
    %v91 = vld [vmem:[#allocation2 + $0xd0] sm:$0xff]
    %v92 = vld [vmem:[#allocation2 + $0xd8] sm:$0xff]
    %v93 = vld [vmem:[#allocation2 + $0xe0] sm:$0xff]
    %v94 = vld [vmem:[#allocation2 + $0xe8] sm:$0xff]
    %v95 = vld [vmem:[#allocation2 + $0xf0] sm:$0xff]
    %v96 = vld [vmem:[#allocation2 + $0xf8] sm:$0xff]
    %v97 = vld [vmem:[#allocation2 + $0x100] sm:$0xff]
    %v98 = vld [vmem:[#allocation2 + $0x108] sm:$0xff]
    %v99 = vld [vmem:[#allocation2 + $0x110] sm:$0xff]
    %v100 = vld [vmem:[#allocation2 + $0x118] sm:$0xff]
    %v101 = vld [vmem:[#allocation2 + $0x120] sm:$0xff]
    %v102 = vld [vmem:[#allocation2 + $0x128] sm:$0xff]
    %v103 = vld [vmem:[#allocation2 + $0x130] sm:$0xff]
    %v104 = vld [vmem:[#allocation2 + $0x138] sm:$0xff]
    %v105 = vld [vmem:[#allocation2 + $0x140] sm:$0xff]
    %v106 = vld [vmem:[#allocation2 + $0x148] sm:$0xff]
    %v107 = vld [vmem:[#allocation2 + $0x150] sm:$0xff]
    %v108 = vld [vmem:[#allocation2 + $0x158] sm:$0xff]
    %v109 = vld [vmem:[#allocation2 + $0x160] sm:$0xff]
    %v110 = vld [vmem:[#allocation2 + $0x168] sm:$0xff]
    %v111 = vld [vmem:[#allocation2 + $0x170] sm:$0xff]
    %v112 = vld [vmem:[#allocation2 + $0x178] sm:$0xff]
    %s113 = scalar_lea.vmem %s0, 16
    %v114 = vld [vmem:[%s113] sm:$0xff]
    %v115 = vld [vmem:[%s113 + $0x8] sm:$0xff]
    %v116 = vpack.c.bf16 %v115, %v114
    %v117 = vld [vmem:[#allocation4] sm:$0xff]
    %v118 = vld [vmem:[#allocation4 + $0x8] sm:$0xff]
    %v119 = vld [vmem:[#allocation4 + $0x10] sm:$0xff]
    %v120 = vld [vmem:[#allocation4 + $0x18] sm:$0xff]
    %v121 = vld [vmem:[#allocation4 + $0x20] sm:$0xff]
    %v122 = vld [vmem:[#allocation4 + $0x28] sm:$0xff]
    %v123 = vld [vmem:[#allocation4 + $0x30] sm:$0xff]
    %v124 = vld [vmem:[#allocation4 + $0x38] sm:$0xff]
    %v125 = vld [vmem:[#allocation4 + $0x40] sm:$0xff]
    %v126 = vld [vmem:[#allocation4 + $0x48] sm:$0xff]
    %v127 = vld [vmem:[#allocation4 + $0x50] sm:$0xff]
    %v128 = vld [vmem:[#allocation4 + $0x58] sm:$0xff]
    %v129 = vld [vmem:[#allocation4 + $0x60] sm:$0xff]
    %v130 = vld [vmem:[#allocation4 + $0x68] sm:$0xff]
    %v131 = vld [vmem:[#allocation4 + $0x70] sm:$0xff]
    %v132 = vld [vmem:[#allocation4 + $0x78] sm:$0xff]
    %v133 = vld [vmem:[#allocation4 + $0x80] sm:$0xff]
    %v134 = vld [vmem:[#allocation4 + $0x88] sm:$0xff]
    %v135 = vld [vmem:[#allocation4 + $0x90] sm:$0xff]
    %v136 = vld [vmem:[#allocation4 + $0x98] sm:$0xff]
    %v137 = vld [vmem:[#allocation4 + $0xa0] sm:$0xff]
    %v138 = vld [vmem:[#allocation4 + $0xa8] sm:$0xff]
    %v139 = vld [vmem:[#allocation4 + $0xb0] sm:$0xff]
    %v140 = vld [vmem:[#allocation4 + $0xb8] sm:$0xff]
    %v141 = vld [vmem:[#allocation4 + $0xc0] sm:$0xff]
    %v142 = vld [vmem:[#allocation4 + $0xc8] sm:$0xff]
    %v143 = vld [vmem:[#allocation4 + $0xd0] sm:$0xff]
    %v144 = vld [vmem:[#allocation4 + $0xd8] sm:$0xff]
    %v145 = vld [vmem:[#allocation4 + $0xe0] sm:$0xff]
    %v146 = vld [vmem:[#allocation4 + $0xe8] sm:$0xff]
    %v147 = vld [vmem:[#allocation4 + $0xf0] sm:$0xff]
    %v148 = vld [vmem:[#allocation4 + $0xf8] sm:$0xff]
    %v149 = vld [vmem:[#allocation4 + $0x100] sm:$0xff]
    %v150 = vld [vmem:[#allocation4 + $0x108] sm:$0xff]
    %v151 = vld [vmem:[#allocation4 + $0x110] sm:$0xff]
    %v152 = vld [vmem:[#allocation4 + $0x118] sm:$0xff]
    %v153 = vld [vmem:[#allocation4 + $0x120] sm:$0xff]
    %v154 = vld [vmem:[#allocation4 + $0x128] sm:$0xff]
    %v155 = vld [vmem:[#allocation4 + $0x130] sm:$0xff]
    %v156 = vld [vmem:[#allocation4 + $0x138] sm:$0xff]
    %v157 = vld [vmem:[#allocation4 + $0x140] sm:$0xff]
    %v158 = vld [vmem:[#allocation4 + $0x148] sm:$0xff]
    %v159 = vld [vmem:[#allocation4 + $0x150] sm:$0xff]
    %v160 = vld [vmem:[#allocation4 + $0x158] sm:$0xff]
    %v161 = vld [vmem:[#allocation4 + $0x160] sm:$0xff]
    %v162 = vld [vmem:[#allocation4 + $0x168] sm:$0xff]
    %v163 = vld [vmem:[#allocation4 + $0x170] sm:$0xff]
    %v164 = vld [vmem:[#allocation4 + $0x178] sm:$0xff]
    %v213 = vunpack.c.l.b16 %v117
    %v214 = vunpack.c.h.b16 %v117
    %v215 = vunpack.c.l.b16 %v118
    %v216 = vunpack.c.h.b16 %v118
    %v217 = vunpack.c.l.b16 %v119
    %v218 = vunpack.c.h.b16 %v119
    %v219 = vunpack.c.l.b16 %v120
    %v220 = vunpack.c.h.b16 %v120
    %v221 = vunpack.c.l.b16 %v121
    %v222 = vunpack.c.h.b16 %v121
    %v223 = vunpack.c.l.b16 %v122
    %v224 = vunpack.c.h.b16 %v122
    %v225 = vunpack.c.l.b16 %v123
    %v226 = vunpack.c.h.b16 %v123
    %v227 = vunpack.c.l.b16 %v124
    %v228 = vunpack.c.h.b16 %v124
    %v229 = vunpack.c.l.b16 %v125
    %v230 = vunpack.c.h.b16 %v125
    %v231 = vunpack.c.l.b16 %v126
    %v232 = vunpack.c.h.b16 %v126
    %v233 = vunpack.c.l.b16 %v127
    %v234 = vunpack.c.h.b16 %v127
    %v235 = vunpack.c.l.b16 %v128
    %v236 = vunpack.c.h.b16 %v128
    %v237 = vunpack.c.l.b16 %v129
    %v238 = vunpack.c.h.b16 %v129
    %v239 = vunpack.c.l.b16 %v130
    %v240 = vunpack.c.h.b16 %v130
    %v241 = vunpack.c.l.b16 %v131
    %v242 = vunpack.c.h.b16 %v131
    %v243 = vunpack.c.l.b16 %v132
    %v244 = vunpack.c.h.b16 %v132
    %v245 = vunpack.c.l.b16 %v133
    %v246 = vunpack.c.h.b16 %v133
    %v247 = vunpack.c.l.b16 %v134
    %v248 = vunpack.c.h.b16 %v134
    %v249 = vunpack.c.l.b16 %v135
    %v250 = vunpack.c.h.b16 %v135
    %v251 = vunpack.c.l.b16 %v136
    %v252 = vunpack.c.h.b16 %v136
    %v253 = vunpack.c.l.b16 %v137
    %v254 = vunpack.c.h.b16 %v137
    %v255 = vunpack.c.l.b16 %v138
    %v256 = vunpack.c.h.b16 %v138
    %v257 = vunpack.c.l.b16 %v139
    %v258 = vunpack.c.h.b16 %v139
    %v259 = vunpack.c.l.b16 %v140
    %v260 = vunpack.c.h.b16 %v140
    %v261 = vunpack.c.l.b16 %v141
    %v262 = vunpack.c.h.b16 %v141
    %v263 = vunpack.c.l.b16 %v142
    %v264 = vunpack.c.h.b16 %v142
    %v265 = vunpack.c.l.b16 %v143
    %v266 = vunpack.c.h.b16 %v143
    %v267 = vunpack.c.l.b16 %v144
    %v268 = vunpack.c.h.b16 %v144
    %v269 = vunpack.c.l.b16 %v145
    %v270 = vunpack.c.h.b16 %v145
    %v271 = vunpack.c.l.b16 %v146
    %v272 = vunpack.c.h.b16 %v146
    %v273 = vunpack.c.l.b16 %v147
    %v274 = vunpack.c.h.b16 %v147
    %v275 = vunpack.c.l.b16 %v148
    %v276 = vunpack.c.h.b16 %v148
    %v277 = vunpack.c.l.b16 %v149
    %v278 = vunpack.c.h.b16 %v149
    %v279 = vunpack.c.l.b16 %v150
    %v280 = vunpack.c.h.b16 %v150
    %v281 = vunpack.c.l.b16 %v151
    %v282 = vunpack.c.h.b16 %v151
    %v283 = vunpack.c.l.b16 %v152
    %v284 = vunpack.c.h.b16 %v152
    %v285 = vunpack.c.l.b16 %v153
    %v286 = vunpack.c.h.b16 %v153
    %v287 = vunpack.c.l.b16 %v154
    %v288 = vunpack.c.h.b16 %v154
    %v289 = vunpack.c.l.b16 %v155
    %v290 = vunpack.c.h.b16 %v155
    %v291 = vunpack.c.l.b16 %v156
    %v292 = vunpack.c.h.b16 %v156
    %v293 = vunpack.c.l.b16 %v157
    %v294 = vunpack.c.h.b16 %v157
    %v295 = vunpack.c.l.b16 %v158
    %v296 = vunpack.c.h.b16 %v158
    %v297 = vunpack.c.l.b16 %v159
    %v298 = vunpack.c.h.b16 %v159
    %v299 = vunpack.c.l.b16 %v160
    %v300 = vunpack.c.h.b16 %v160
    %v301 = vunpack.c.l.b16 %v161
    %v302 = vunpack.c.h.b16 %v161
    %v303 = vunpack.c.l.b16 %v162
    %v304 = vunpack.c.h.b16 %v162
    %v305 = vunpack.c.l.b16 %v163
    %v306 = vunpack.c.h.b16 %v163
    %v307 = vunpack.c.l.b16 %v164
    %v308 = vunpack.c.h.b16 %v164
    %v309 = vpack.c.b16 %v219, %v213
    %v310 = vpack.c.b16 %v220, %v214
    %v311 = vpack.c.b16 %v221, %v215
    %v312 = vpack.c.b16 %v222, %v216
    %v313 = vpack.c.b16 %v223, %v217
    %v314 = vpack.c.b16 %v224, %v218
    %v315 = vpack.c.b16 %v231, %v225
    %v316 = vpack.c.b16 %v232, %v226
    %v317 = vpack.c.b16 %v233, %v227
    %v318 = vpack.c.b16 %v234, %v228
    %v319 = vpack.c.b16 %v235, %v229
    %v320 = vpack.c.b16 %v236, %v230
    %v321 = vpack.c.b16 %v243, %v237
    %v322 = vpack.c.b16 %v244, %v238
    %v323 = vpack.c.b16 %v245, %v239
    %v324 = vpack.c.b16 %v246, %v240
    %v325 = vpack.c.b16 %v247, %v241
    %v326 = vpack.c.b16 %v248, %v242
    %v327 = vpack.c.b16 %v255, %v249
    %v328 = vpack.c.b16 %v256, %v250
    %v329 = vpack.c.b16 %v257, %v251
    %v330 = vpack.c.b16 %v258, %v252
    %v331 = vpack.c.b16 %v259, %v253
    %v332 = vpack.c.b16 %v260, %v254
    %v333 = vpack.c.b16 %v267, %v261
    %v334 = vpack.c.b16 %v268, %v262
    %v335 = vpack.c.b16 %v269, %v263
    %v336 = vpack.c.b16 %v270, %v264
    %v337 = vpack.c.b16 %v271, %v265
    %v338 = vpack.c.b16 %v272, %v266
    %v339 = vpack.c.b16 %v279, %v273
    %v340 = vpack.c.b16 %v280, %v274
    %v341 = vpack.c.b16 %v281, %v275
    %v342 = vpack.c.b16 %v282, %v276
    %v343 = vpack.c.b16 %v283, %v277
    %v344 = vpack.c.b16 %v284, %v278
    %v345 = vpack.c.b16 %v291, %v285
    %v346 = vpack.c.b16 %v292, %v286
    %v347 = vpack.c.b16 %v293, %v287
    %v348 = vpack.c.b16 %v294, %v288
    %v349 = vpack.c.b16 %v295, %v289
    %v350 = vpack.c.b16 %v296, %v290
    %v351 = vpack.c.b16 %v303, %v297
    %v352 = vpack.c.b16 %v304, %v298
    %v353 = vpack.c.b16 %v305, %v299
    %v354 = vpack.c.b16 %v306, %v300
    %v355 = vpack.c.b16 %v307, %v301
    %v356 = vpack.c.b16 %v308, %v302
    %405 = vmatpush.bf16.msra.mxu0 %v351
    %406 = vmatpush.bf16.msra.mxu0 %v345
    %407 = vmatpush.bf16.msra.mxu0 %v339
    %408 = vmatpush.bf16.msra.mxu0 %v333
    %409 = vmatpush.bf16.msra.mxu0 %v327
    %410 = vmatpush.bf16.msra.mxu0 %v321
    %411 = vmatpush.bf16.msra.mxu0 %v315
    %412 = vmatpush.bf16.msra.mxu0 %v309
    %413 = vmatmul.bf16.gmra.mxu0 %v116
    %v414 = vpop.f32.mrf.mxu0
    %v415 = vadd.f32 0.0, %v414
    %v416 = vpop.f32.mrf.mxu0
    %v417 = vadd.f32 0.0, %v416
    %418 = vdwg.mxu0
    %419 = vmatpush.bf16.msra.mxu0 %v352
    %420 = vmatpush.bf16.msra.mxu0 %v346
    %421 = vmatpush.bf16.msra.mxu0 %v340
    %422 = vmatpush.bf16.msra.mxu0 %v334
    %423 = vmatpush.bf16.msra.mxu0 %v328
    %424 = vmatpush.bf16.msra.mxu0 %v322
    %425 = vmatpush.bf16.msra.mxu0 %v316
    %426 = vmatpush.bf16.msra.mxu0 %v310
    %427 = vmatmul.bf16.gmra.mxu0 %v116
    %v428 = vpop.f32.mrf.mxu0
    %v429 = vadd.f32 0.0, %v428
    %v430 = vpop.f32.mrf.mxu0
    %v431 = vadd.f32 0.0, %v430
    %432 = vdwg.mxu0
    %433 = vmatpush.bf16.msra.mxu0 %v353
    %434 = vmatpush.bf16.msra.mxu0 %v347
    %435 = vmatpush.bf16.msra.mxu0 %v341
    %436 = vmatpush.bf16.msra.mxu0 %v335
    %437 = vmatpush.bf16.msra.mxu0 %v329
    %438 = vmatpush.bf16.msra.mxu0 %v323
    %439 = vmatpush.bf16.msra.mxu0 %v317
    %440 = vmatpush.bf16.msra.mxu0 %v311
    %441 = vmatmul.bf16.gmra.mxu0 %v116
    %v442 = vpop.f32.mrf.mxu0
    %v443 = vadd.f32 0.0, %v442
    %v444 = vpop.f32.mrf.mxu0
    %v445 = vadd.f32 0.0, %v444
    %446 = vdwg.mxu0
    %447 = vmatpush.bf16.msra.mxu0 %v354
    %448 = vmatpush.bf16.msra.mxu0 %v348
    %449 = vmatpush.bf16.msra.mxu0 %v342
    %450 = vmatpush.bf16.msra.mxu0 %v336
    %451 = vmatpush.bf16.msra.mxu0 %v330
    %452 = vmatpush.bf16.msra.mxu0 %v324
    %453 = vmatpush.bf16.msra.mxu0 %v318
    %454 = vmatpush.bf16.msra.mxu0 %v312
    %455 = vmatmul.bf16.gmra.mxu0 %v116
    %v456 = vpop.f32.mrf.mxu0
    %v457 = vadd.f32 0.0, %v456
    %v458 = vpop.f32.mrf.mxu0
    %v459 = vadd.f32 0.0, %v458
    %460 = vdwg.mxu0
    %461 = vmatpush.bf16.msra.mxu0 %v355
    %462 = vmatpush.bf16.msra.mxu0 %v349
    %463 = vmatpush.bf16.msra.mxu0 %v343
    %464 = vmatpush.bf16.msra.mxu0 %v337
    %465 = vmatpush.bf16.msra.mxu0 %v331
    %466 = vmatpush.bf16.msra.mxu0 %v325
    %467 = vmatpush.bf16.msra.mxu0 %v319
    %468 = vmatpush.bf16.msra.mxu0 %v313
    %469 = vmatmul.bf16.gmra.mxu0 %v116
    %v470 = vpop.f32.mrf.mxu0
    %v471 = vadd.f32 0.0, %v470
    %v472 = vpop.f32.mrf.mxu0
    %v473 = vadd.f32 0.0, %v472
    %474 = vdwg.mxu0
    %475 = vmatpush.bf16.msra.mxu0 %v356
    %476 = vmatpush.bf16.msra.mxu0 %v350
    %477 = vmatpush.bf16.msra.mxu0 %v344
    %478 = vmatpush.bf16.msra.mxu0 %v338
    %479 = vmatpush.bf16.msra.mxu0 %v332
    %480 = vmatpush.bf16.msra.mxu0 %v326
    %481 = vmatpush.bf16.msra.mxu0 %v320
    %482 = vmatpush.bf16.msra.mxu0 %v314
    %483 = vmatmul.bf16.gmra.mxu0 %v116
    %v484 = vpop.f32.mrf.mxu0
    %v485 = vadd.f32 0.0, %v484
    %v486 = vpop.f32.mrf.mxu0
    %v487 = vadd.f32 0.0, %v486
    %488 = vdwg.mxu0
    %v537 = vunpack.c.l.b16 %v65
    %v538 = vunpack.c.h.b16 %v65
    %v539 = vunpack.c.l.b16 %v66
    %v540 = vunpack.c.h.b16 %v66
    %v541 = vunpack.c.l.b16 %v67
    %v542 = vunpack.c.h.b16 %v67
    %v543 = vunpack.c.l.b16 %v68
    %v544 = vunpack.c.h.b16 %v68
    %v545 = vunpack.c.l.b16 %v69
    %v546 = vunpack.c.h.b16 %v69
    %v547 = vunpack.c.l.b16 %v70
    %v548 = vunpack.c.h.b16 %v70
    %v549 = vunpack.c.l.b16 %v71
    %v550 = vunpack.c.h.b16 %v71
    %v551 = vunpack.c.l.b16 %v72
    %v552 = vunpack.c.h.b16 %v72
    %v553 = vunpack.c.l.b16 %v73
    %v554 = vunpack.c.h.b16 %v73
    %v555 = vunpack.c.l.b16 %v74
    %v556 = vunpack.c.h.b16 %v74
    %v557 = vunpack.c.l.b16 %v75
    %v558 = vunpack.c.h.b16 %v75
    %v559 = vunpack.c.l.b16 %v76
    %v560 = vunpack.c.h.b16 %v76
    %v561 = vunpack.c.l.b16 %v77
    %v562 = vunpack.c.h.b16 %v77
    %v563 = vunpack.c.l.b16 %v78
    %v564 = vunpack.c.h.b16 %v78
    %v565 = vunpack.c.l.b16 %v79
    %v566 = vunpack.c.h.b16 %v79
    %v567 = vunpack.c.l.b16 %v80
    %v568 = vunpack.c.h.b16 %v80
    %v569 = vunpack.c.l.b16 %v81
    %v570 = vunpack.c.h.b16 %v81
    %v571 = vunpack.c.l.b16 %v82
    %v572 = vunpack.c.h.b16 %v82
    %v573 = vunpack.c.l.b16 %v83
    %v574 = vunpack.c.h.b16 %v83
    %v575 = vunpack.c.l.b16 %v84
    %v576 = vunpack.c.h.b16 %v84
    %v577 = vunpack.c.l.b16 %v85
    %v578 = vunpack.c.h.b16 %v85
    %v579 = vunpack.c.l.b16 %v86
    %v580 = vunpack.c.h.b16 %v86
    %v581 = vunpack.c.l.b16 %v87
    %v582 = vunpack.c.h.b16 %v87
    %v583 = vunpack.c.l.b16 %v88
    %v584 = vunpack.c.h.b16 %v88
    %v585 = vunpack.c.l.b16 %v89
    %v586 = vunpack.c.h.b16 %v89
    %v587 = vunpack.c.l.b16 %v90
    %v588 = vunpack.c.h.b16 %v90
    %v589 = vunpack.c.l.b16 %v91
    %v590 = vunpack.c.h.b16 %v91
    %v591 = vunpack.c.l.b16 %v92
    %v592 = vunpack.c.h.b16 %v92
    %v593 = vunpack.c.l.b16 %v93
    %v594 = vunpack.c.h.b16 %v93
    %v595 = vunpack.c.l.b16 %v94
    %v596 = vunpack.c.h.b16 %v94
    %v597 = vunpack.c.l.b16 %v95
    %v598 = vunpack.c.h.b16 %v95
    %v599 = vunpack.c.l.b16 %v96
    %v600 = vunpack.c.h.b16 %v96
    %v601 = vunpack.c.l.b16 %v97
    %v602 = vunpack.c.h.b16 %v97
    %v603 = vunpack.c.l.b16 %v98
    %v604 = vunpack.c.h.b16 %v98
    %v605 = vunpack.c.l.b16 %v99
    %v606 = vunpack.c.h.b16 %v99
    %v607 = vunpack.c.l.b16 %v100
    %v608 = vunpack.c.h.b16 %v100
    %v609 = vunpack.c.l.b16 %v101
    %v610 = vunpack.c.h.b16 %v101
    %v611 = vunpack.c.l.b16 %v102
    %v612 = vunpack.c.h.b16 %v102
    %v613 = vunpack.c.l.b16 %v103
    %v614 = vunpack.c.h.b16 %v103
    %v615 = vunpack.c.l.b16 %v104
    %v616 = vunpack.c.h.b16 %v104
    %v617 = vunpack.c.l.b16 %v105
    %v618 = vunpack.c.h.b16 %v105
    %v619 = vunpack.c.l.b16 %v106
    %v620 = vunpack.c.h.b16 %v106
    %v621 = vunpack.c.l.b16 %v107
    %v622 = vunpack.c.h.b16 %v107
    %v623 = vunpack.c.l.b16 %v108
    %v624 = vunpack.c.h.b16 %v108
    %v625 = vunpack.c.l.b16 %v109
    %v626 = vunpack.c.h.b16 %v109
    %v627 = vunpack.c.l.b16 %v110
    %v628 = vunpack.c.h.b16 %v110
    %v629 = vunpack.c.l.b16 %v111
    %v630 = vunpack.c.h.b16 %v111
    %v631 = vunpack.c.l.b16 %v112
    %v632 = vunpack.c.h.b16 %v112
    %v633 = vpack.c.b16 %v543, %v537
    %v634 = vpack.c.b16 %v544, %v538
    %v635 = vpack.c.b16 %v545, %v539
    %v636 = vpack.c.b16 %v546, %v540
    %v637 = vpack.c.b16 %v547, %v541
    %v638 = vpack.c.b16 %v548, %v542
    %v639 = vpack.c.b16 %v555, %v549
    %v640 = vpack.c.b16 %v556, %v550
    %v641 = vpack.c.b16 %v557, %v551
    %v642 = vpack.c.b16 %v558, %v552
    %v643 = vpack.c.b16 %v559, %v553
    %v644 = vpack.c.b16 %v560, %v554
    %v645 = vpack.c.b16 %v567, %v561
    %v646 = vpack.c.b16 %v568, %v562
    %v647 = vpack.c.b16 %v569, %v563
    %v648 = vpack.c.b16 %v570, %v564
    %v649 = vpack.c.b16 %v571, %v565
    %v650 = vpack.c.b16 %v572, %v566
    %v651 = vpack.c.b16 %v579, %v573
    %v652 = vpack.c.b16 %v580, %v574
    %v653 = vpack.c.b16 %v581, %v575
    %v654 = vpack.c.b16 %v582, %v576
    %v655 = vpack.c.b16 %v583, %v577
    %v656 = vpack.c.b16 %v584, %v578
    %v657 = vpack.c.b16 %v591, %v585
    %v658 = vpack.c.b16 %v592, %v586
    %v659 = vpack.c.b16 %v593, %v587
    %v660 = vpack.c.b16 %v594, %v588
    %v661 = vpack.c.b16 %v595, %v589
    %v662 = vpack.c.b16 %v596, %v590
    %v663 = vpack.c.b16 %v603, %v597
    %v664 = vpack.c.b16 %v604, %v598
    %v665 = vpack.c.b16 %v605, %v599
    %v666 = vpack.c.b16 %v606, %v600
    %v667 = vpack.c.b16 %v607, %v601
    %v668 = vpack.c.b16 %v608, %v602
    %v669 = vpack.c.b16 %v615, %v609
    %v670 = vpack.c.b16 %v616, %v610
    %v671 = vpack.c.b16 %v617, %v611
    %v672 = vpack.c.b16 %v618, %v612
    %v673 = vpack.c.b16 %v619, %v613
    %v674 = vpack.c.b16 %v620, %v614
    %v675 = vpack.c.b16 %v627, %v621
    %v676 = vpack.c.b16 %v628, %v622
    %v677 = vpack.c.b16 %v629, %v623
    %v678 = vpack.c.b16 %v630, %v624
    %v679 = vpack.c.b16 %v631, %v625
    %v680 = vpack.c.b16 %v632, %v626
    %729 = vmatpush.bf16.msra.mxu0 %v675
    %730 = vmatpush.bf16.msra.mxu0 %v669
    %731 = vmatpush.bf16.msra.mxu0 %v663
    %732 = vmatpush.bf16.msra.mxu0 %v657
    %733 = vmatpush.bf16.msra.mxu0 %v651
    %734 = vmatpush.bf16.msra.mxu0 %v645
    %735 = vmatpush.bf16.msra.mxu0 %v639
    %736 = vmatpush.bf16.msra.mxu0 %v633
    %737 = vmatmul.bf16.gmra.mxu0 %v64
    %v738 = vpop.f32.mrf.mxu0
    %v739 = vadd.f32 %v415, %v738
    %v740 = vpop.f32.mrf.mxu0
    %v741 = vadd.f32 %v417, %v740
    %742 = vdwg.mxu0
    %743 = vmatpush.bf16.msra.mxu0 %v676
    %744 = vmatpush.bf16.msra.mxu0 %v670
    %745 = vmatpush.bf16.msra.mxu0 %v664
    %746 = vmatpush.bf16.msra.mxu0 %v658
    %747 = vmatpush.bf16.msra.mxu0 %v652
    %748 = vmatpush.bf16.msra.mxu0 %v646
    %749 = vmatpush.bf16.msra.mxu0 %v640
    %750 = vmatpush.bf16.msra.mxu0 %v634
    %751 = vmatmul.bf16.gmra.mxu0 %v64
    %v752 = vpop.f32.mrf.mxu0
    %v753 = vadd.f32 %v429, %v752
    %v754 = vpop.f32.mrf.mxu0
    %v755 = vadd.f32 %v431, %v754
    %756 = vdwg.mxu0
    %757 = vmatpush.bf16.msra.mxu0 %v677
    %758 = vmatpush.bf16.msra.mxu0 %v671
    %759 = vmatpush.bf16.msra.mxu0 %v665
    %760 = vmatpush.bf16.msra.mxu0 %v659
    %761 = vmatpush.bf16.msra.mxu0 %v653
    %762 = vmatpush.bf16.msra.mxu0 %v647
    %763 = vmatpush.bf16.msra.mxu0 %v641
    %764 = vmatpush.bf16.msra.mxu0 %v635
    %765 = vmatmul.bf16.gmra.mxu0 %v64
    %v766 = vpop.f32.mrf.mxu0
    %v767 = vadd.f32 %v443, %v766
    %v768 = vpop.f32.mrf.mxu0
    %v769 = vadd.f32 %v445, %v768
    %770 = vdwg.mxu0
    %771 = vmatpush.bf16.msra.mxu0 %v678
    %772 = vmatpush.bf16.msra.mxu0 %v672
    %773 = vmatpush.bf16.msra.mxu0 %v666
    %774 = vmatpush.bf16.msra.mxu0 %v660
    %775 = vmatpush.bf16.msra.mxu0 %v654
    %776 = vmatpush.bf16.msra.mxu0 %v648
    %777 = vmatpush.bf16.msra.mxu0 %v642
    %778 = vmatpush.bf16.msra.mxu0 %v636
    %779 = vmatmul.bf16.gmra.mxu0 %v64
    %v780 = vpop.f32.mrf.mxu0
    %v781 = vadd.f32 %v457, %v780
    %v782 = vpop.f32.mrf.mxu0
    %v783 = vadd.f32 %v459, %v782
    %784 = vdwg.mxu0
    %785 = vmatpush.bf16.msra.mxu0 %v679
    %786 = vmatpush.bf16.msra.mxu0 %v673
    %787 = vmatpush.bf16.msra.mxu0 %v667
    %788 = vmatpush.bf16.msra.mxu0 %v661
    %789 = vmatpush.bf16.msra.mxu0 %v655
    %790 = vmatpush.bf16.msra.mxu0 %v649
    %791 = vmatpush.bf16.msra.mxu0 %v643
    %792 = vmatpush.bf16.msra.mxu0 %v637
    %793 = vmatmul.bf16.gmra.mxu0 %v64
    %v794 = vpop.f32.mrf.mxu0
    %v795 = vadd.f32 %v471, %v794
    %v796 = vpop.f32.mrf.mxu0
    %v797 = vadd.f32 %v473, %v796
    %798 = vdwg.mxu0
    %799 = vmatpush.bf16.msra.mxu0 %v680
    %800 = vmatpush.bf16.msra.mxu0 %v674
    %801 = vmatpush.bf16.msra.mxu0 %v668
    %802 = vmatpush.bf16.msra.mxu0 %v662
    %803 = vmatpush.bf16.msra.mxu0 %v656
    %804 = vmatpush.bf16.msra.mxu0 %v650
    %805 = vmatpush.bf16.msra.mxu0 %v644
    %806 = vmatpush.bf16.msra.mxu0 %v638
    %807 = vmatmul.bf16.gmra.mxu0 %v64
    %v808 = vpop.f32.mrf.mxu0
    %v809 = vadd.f32 %v485, %v808
    %v810 = vpop.f32.mrf.mxu0
    %v811 = vadd.f32 %v487, %v810
    %812 = vdwg.mxu0
    %v813 = vld [vmem:[#allocation6] sm:$0x3f]
    %v815 = vperm.slane %v813, 0
    %v816 = vperm.slane %v813, 1
    %v817 = vperm.slane %v813, 2
    %v818 = vperm.slane %v813, 3
    %v819 = vperm.slane %v813, 4
    %v820 = vperm.slane %v813, 5
    %v827 = vadd.f32 %v739, %v815
    %v828 = vadd.f32 %v753, %v816
    %v829 = vadd.f32 %v767, %v817
    %v830 = vadd.f32 %v781, %v818
    %v831 = vadd.f32 %v795, %v819
    %v832 = vadd.f32 %v809, %v820
    %v833 = vadd.f32 %v741, %v815
    %v834 = vadd.f32 %v755, %v816
    %v835 = vadd.f32 %v769, %v817
    %v836 = vadd.f32 %v783, %v818
    %v837 = vadd.f32 %v797, %v819
    %v838 = vadd.f32 %v811, %v820
    %839 = vst [vmem:[%s4] sm:$0xff] %v827
    %840 = vst [vmem:[%s4 + $0x8] sm:$0xff] %v828
    %841 = vst [vmem:[%s4 + $0x10] sm:$0xff] %v829
    %842 = vst [vmem:[%s4 + $0x18] sm:$0xff] %v830
    %843 = vst [vmem:[%s4 + $0x20] sm:$0xff] %v831
    %844 = vst [vmem:[%s4 + $0x28] sm:$0xff] %v832
    %845 = vst [vmem:[%s4 + $0x30] sm:$0xff] %v833
    %846 = vst [vmem:[%s4 + $0x38] sm:$0xff] %v834
    %847 = vst [vmem:[%s4 + $0x40] sm:$0xff] %v835
    %848 = vst [vmem:[%s4 + $0x48] sm:$0xff] %v836
    %849 = vst [vmem:[%s4 + $0x50] sm:$0xff] %v837
    %850 = vst [vmem:[%s4 + $0x58] sm:$0xff] %v838
    // Predicated region
    $region30: #{joint_entity_relation_forward.7} parent=1 // pred_check
      _
    $region31: #{joint_entity_relation_forward.7} parent=1 // pred_check_branch
      %852 = sbr.rel (0) target = $region33
    $region32: #{joint_entity_relation_forward.7} parent=1 // pred_region
      _
    $region33: #{joint_entity_relation_forward.7} parent=1 // pred_fallthru
      _
    // Predicated region
    $region34: #{joint_entity_relation_forward.7} parent=1 // pred_check
      _
    $region35: #{joint_entity_relation_forward.7} parent=1 // pred_check_branch
      %854 = sbr.rel (0) target = $region37
    $region36: #{joint_entity_relation_forward.7} parent=1 // pred_region
      _
    $region37: #{joint_entity_relation_forward.7} parent=1 // pred_fallthru
      _
    %855 = vsyncpa [#allocation3], 1
    %856 = vsyncpa [#allocation5], 1

// kernel: joint_entity_relation_forward.5
$region0: #{joint_entity_relation_forward.5}
  #allocation0 [shape = 'u32[]', space=smem, size = 0x4, offset = 0x4, fixed_abs, tag = 'smem constant byte address 0x4 - core index']
  #allocation1 [shape = 'u32[72,128]{1,0:T(1,128)}', space=vmem, size = 0x9000, scoped, tag = 'internal scratch']
  %s0 = inlined_call_operand.hbm [shape: f32[16,512], index: 0, kind: input, shape index: {}]
  %s1 = inlined_call_operand.hbm [shape: bf16[512,768], index: 1, kind: input, shape index: {}]
  %s2 = inlined_call_operand.vmem [shape: f32[1,768], index: 2, kind: input, shape index: {}]
  %s3 = inlined_call_operand.vmem [shape: f32[16,768], index: 3, kind: output, shape index: {}]
  %s4 = sld [smem:[#allocation0]]
  $region30: #{joint_entity_relation_forward.5} parent=0
    _
  %s6 = ssub.s32 1, %s4
  %s7 = scalar_select 0, %s6, %s4
  $region1: #{joint_entity_relation_forward.5} parent=0
    #allocation2 [shape = 'u8[32768]{0}', space=vmem, size = 0x8000, scoped, tag = 'input window, operand 0, single buffered']
    #allocation3 [shape = 's32[1]{0}', space=sflag, size = 0x4, scoped, tag = 'scoped memory for joint_entity_relation_forward.5']
    #allocation4 [shape = 'u8[786432]{0}', space=vmem, size = 0xc0000, scoped, tag = 'input window, operand 1, single buffered']
    #allocation5 [shape = 's32[1]{0}', space=sflag, size = 0x4, scoped, tag = 'scoped memory for joint_entity_relation_forward.5']
    %8 = vsyncpa [#allocation3], 0
    %9 = vsyncpa [#allocation5], 0
    // Predicated region
    $region2: #{joint_entity_relation_forward.5} parent=1 // pred_check
      _
    $region3: #{joint_entity_relation_forward.5} parent=1 // pred_check_branch
      %11 = sbr.rel (0) target = $region5
    $region4: #{joint_entity_relation_forward.5} parent=1 // pred_region
      %13 = vsyncadd [#allocation3], 0
      %s14 = sshll.u32 %s0, 4
      %s15 = int_to_ptr.hbm [resolvable:$true] %s14
      %s16 = sshll.u32 [#allocation2], 4
      %s17 = int_to_ptr.vmem [resolvable:$true] %s16
      %22 = dma.hbm_to_vmem [thread:$0]  %s15, 1024, %s17, [#allocation3], 512, 512, 32
    $region5: #{joint_entity_relation_forward.5} parent=1 // pred_fallthru
      _
    // Predicated region
    $region6: #{joint_entity_relation_forward.5} parent=1 // pred_check
      _
    $region7: #{joint_entity_relation_forward.5} parent=1 // pred_check_branch
      %24 = sbr.rel (0) target = $region9
    $region8: #{joint_entity_relation_forward.5} parent=1 // pred_region
      %26 = vsyncadd [#allocation5], 0
      %s27 = sshll.u32 %s1, 4
      %s28 = int_to_ptr.hbm [resolvable:$true] %s27
      %s29 = sshll.u32 [#allocation4], 4
      %s30 = int_to_ptr.vmem [resolvable:$true] %s29
      %35 = dma.hbm_to_vmem [thread:$0]  %s28, 24576, %s30, [#allocation5], 384, 384, 24
    $region9: #{joint_entity_relation_forward.5} parent=1 // pred_fallthru
      _
    // Predicated region
    $region10: #{joint_entity_relation_forward.5} parent=1 // pred_check
      _
    $region11: #{joint_entity_relation_forward.5} parent=1 // pred_check_branch
      %37 = sbr.rel (0) target = $region13
    $region12: #{joint_entity_relation_forward.5} parent=1 // pred_region
      _
    $region13: #{joint_entity_relation_forward.5} parent=1 // pred_fallthru
      _
    // Predicated region
    $region14: #{joint_entity_relation_forward.5} parent=1 // pred_check
      _
    $region15: #{joint_entity_relation_forward.5} parent=1 // pred_check_branch
      %39 = sbr.rel (0) target = $region17
    $region16: #{joint_entity_relation_forward.5} parent=1 // pred_region
      %41 = dma.done [#allocation3], 1024
    $region17: #{joint_entity_relation_forward.5} parent=1 // pred_fallthru
      _
    // Predicated region
    $region18: #{joint_entity_relation_forward.5} parent=1 // pred_check
      _
    $region19: #{joint_entity_relation_forward.5} parent=1 // pred_check_branch
      %43 = sbr.rel (0) target = $region21
    $region20: #{joint_entity_relation_forward.5} parent=1 // pred_region
      %45 = dma.done [#allocation5], 24576
    $region21: #{joint_entity_relation_forward.5} parent=1 // pred_fallthru
      _
    %v46 = vld [vmem:[#allocation2] sm:$0xff]
    %v47 = vld [vmem:[#allocation2 + $0x8] sm:$0xff]
    %v48 = vld [vmem:[#allocation2 + $0x10] sm:$0xff]
    %v49 = vld [vmem:[#allocation2 + $0x18] sm:$0xff]
    %v50 = vld [vmem:[#allocation2 + $0x20] sm:$0xff]
    %v51 = vld [vmem:[#allocation2 + $0x28] sm:$0xff]
    %v52 = vld [vmem:[#allocation2 + $0x30] sm:$0xff]
    %v53 = vld [vmem:[#allocation2 + $0x38] sm:$0xff]
    %v54 = vpack.c.bf16 %v50, %v46
    %v55 = vpack.c.bf16 %v51, %v47
    %v56 = vpack.c.bf16 %v52, %v48
    %v57 = vpack.c.bf16 %v53, %v49
    %v58 = vld [vmem:[#allocation4] sm:$0xff]
    %v59 = vld [vmem:[#allocation4 + $0x8] sm:$0xff]
    %v60 = vld [vmem:[#allocation4 + $0x10] sm:$0xff]
    %v61 = vld [vmem:[#allocation4 + $0x18] sm:$0xff]
    %v62 = vld [vmem:[#allocation4 + $0x20] sm:$0xff]
    %v63 = vld [vmem:[#allocation4 + $0x28] sm:$0xff]
    %v64 = vld [vmem:[#allocation4 + $0x30] sm:$0xff]
    %v65 = vld [vmem:[#allocation4 + $0x38] sm:$0xff]
    %v66 = vld [vmem:[#allocation4 + $0x40] sm:$0xff]
    %v67 = vld [vmem:[#allocation4 + $0x48] sm:$0xff]
    %v68 = vld [vmem:[#allocation4 + $0x50] sm:$0xff]
    %v69 = vld [vmem:[#allocation4 + $0x58] sm:$0xff]
    %v70 = vld [vmem:[#allocation4 + $0x60] sm:$0xff]
    %v71 = vld [vmem:[#allocation4 + $0x68] sm:$0xff]
    %v72 = vld [vmem:[#allocation4 + $0x70] sm:$0xff]
    %v73 = vld [vmem:[#allocation4 + $0x78] sm:$0xff]
    %v74 = vld [vmem:[#allocation4 + $0x80] sm:$0xff]
    %v75 = vld [vmem:[#allocation4 + $0x88] sm:$0xff]
    %v76 = vld [vmem:[#allocation4 + $0x90] sm:$0xff]
    %v77 = vld [vmem:[#allocation4 + $0x98] sm:$0xff]
    %v78 = vld [vmem:[#allocation4 + $0xa0] sm:$0xff]
    %v79 = vld [vmem:[#allocation4 + $0xa8] sm:$0xff]
    %v80 = vld [vmem:[#allocation4 + $0xb0] sm:$0xff]
    %v81 = vld [vmem:[#allocation4 + $0xb8] sm:$0xff]
    %v82 = vld [vmem:[#allocation4 + $0xc0] sm:$0xff]
    %v83 = vld [vmem:[#allocation4 + $0xc8] sm:$0xff]
    %v84 = vld [vmem:[#allocation4 + $0xd0] sm:$0xff]
    %v85 = vld [vmem:[#allocation4 + $0xd8] sm:$0xff]
    %v86 = vld [vmem:[#allocation4 + $0xe0] sm:$0xff]
    %v87 = vld [vmem:[#allocation4 + $0xe8] sm:$0xff]
    %v88 = vld [vmem:[#allocation4 + $0xf0] sm:$0xff]
    %v89 = vld [vmem:[#allocation4 + $0xf8] sm:$0xff]
    %v90 = vld [vmem:[#allocation4 + $0x100] sm:$0xff]
    %v91 = vld [vmem:[#allocation4 + $0x108] sm:$0xff]
    %v92 = vld [vmem:[#allocation4 + $0x110] sm:$0xff]
    %v93 = vld [vmem:[#allocation4 + $0x118] sm:$0xff]
    %v94 = vld [vmem:[#allocation4 + $0x120] sm:$0xff]
    %v95 = vld [vmem:[#allocation4 + $0x128] sm:$0xff]
    %v96 = vld [vmem:[#allocation4 + $0x130] sm:$0xff]
    %v97 = vld [vmem:[#allocation4 + $0x138] sm:$0xff]
    %v98 = vld [vmem:[#allocation4 + $0x140] sm:$0xff]
    %v99 = vld [vmem:[#allocation4 + $0x148] sm:$0xff]
    %v100 = vld [vmem:[#allocation4 + $0x150] sm:$0xff]
    %v101 = vld [vmem:[#allocation4 + $0x158] sm:$0xff]
    %v102 = vld [vmem:[#allocation4 + $0x160] sm:$0xff]
    %v103 = vld [vmem:[#allocation4 + $0x168] sm:$0xff]
    %v104 = vld [vmem:[#allocation4 + $0x170] sm:$0xff]
    %v105 = vld [vmem:[#allocation4 + $0x178] sm:$0xff]
    %v106 = vld [vmem:[#allocation4 + $0x180] sm:$0xff]
    %v107 = vld [vmem:[#allocation4 + $0x188] sm:$0xff]
    %v108 = vld [vmem:[#allocation4 + $0x190] sm:$0xff]
    %v109 = vld [vmem:[#allocation4 + $0x198] sm:$0xff]
    %v110 = vld [vmem:[#allocation4 + $0x1a0] sm:$0xff]
    %v111 = vld [vmem:[#allocation4 + $0x1a8] sm:$0xff]
    %v112 = vld [vmem:[#allocation4 + $0x1b0] sm:$0xff]
    %v113 = vld [vmem:[#allocation4 + $0x1b8] sm:$0xff]
    %v114 = vld [vmem:[#allocation4 + $0x1c0] sm:$0xff]
    %v115 = vld [vmem:[#allocation4 + $0x1c8] sm:$0xff]
    %v116 = vld [vmem:[#allocation4 + $0x1d0] sm:$0xff]
    %v117 = vld [vmem:[#allocation4 + $0x1d8] sm:$0xff]
    %v118 = vld [vmem:[#allocation4 + $0x1e0] sm:$0xff]
    %v119 = vld [vmem:[#allocation4 + $0x1e8] sm:$0xff]
    %v120 = vld [vmem:[#allocation4 + $0x1f0] sm:$0xff]
    %v121 = vld [vmem:[#allocation4 + $0x1f8] sm:$0xff]
    %v122 = vld [vmem:[#allocation4 + $0x200] sm:$0xff]
    %v123 = vld [vmem:[#allocation4 + $0x208] sm:$0xff]
    %v124 = vld [vmem:[#allocation4 + $0x210] sm:$0xff]
    %v125 = vld [vmem:[#allocation4 + $0x218] sm:$0xff]
    %v126 = vld [vmem:[#allocation4 + $0x220] sm:$0xff]
    %v127 = vld [vmem:[#allocation4 + $0x228] sm:$0xff]
    %v128 = vld [vmem:[#allocation4 + $0x230] sm:$0xff]
    %v129 = vld [vmem:[#allocation4 + $0x238] sm:$0xff]
    %v130 = vld [vmem:[#allocation4 + $0x240] sm:$0xff]
    %v131 = vld [vmem:[#allocation4 + $0x248] sm:$0xff]
    %v132 = vld [vmem:[#allocation4 + $0x250] sm:$0xff]
    %v133 = vld [vmem:[#allocation4 + $0x258] sm:$0xff]
    %v134 = vld [vmem:[#allocation4 + $0x260] sm:$0xff]
    %v135 = vld [vmem:[#allocation4 + $0x268] sm:$0xff]
    %v136 = vld [vmem:[#allocation4 + $0x270] sm:$0xff]
    %v137 = vld [vmem:[#allocation4 + $0x278] sm:$0xff]
    %v138 = vld [vmem:[#allocation4 + $0x280] sm:$0xff]
    %v139 = vld [vmem:[#allocation4 + $0x288] sm:$0xff]
    %v140 = vld [vmem:[#allocation4 + $0x290] sm:$0xff]
    %v141 = vld [vmem:[#allocation4 + $0x298] sm:$0xff]
    %v142 = vld [vmem:[#allocation4 + $0x2a0] sm:$0xff]
    %v143 = vld [vmem:[#allocation4 + $0x2a8] sm:$0xff]
    %v144 = vld [vmem:[#allocation4 + $0x2b0] sm:$0xff]
    %v145 = vld [vmem:[#allocation4 + $0x2b8] sm:$0xff]
    %v146 = vld [vmem:[#allocation4 + $0x2c0] sm:$0xff]
    %v147 = vld [vmem:[#allocation4 + $0x2c8] sm:$0xff]
    %v148 = vld [vmem:[#allocation4 + $0x2d0] sm:$0xff]
    %v149 = vld [vmem:[#allocation4 + $0x2d8] sm:$0xff]
    %v150 = vld [vmem:[#allocation4 + $0x2e0] sm:$0xff]
    %v151 = vld [vmem:[#allocation4 + $0x2e8] sm:$0xff]
    %v152 = vld [vmem:[#allocation4 + $0x2f0] sm:$0xff]
    %v153 = vld [vmem:[#allocation4 + $0x2f8] sm:$0xff]
    %v154 = vld [vmem:[#allocation4 + $0x300] sm:$0xff]
    %v155 = vld [vmem:[#allocation4 + $0x308] sm:$0xff]
    %v156 = vld [vmem:[#allocation4 + $0x310] sm:$0xff]
    %v157 = vld [vmem:[#allocation4 + $0x318] sm:$0xff]
    %v158 = vld [vmem:[#allocation4 + $0x320] sm:$0xff]
    %v159 = vld [vmem:[#allocation4 + $0x328] sm:$0xff]
    %v160 = vld [vmem:[#allocation4 + $0x330] sm:$0xff]
    %v161 = vld [vmem:[#allocation4 + $0x338] sm:$0xff]
    %v162 = vld [vmem:[#allocation4 + $0x340] sm:$0xff]
    %v163 = vld [vmem:[#allocation4 + $0x348] sm:$0xff]
    %v164 = vld [vmem:[#allocation4 + $0x350] sm:$0xff]
    %v165 = vld [vmem:[#allocation4 + $0x358] sm:$0xff]
    %v166 = vld [vmem:[#allocation4 + $0x360] sm:$0xff]
    %v167 = vld [vmem:[#allocation4 + $0x368] sm:$0xff]
    %v168 = vld [vmem:[#allocation4 + $0x370] sm:$0xff]
    %v169 = vld [vmem:[#allocation4 + $0x378] sm:$0xff]
    %v170 = vld [vmem:[#allocation4 + $0x380] sm:$0xff]
    %v171 = vld [vmem:[#allocation4 + $0x388] sm:$0xff]
    %v172 = vld [vmem:[#allocation4 + $0x390] sm:$0xff]
    %v173 = vld [vmem:[#allocation4 + $0x398] sm:$0xff]
    %v174 = vld [vmem:[#allocation4 + $0x3a0] sm:$0xff]
    %v175 = vld [vmem:[#allocation4 + $0x3a8] sm:$0xff]
    %v176 = vld [vmem:[#allocation4 + $0x3b0] sm:$0xff]
    %v177 = vld [vmem:[#allocation4 + $0x3b8] sm:$0xff]
    %v178 = vld [vmem:[#allocation4 + $0x3c0] sm:$0xff]
    %v179 = vld [vmem:[#allocation4 + $0x3c8] sm:$0xff]
    %v180 = vld [vmem:[#allocation4 + $0x3d0] sm:$0xff]
    %v181 = vld [vmem:[#allocation4 + $0x3d8] sm:$0xff]
    %v182 = vld [vmem:[#allocation4 + $0x3e0] sm:$0xff]
    %v183 = vld [vmem:[#allocation4 + $0x3e8] sm:$0xff]
    %v184 = vld [vmem:[#allocation4 + $0x3f0] sm:$0xff]
    %v185 = vld [vmem:[#allocation4 + $0x3f8] sm:$0xff]
    %v186 = vld [vmem:[#allocation4 + $0x400] sm:$0xff]
    %v187 = vld [vmem:[#allocation4 + $0x408] sm:$0xff]
    %v188 = vld [vmem:[#allocation4 + $0x410] sm:$0xff]
    %v189 = vld [vmem:[#allocation4 + $0x418] sm:$0xff]
    %v190 = vld [vmem:[#allocation4 + $0x420] sm:$0xff]
    %v191 = vld [vmem:[#allocation4 + $0x428] sm:$0xff]
    %v192 = vld [vmem:[#allocation4 + $0x430] sm:$0xff]
    %v193 = vld [vmem:[#allocation4 + $0x438] sm:$0xff]
    %v194 = vld [vmem:[#allocation4 + $0x440] sm:$0xff]
    %v195 = vld [vmem:[#allocation4 + $0x448] sm:$0xff]
    %v196 = vld [vmem:[#allocation4 + $0x450] sm:$0xff]
    %v197 = vld [vmem:[#allocation4 + $0x458] sm:$0xff]
    %v198 = vld [vmem:[#allocation4 + $0x460] sm:$0xff]
    %v199 = vld [vmem:[#allocation4 + $0x468] sm:$0xff]
    %v200 = vld [vmem:[#allocation4 + $0x470] sm:$0xff]
    %v201 = vld [vmem:[#allocation4 + $0x478] sm:$0xff]
    %v202 = vld [vmem:[#allocation4 + $0x480] sm:$0xff]
    %v203 = vld [vmem:[#allocation4 + $0x488] sm:$0xff]
    %v204 = vld [vmem:[#allocation4 + $0x490] sm:$0xff]
    %v205 = vld [vmem:[#allocation4 + $0x498] sm:$0xff]
    %v206 = vld [vmem:[#allocation4 + $0x4a0] sm:$0xff]
    %v207 = vld [vmem:[#allocation4 + $0x4a8] sm:$0xff]
    %v208 = vld [vmem:[#allocation4 + $0x4b0] sm:$0xff]
    %v209 = vld [vmem:[#allocation4 + $0x4b8] sm:$0xff]
    %v210 = vld [vmem:[#allocation4 + $0x4c0] sm:$0xff]
    %v211 = vld [vmem:[#allocation4 + $0x4c8] sm:$0xff]
    %v212 = vld [vmem:[#allocation4 + $0x4d0] sm:$0xff]
    %v213 = vld [vmem:[#allocation4 + $0x4d8] sm:$0xff]
    %v214 = vld [vmem:[#allocation4 + $0x4e0] sm:$0xff]
    %v215 = vld [vmem:[#allocation4 + $0x4e8] sm:$0xff]
    %v216 = vld [vmem:[#allocation4 + $0x4f0] sm:$0xff]
    %v217 = vld [vmem:[#allocation4 + $0x4f8] sm:$0xff]
    %v218 = vld [vmem:[#allocation4 + $0x500] sm:$0xff]
    %v219 = vld [vmem:[#allocation4 + $0x508] sm:$0xff]
    %v220 = vld [vmem:[#allocation4 + $0x510] sm:$0xff]
    %v221 = vld [vmem:[#allocation4 + $0x518] sm:$0xff]
    %v222 = vld [vmem:[#allocation4 + $0x520] sm:$0xff]
    %v223 = vld [vmem:[#allocation4 + $0x528] sm:$0xff]
    %v224 = vld [vmem:[#allocation4 + $0x530] sm:$0xff]
    %v225 = vld [vmem:[#allocation4 + $0x538] sm:$0xff]
    %v226 = vld [vmem:[#allocation4 + $0x540] sm:$0xff]
    %v227 = vld [vmem:[#allocation4 + $0x548] sm:$0xff]
    %v228 = vld [vmem:[#allocation4 + $0x550] sm:$0xff]
    %v229 = vld [vmem:[#allocation4 + $0x558] sm:$0xff]
    %v230 = vld [vmem:[#allocation4 + $0x560] sm:$0xff]
    %v231 = vld [vmem:[#allocation4 + $0x568] sm:$0xff]
    %v232 = vld [vmem:[#allocation4 + $0x570] sm:$0xff]
    %v233 = vld [vmem:[#allocation4 + $0x578] sm:$0xff]
    %v234 = vld [vmem:[#allocation4 + $0x580] sm:$0xff]
    %v235 = vld [vmem:[#allocation4 + $0x588] sm:$0xff]
    %v236 = vld [vmem:[#allocation4 + $0x590] sm:$0xff]
    %v237 = vld [vmem:[#allocation4 + $0x598] sm:$0xff]
    %v238 = vld [vmem:[#allocation4 + $0x5a0] sm:$0xff]
    %v239 = vld [vmem:[#allocation4 + $0x5a8] sm:$0xff]
    %v240 = vld [vmem:[#allocation4 + $0x5b0] sm:$0xff]
    %v241 = vld [vmem:[#allocation4 + $0x5b8] sm:$0xff]
    %v242 = vld [vmem:[#allocation4 + $0x5c0] sm:$0xff]
    %v243 = vld [vmem:[#allocation4 + $0x5c8] sm:$0xff]
    %v244 = vld [vmem:[#allocation4 + $0x5d0] sm:$0xff]
    %v245 = vld [vmem:[#allocation4 + $0x5d8] sm:$0xff]
    %v246 = vld [vmem:[#allocation4 + $0x5e0] sm:$0xff]
    %v247 = vld [vmem:[#allocation4 + $0x5e8] sm:$0xff]
    %v248 = vld [vmem:[#allocation4 + $0x5f0] sm:$0xff]
    %v249 = vld [vmem:[#allocation4 + $0x5f8] sm:$0xff]
    %v250 = vld [vmem:[%s2] sm:$0x3f]
    %v252 = vperm.slane %v250, 0
    %v253 = vperm.slane %v250, 1
    %v254 = vperm.slane %v250, 2
    %v255 = vperm.slane %v250, 3
    %v256 = vperm.slane %v250, 4
    %v257 = vperm.slane %v250, 5
    %v456 = vunpack.c.l.b16 %v58
    %v457 = vunpack.c.h.b16 %v58
    %v458 = vunpack.c.l.b16 %v59
    %v459 = vunpack.c.h.b16 %v59
    %v460 = vunpack.c.l.b16 %v60
    %v461 = vunpack.c.h.b16 %v60
    %v462 = vunpack.c.l.b16 %v61
    %v463 = vunpack.c.h.b16 %v61
    %v464 = vunpack.c.l.b16 %v62
    %v465 = vunpack.c.h.b16 %v62
    %v466 = vunpack.c.l.b16 %v63
    %v467 = vunpack.c.h.b16 %v63
    %v468 = vunpack.c.l.b16 %v64
    %v469 = vunpack.c.h.b16 %v64
    %v470 = vunpack.c.l.b16 %v65
    %v471 = vunpack.c.h.b16 %v65
    %v472 = vunpack.c.l.b16 %v66
    %v473 = vunpack.c.h.b16 %v66
    %v474 = vunpack.c.l.b16 %v67
    %v475 = vunpack.c.h.b16 %v67
    %v476 = vunpack.c.l.b16 %v68
    %v477 = vunpack.c.h.b16 %v68
    %v478 = vunpack.c.l.b16 %v69
    %v479 = vunpack.c.h.b16 %v69
    %v480 = vunpack.c.l.b16 %v70
    %v481 = vunpack.c.h.b16 %v70
    %v482 = vunpack.c.l.b16 %v71
    %v483 = vunpack.c.h.b16 %v71
    %v484 = vunpack.c.l.b16 %v72
    %v485 = vunpack.c.h.b16 %v72
    %v486 = vunpack.c.l.b16 %v73
    %v487 = vunpack.c.h.b16 %v73
    %v488 = vunpack.c.l.b16 %v74
    %v489 = vunpack.c.h.b16 %v74
    %v490 = vunpack.c.l.b16 %v75
    %v491 = vunpack.c.h.b16 %v75
    %v492 = vunpack.c.l.b16 %v76
    %v493 = vunpack.c.h.b16 %v76
    %v494 = vunpack.c.l.b16 %v77
    %v495 = vunpack.c.h.b16 %v77
    %v496 = vunpack.c.l.b16 %v78
    %v497 = vunpack.c.h.b16 %v78
    %v498 = vunpack.c.l.b16 %v79
    %v499 = vunpack.c.h.b16 %v79
    %v500 = vunpack.c.l.b16 %v80
    %v501 = vunpack.c.h.b16 %v80
    %v502 = vunpack.c.l.b16 %v81
    %v503 = vunpack.c.h.b16 %v81
    %v504 = vunpack.c.l.b16 %v82
    %v505 = vunpack.c.h.b16 %v82
    %v506 = vunpack.c.l.b16 %v83
    %v507 = vunpack.c.h.b16 %v83
    %v508 = vunpack.c.l.b16 %v84
    %v509 = vunpack.c.h.b16 %v84
    %v510 = vunpack.c.l.b16 %v85
    %v511 = vunpack.c.h.b16 %v85
    %v512 = vunpack.c.l.b16 %v86
    %v513 = vunpack.c.h.b16 %v86
    %v514 = vunpack.c.l.b16 %v87
    %v515 = vunpack.c.h.b16 %v87
    %v516 = vunpack.c.l.b16 %v88
    %v517 = vunpack.c.h.b16 %v88
    %v518 = vunpack.c.l.b16 %v89
    %v519 = vunpack.c.h.b16 %v89
    %v520 = vunpack.c.l.b16 %v90
    %v521 = vunpack.c.h.b16 %v90
    %v522 = vunpack.c.l.b16 %v91
    %v523 = vunpack.c.h.b16 %v91
    %v524 = vunpack.c.l.b16 %v92
    %v525 = vunpack.c.h.b16 %v92
    %v526 = vunpack.c.l.b16 %v93
    %v527 = vunpack.c.h.b16 %v93
    %v528 = vunpack.c.l.b16 %v94
    %v529 = vunpack.c.h.b16 %v94
    %v530 = vunpack.c.l.b16 %v95
    %v531 = vunpack.c.h.b16 %v95
    %v532 = vunpack.c.l.b16 %v96
    %v533 = vunpack.c.h.b16 %v96
    %v534 = vunpack.c.l.b16 %v97
    %v535 = vunpack.c.h.b16 %v97
    %v536 = vunpack.c.l.b16 %v98
    %v537 = vunpack.c.h.b16 %v98
    %v538 = vunpack.c.l.b16 %v99
    %v539 = vunpack.c.h.b16 %v99
    %v540 = vunpack.c.l.b16 %v100
    %v541 = vunpack.c.h.b16 %v100
    %v542 = vunpack.c.l.b16 %v101
    %v543 = vunpack.c.h.b16 %v101
    %v544 = vunpack.c.l.b16 %v102
    %v545 = vunpack.c.h.b16 %v102
    %v546 = vunpack.c.l.b16 %v103
    %v547 = vunpack.c.h.b16 %v103
    %v548 = vunpack.c.l.b16 %v104
    %v549 = vunpack.c.h.b16 %v104
    %v550 = vunpack.c.l.b16 %v105
    %v551 = vunpack.c.h.b16 %v105
    %v552 = vunpack.c.l.b16 %v106
    %v553 = vunpack.c.h.b16 %v106
    %v554 = vunpack.c.l.b16 %v107
    %v555 = vunpack.c.h.b16 %v107
    %v556 = vunpack.c.l.b16 %v108
    %v557 = vunpack.c.h.b16 %v108
    %v558 = vunpack.c.l.b16 %v109
    %v559 = vunpack.c.h.b16 %v109
    %v560 = vunpack.c.l.b16 %v110
    %v561 = vunpack.c.h.b16 %v110
    %v562 = vunpack.c.l.b16 %v111
    %v563 = vunpack.c.h.b16 %v111
    %v564 = vunpack.c.l.b16 %v112
    %v565 = vunpack.c.h.b16 %v112
    %v566 = vunpack.c.l.b16 %v113
    %v567 = vunpack.c.h.b16 %v113
    %v568 = vunpack.c.l.b16 %v114
    %v569 = vunpack.c.h.b16 %v114
    %v570 = vunpack.c.l.b16 %v115
    %v571 = vunpack.c.h.b16 %v115
    %v572 = vunpack.c.l.b16 %v116
    %v573 = vunpack.c.h.b16 %v116
    %v574 = vunpack.c.l.b16 %v117
    %v575 = vunpack.c.h.b16 %v117
    %v576 = vunpack.c.l.b16 %v118
    %v577 = vunpack.c.h.b16 %v118
    %v578 = vunpack.c.l.b16 %v119
    %v579 = vunpack.c.h.b16 %v119
    %v580 = vunpack.c.l.b16 %v120
    %v581 = vunpack.c.h.b16 %v120
    %v582 = vunpack.c.l.b16 %v121
    %v583 = vunpack.c.h.b16 %v121
    %v584 = vunpack.c.l.b16 %v122
    %v585 = vunpack.c.h.b16 %v122
    %v586 = vunpack.c.l.b16 %v123
    %v587 = vunpack.c.h.b16 %v123
    %v588 = vunpack.c.l.b16 %v124
    %v589 = vunpack.c.h.b16 %v124
    %v590 = vunpack.c.l.b16 %v125
    %v591 = vunpack.c.h.b16 %v125
    %v592 = vunpack.c.l.b16 %v126
    %v593 = vunpack.c.h.b16 %v126
    %v594 = vunpack.c.l.b16 %v127
    %v595 = vunpack.c.h.b16 %v127
    %v596 = vunpack.c.l.b16 %v128
    %v597 = vunpack.c.h.b16 %v128
    %v598 = vunpack.c.l.b16 %v129
    %v599 = vunpack.c.h.b16 %v129
    %v600 = vunpack.c.l.b16 %v130
    %v601 = vunpack.c.h.b16 %v130
    %v602 = vunpack.c.l.b16 %v131
    %v603 = vunpack.c.h.b16 %v131
    %v604 = vunpack.c.l.b16 %v132
    %v605 = vunpack.c.h.b16 %v132
    %v606 = vunpack.c.l.b16 %v133
    %v607 = vunpack.c.h.b16 %v133
    %v608 = vunpack.c.l.b16 %v134
    %v609 = vunpack.c.h.b16 %v134
    %v610 = vunpack.c.l.b16 %v135
    %v611 = vunpack.c.h.b16 %v135
    %v612 = vunpack.c.l.b16 %v136
    %v613 = vunpack.c.h.b16 %v136
    %v614 = vunpack.c.l.b16 %v137
    %v615 = vunpack.c.h.b16 %v137
    %v616 = vunpack.c.l.b16 %v138
    %v617 = vunpack.c.h.b16 %v138
    %v618 = vunpack.c.l.b16 %v139
    %v619 = vunpack.c.h.b16 %v139
    %v620 = vunpack.c.l.b16 %v140
    %v621 = vunpack.c.h.b16 %v140
    %v622 = vunpack.c.l.b16 %v141
    %v623 = vunpack.c.h.b16 %v141
    %v624 = vunpack.c.l.b16 %v142
    %v625 = vunpack.c.h.b16 %v142
    %v626 = vunpack.c.l.b16 %v143
    %v627 = vunpack.c.h.b16 %v143
    %v628 = vunpack.c.l.b16 %v144
    %v629 = vunpack.c.h.b16 %v144
    %v630 = vunpack.c.l.b16 %v145
    %v631 = vunpack.c.h.b16 %v145
    %v632 = vunpack.c.l.b16 %v146
    %v633 = vunpack.c.h.b16 %v146
    %v634 = vunpack.c.l.b16 %v147
    %v635 = vunpack.c.h.b16 %v147
    %v636 = vunpack.c.l.b16 %v148
    %v637 = vunpack.c.h.b16 %v148
    %v638 = vunpack.c.l.b16 %v149
    %v639 = vunpack.c.h.b16 %v149
    %v640 = vunpack.c.l.b16 %v150
    %v641 = vunpack.c.h.b16 %v150
    %v642 = vunpack.c.l.b16 %v151
    %v643 = vunpack.c.h.b16 %v151
    %v644 = vunpack.c.l.b16 %v152
    %v645 = vunpack.c.h.b16 %v152
    %v646 = vunpack.c.l.b16 %v153
    %v647 = vunpack.c.h.b16 %v153
    %v648 = vunpack.c.l.b16 %v154
    %v649 = vunpack.c.h.b16 %v154
    %v650 = vunpack.c.l.b16 %v155
    %v651 = vunpack.c.h.b16 %v155
    %v652 = vunpack.c.l.b16 %v156
    %v653 = vunpack.c.h.b16 %v156
    %v654 = vunpack.c.l.b16 %v157
    %v655 = vunpack.c.h.b16 %v157
    %v656 = vunpack.c.l.b16 %v158
    %v657 = vunpack.c.h.b16 %v158
    %v658 = vunpack.c.l.b16 %v159
    %v659 = vunpack.c.h.b16 %v159
    %v660 = vunpack.c.l.b16 %v160
    %v661 = vunpack.c.h.b16 %v160
    %v662 = vunpack.c.l.b16 %v161
    %v663 = vunpack.c.h.b16 %v161
    %v664 = vunpack.c.l.b16 %v162
    %v665 = vunpack.c.h.b16 %v162
    %v666 = vunpack.c.l.b16 %v163
    %v667 = vunpack.c.h.b16 %v163
    %v668 = vunpack.c.l.b16 %v164
    %v669 = vunpack.c.h.b16 %v164
    %v670 = vunpack.c.l.b16 %v165
    %v671 = vunpack.c.h.b16 %v165
    %v672 = vunpack.c.l.b16 %v166
    %v673 = vunpack.c.h.b16 %v166
    %v674 = vunpack.c.l.b16 %v167
    %v675 = vunpack.c.h.b16 %v167
    %v676 = vunpack.c.l.b16 %v168
    %v677 = vunpack.c.h.b16 %v168
    %v678 = vunpack.c.l.b16 %v169
    %v679 = vunpack.c.h.b16 %v169
    %v680 = vunpack.c.l.b16 %v170
    %v681 = vunpack.c.h.b16 %v170
    %v682 = vunpack.c.l.b16 %v171
    %v683 = vunpack.c.h.b16 %v171
    %v684 = vunpack.c.l.b16 %v172
    %v685 = vunpack.c.h.b16 %v172
    %v686 = vunpack.c.l.b16 %v173
    %v687 = vunpack.c.h.b16 %v173
    %v688 = vunpack.c.l.b16 %v174
    %v689 = vunpack.c.h.b16 %v174
    %v690 = vunpack.c.l.b16 %v175
    %v691 = vunpack.c.h.b16 %v175
    %v692 = vunpack.c.l.b16 %v176
    %v693 = vunpack.c.h.b16 %v176
    %v694 = vunpack.c.l.b16 %v177
    %v695 = vunpack.c.h.b16 %v177
    %v696 = vunpack.c.l.b16 %v178
    %v697 = vunpack.c.h.b16 %v178
    %v698 = vunpack.c.l.b16 %v179
    %v699 = vunpack.c.h.b16 %v179
    %v700 = vunpack.c.l.b16 %v180
    %v701 = vunpack.c.h.b16 %v180
    %v702 = vunpack.c.l.b16 %v181
    %v703 = vunpack.c.h.b16 %v181
    %v704 = vunpack.c.l.b16 %v182
    %v705 = vunpack.c.h.b16 %v182
    %v706 = vunpack.c.l.b16 %v183
    %v707 = vunpack.c.h.b16 %v183
    %v708 = vunpack.c.l.b16 %v184
    %v709 = vunpack.c.h.b16 %v184
    %v710 = vunpack.c.l.b16 %v185
    %v711 = vunpack.c.h.b16 %v185
    %v712 = vunpack.c.l.b16 %v186
    %v713 = vunpack.c.h.b16 %v186
    %v714 = vunpack.c.l.b16 %v187
    %v715 = vunpack.c.h.b16 %v187
    %v716 = vunpack.c.l.b16 %v188
    %v717 = vunpack.c.h.b16 %v188
    %v718 = vunpack.c.l.b16 %v189
    %v719 = vunpack.c.h.b16 %v189
    %v720 = vunpack.c.l.b16 %v190
    %v721 = vunpack.c.h.b16 %v190
    %v722 = vunpack.c.l.b16 %v191
    %v723 = vunpack.c.h.b16 %v191
    %v724 = vunpack.c.l.b16 %v192
    %v725 = vunpack.c.h.b16 %v192
    %v726 = vunpack.c.l.b16 %v193
    %v727 = vunpack.c.h.b16 %v193
    %v728 = vunpack.c.l.b16 %v194
    %v729 = vunpack.c.h.b16 %v194
    %v730 = vunpack.c.l.b16 %v195
    %v731 = vunpack.c.h.b16 %v195
    %v732 = vunpack.c.l.b16 %v196
    %v733 = vunpack.c.h.b16 %v196
    %v734 = vunpack.c.l.b16 %v197
    %v735 = vunpack.c.h.b16 %v197
    %v736 = vunpack.c.l.b16 %v198
    %v737 = vunpack.c.h.b16 %v198
    %v738 = vunpack.c.l.b16 %v199
    %v739 = vunpack.c.h.b16 %v199
    %v740 = vunpack.c.l.b16 %v200
    %v741 = vunpack.c.h.b16 %v200
    %v742 = vunpack.c.l.b16 %v201
    %v743 = vunpack.c.h.b16 %v201
    %v744 = vunpack.c.l.b16 %v202
    %v745 = vunpack.c.h.b16 %v202
    %v746 = vunpack.c.l.b16 %v203
    %v747 = vunpack.c.h.b16 %v203
    %v748 = vunpack.c.l.b16 %v204
    %v749 = vunpack.c.h.b16 %v204
    %v750 = vunpack.c.l.b16 %v205
    %v751 = vunpack.c.h.b16 %v205
    %v752 = vunpack.c.l.b16 %v206
    %v753 = vunpack.c.h.b16 %v206
    %v754 = vunpack.c.l.b16 %v207
    %v755 = vunpack.c.h.b16 %v207
    %v756 = vunpack.c.l.b16 %v208
    %v757 = vunpack.c.h.b16 %v208
    %v758 = vunpack.c.l.b16 %v209
    %v759 = vunpack.c.h.b16 %v209
    %v760 = vunpack.c.l.b16 %v210
    %v761 = vunpack.c.h.b16 %v210
    %v762 = vunpack.c.l.b16 %v211
    %v763 = vunpack.c.h.b16 %v211
    %v764 = vunpack.c.l.b16 %v212
    %v765 = vunpack.c.h.b16 %v212
    %v766 = vunpack.c.l.b16 %v213
    %v767 = vunpack.c.h.b16 %v213
    %v768 = vunpack.c.l.b16 %v214
    %v769 = vunpack.c.h.b16 %v214
    %v770 = vunpack.c.l.b16 %v215
    %v771 = vunpack.c.h.b16 %v215
    %v772 = vunpack.c.l.b16 %v216
    %v773 = vunpack.c.h.b16 %v216
    %v774 = vunpack.c.l.b16 %v217
    %v775 = vunpack.c.h.b16 %v217
    %v776 = vunpack.c.l.b16 %v218
    %v777 = vunpack.c.h.b16 %v218
    %v778 = vunpack.c.l.b16 %v219
    %v779 = vunpack.c.h.b16 %v219
    %v780 = vunpack.c.l.b16 %v220
    %v781 = vunpack.c.h.b16 %v220
    %v782 = vunpack.c.l.b16 %v221
    %v783 = vunpack.c.h.b16 %v221
    %v784 = vunpack.c.l.b16 %v222
    %v785 = vunpack.c.h.b16 %v222
    %v786 = vunpack.c.l.b16 %v223
    %v787 = vunpack.c.h.b16 %v223
    %v788 = vunpack.c.l.b16 %v224
    %v789 = vunpack.c.h.b16 %v224
    %v790 = vunpack.c.l.b16 %v225
    %v791 = vunpack.c.h.b16 %v225
    %v792 = vunpack.c.l.b16 %v226
    %v793 = vunpack.c.h.b16 %v226
    %v794 = vunpack.c.l.b16 %v227
    %v795 = vunpack.c.h.b16 %v227
    %v796 = vunpack.c.l.b16 %v228
    %v797 = vunpack.c.h.b16 %v228
    %v798 = vunpack.c.l.b16 %v229
    %v799 = vunpack.c.h.b16 %v229
    %v800 = vunpack.c.l.b16 %v230
    %v801 = vunpack.c.h.b16 %v230
    %v802 = vunpack.c.l.b16 %v231
    %v803 = vunpack.c.h.b16 %v231
    %v804 = vunpack.c.l.b16 %v232
    %v805 = vunpack.c.h.b16 %v232
    %v806 = vunpack.c.l.b16 %v233
    %v807 = vunpack.c.h.b16 %v233
    %v808 = vunpack.c.l.b16 %v234
    %v809 = vunpack.c.h.b16 %v234
    %v810 = vunpack.c.l.b16 %v235
    %v811 = vunpack.c.h.b16 %v235
    %v812 = vunpack.c.l.b16 %v236
    %v813 = vunpack.c.h.b16 %v236
    %v814 = vunpack.c.l.b16 %v237
    %v815 = vunpack.c.h.b16 %v237
    %v816 = vunpack.c.l.b16 %v238
    %v817 = vunpack.c.h.b16 %v238
    %v818 = vunpack.c.l.b16 %v239
    %v819 = vunpack.c.h.b16 %v239
    %v820 = vunpack.c.l.b16 %v240
    %v821 = vunpack.c.h.b16 %v240
    %v822 = vunpack.c.l.b16 %v241
    %v823 = vunpack.c.h.b16 %v241
    %v824 = vunpack.c.l.b16 %v242
    %v825 = vunpack.c.h.b16 %v242
    %v826 = vunpack.c.l.b16 %v243
    %v827 = vunpack.c.h.b16 %v243
    %v828 = vunpack.c.l.b16 %v244
    %v829 = vunpack.c.h.b16 %v244
    %v830 = vunpack.c.l.b16 %v245
    %v831 = vunpack.c.h.b16 %v245
    %v832 = vunpack.c.l.b16 %v246
    %v833 = vunpack.c.h.b16 %v246
    %v834 = vunpack.c.l.b16 %v247
    %v835 = vunpack.c.h.b16 %v247
    %v836 = vunpack.c.l.b16 %v248
    %v837 = vunpack.c.h.b16 %v248
    %v838 = vunpack.c.l.b16 %v249
    %v839 = vunpack.c.h.b16 %v249
    %v840 = vpack.c.b16 %v462, %v456
    %v841 = vpack.c.b16 %v463, %v457
    %v842 = vpack.c.b16 %v464, %v458
    %v843 = vpack.c.b16 %v465, %v459
    %v844 = vpack.c.b16 %v466, %v460
    %v845 = vpack.c.b16 %v467, %v461
    %v846 = vpack.c.b16 %v474, %v468
    %v847 = vpack.c.b16 %v475, %v469
    %v848 = vpack.c.b16 %v476, %v470
    %v849 = vpack.c.b16 %v477, %v471
    %v850 = vpack.c.b16 %v478, %v472
    %v851 = vpack.c.b16 %v479, %v473
    %v852 = vpack.c.b16 %v486, %v480
    %v853 = vpack.c.b16 %v487, %v481
    %v854 = vpack.c.b16 %v488, %v482
    %v855 = vpack.c.b16 %v489, %v483
    %v856 = vpack.c.b16 %v490, %v484
    %v857 = vpack.c.b16 %v491, %v485
    %v858 = vpack.c.b16 %v498, %v492
    %v859 = vpack.c.b16 %v499, %v493
    %v860 = vpack.c.b16 %v500, %v494
    %v861 = vpack.c.b16 %v501, %v495
    %v862 = vpack.c.b16 %v502, %v496
    %v863 = vpack.c.b16 %v503, %v497
    %v864 = vpack.c.b16 %v510, %v504
    %v865 = vpack.c.b16 %v511, %v505
    %v866 = vpack.c.b16 %v512, %v506
    %v867 = vpack.c.b16 %v513, %v507
    %v868 = vpack.c.b16 %v514, %v508
    %v869 = vpack.c.b16 %v515, %v509
    %v870 = vpack.c.b16 %v522, %v516
    %v871 = vpack.c.b16 %v523, %v517
    %v872 = vpack.c.b16 %v524, %v518
    %v873 = vpack.c.b16 %v525, %v519
    %v874 = vpack.c.b16 %v526, %v520
    %v875 = vpack.c.b16 %v527, %v521
    %v876 = vpack.c.b16 %v534, %v528
    %v877 = vpack.c.b16 %v535, %v529
    %v878 = vpack.c.b16 %v536, %v530
    %v879 = vpack.c.b16 %v537, %v531
    %v880 = vpack.c.b16 %v538, %v532
    %v881 = vpack.c.b16 %v539, %v533
    %v882 = vpack.c.b16 %v546, %v540
    %v883 = vpack.c.b16 %v547, %v541
    %v884 = vpack.c.b16 %v548, %v542
    %v885 = vpack.c.b16 %v549, %v543
    %v886 = vpack.c.b16 %v550, %v544
    %v887 = vpack.c.b16 %v551, %v545
    %v888 = vpack.c.b16 %v558, %v552
    %v889 = vpack.c.b16 %v559, %v553
    %v890 = vpack.c.b16 %v560, %v554
    %v891 = vpack.c.b16 %v561, %v555
    %v892 = vpack.c.b16 %v562, %v556
    %v893 = vpack.c.b16 %v563, %v557
    %v894 = vpack.c.b16 %v570, %v564
    %v895 = vpack.c.b16 %v571, %v565
    %v896 = vpack.c.b16 %v572, %v566
    %v897 = vpack.c.b16 %v573, %v567
    %v898 = vpack.c.b16 %v574, %v568
    %v899 = vpack.c.b16 %v575, %v569
    %v900 = vpack.c.b16 %v582, %v576
    %v901 = vpack.c.b16 %v583, %v577
    %v902 = vpack.c.b16 %v584, %v578
    %v903 = vpack.c.b16 %v585, %v579
    %v904 = vpack.c.b16 %v586, %v580
    %v905 = vpack.c.b16 %v587, %v581
    %v906 = vpack.c.b16 %v594, %v588
    %v907 = vpack.c.b16 %v595, %v589
    %v908 = vpack.c.b16 %v596, %v590
    %v909 = vpack.c.b16 %v597, %v591
    %v910 = vpack.c.b16 %v598, %v592
    %v911 = vpack.c.b16 %v599, %v593
    %v912 = vpack.c.b16 %v606, %v600
    %v913 = vpack.c.b16 %v607, %v601
    %v914 = vpack.c.b16 %v608, %v602
    %v915 = vpack.c.b16 %v609, %v603
    %v916 = vpack.c.b16 %v610, %v604
    %v917 = vpack.c.b16 %v611, %v605
    %v918 = vpack.c.b16 %v618, %v612
    %v919 = vpack.c.b16 %v619, %v613
    %v920 = vpack.c.b16 %v620, %v614
    %v921 = vpack.c.b16 %v621, %v615
    %v922 = vpack.c.b16 %v622, %v616
    %v923 = vpack.c.b16 %v623, %v617
    %v924 = vpack.c.b16 %v630, %v624
    %v925 = vpack.c.b16 %v631, %v625
    %v926 = vpack.c.b16 %v632, %v626
    %v927 = vpack.c.b16 %v633, %v627
    %v928 = vpack.c.b16 %v634, %v628
    %v929 = vpack.c.b16 %v635, %v629
    %v930 = vpack.c.b16 %v642, %v636
    %v931 = vpack.c.b16 %v643, %v637
    %v932 = vpack.c.b16 %v644, %v638
    %v933 = vpack.c.b16 %v645, %v639
    %v934 = vpack.c.b16 %v646, %v640
    %v935 = vpack.c.b16 %v647, %v641
    %v936 = vpack.c.b16 %v654, %v648
    %v937 = vpack.c.b16 %v655, %v649
    %v938 = vpack.c.b16 %v656, %v650
    %v939 = vpack.c.b16 %v657, %v651
    %v940 = vpack.c.b16 %v658, %v652
    %v941 = vpack.c.b16 %v659, %v653
    %v942 = vpack.c.b16 %v666, %v660
    %v943 = vpack.c.b16 %v667, %v661
    %v944 = vpack.c.b16 %v668, %v662
    %v945 = vpack.c.b16 %v669, %v663
    %v946 = vpack.c.b16 %v670, %v664
    %v947 = vpack.c.b16 %v671, %v665
    %v948 = vpack.c.b16 %v678, %v672
    %v949 = vpack.c.b16 %v679, %v673
    %v950 = vpack.c.b16 %v680, %v674
    %v951 = vpack.c.b16 %v681, %v675
    %v952 = vpack.c.b16 %v682, %v676
    %v953 = vpack.c.b16 %v683, %v677
    %v954 = vpack.c.b16 %v690, %v684
    %v955 = vpack.c.b16 %v691, %v685
    %v956 = vpack.c.b16 %v692, %v686
    %v957 = vpack.c.b16 %v693, %v687
    %v958 = vpack.c.b16 %v694, %v688
    %v959 = vpack.c.b16 %v695, %v689
    %v960 = vpack.c.b16 %v702, %v696
    %v961 = vpack.c.b16 %v703, %v697
    %v962 = vpack.c.b16 %v704, %v698
    %v963 = vpack.c.b16 %v705, %v699
    %v964 = vpack.c.b16 %v706, %v700
    %v965 = vpack.c.b16 %v707, %v701
    %v966 = vpack.c.b16 %v714, %v708
    %v967 = vpack.c.b16 %v715, %v709
    %v968 = vpack.c.b16 %v716, %v710
    %v969 = vpack.c.b16 %v717, %v711
    %v970 = vpack.c.b16 %v718, %v712
    %v971 = vpack.c.b16 %v719, %v713
    %v972 = vpack.c.b16 %v726, %v720
    %v973 = vpack.c.b16 %v727, %v721
    %v974 = vpack.c.b16 %v728, %v722
    %v975 = vpack.c.b16 %v729, %v723
    %v976 = vpack.c.b16 %v730, %v724
    %v977 = vpack.c.b16 %v731, %v725
    %v978 = vpack.c.b16 %v738, %v732
    %v979 = vpack.c.b16 %v739, %v733
    %v980 = vpack.c.b16 %v740, %v734
    %v981 = vpack.c.b16 %v741, %v735
    %v982 = vpack.c.b16 %v742, %v736
    %v983 = vpack.c.b16 %v743, %v737
    %v984 = vpack.c.b16 %v750, %v744
    %v985 = vpack.c.b16 %v751, %v745
    %v986 = vpack.c.b16 %v752, %v746
    %v987 = vpack.c.b16 %v753, %v747
    %v988 = vpack.c.b16 %v754, %v748
    %v989 = vpack.c.b16 %v755, %v749
    %v990 = vpack.c.b16 %v762, %v756
    %v991 = vpack.c.b16 %v763, %v757
    %v992 = vpack.c.b16 %v764, %v758
    %v993 = vpack.c.b16 %v765, %v759
    %v994 = vpack.c.b16 %v766, %v760
    %v995 = vpack.c.b16 %v767, %v761
    %v996 = vpack.c.b16 %v774, %v768
    %v997 = vpack.c.b16 %v775, %v769
    %v998 = vpack.c.b16 %v776, %v770
    %v999 = vpack.c.b16 %v777, %v771
    %v1000 = vpack.c.b16 %v778, %v772
    %v1001 = vpack.c.b16 %v779, %v773
    %v1002 = vpack.c.b16 %v786, %v780
    %v1003 = vpack.c.b16 %v787, %v781
    %v1004 = vpack.c.b16 %v788, %v782
    %v1005 = vpack.c.b16 %v789, %v783
    %v1006 = vpack.c.b16 %v790, %v784
    %v1007 = vpack.c.b16 %v791, %v785
    %v1008 = vpack.c.b16 %v798, %v792
    %v1009 = vpack.c.b16 %v799, %v793
    %v1010 = vpack.c.b16 %v800, %v794
    %v1011 = vpack.c.b16 %v801, %v795
    %v1012 = vpack.c.b16 %v802, %v796
    %v1013 = vpack.c.b16 %v803, %v797
    %v1014 = vpack.c.b16 %v810, %v804
    %v1015 = vpack.c.b16 %v811, %v805
    %v1016 = vpack.c.b16 %v812, %v806
    %v1017 = vpack.c.b16 %v813, %v807
    %v1018 = vpack.c.b16 %v814, %v808
    %v1019 = vpack.c.b16 %v815, %v809
    %v1020 = vpack.c.b16 %v822, %v816
    %v1021 = vpack.c.b16 %v823, %v817
    %v1022 = vpack.c.b16 %v824, %v818
    %v1023 = vpack.c.b16 %v825, %v819
    %v1024 = vpack.c.b16 %v826, %v820
    %v1025 = vpack.c.b16 %v827, %v821
    %v1026 = vpack.c.b16 %v834, %v828
    %v1027 = vpack.c.b16 %v835, %v829
    %v1028 = vpack.c.b16 %v836, %v830
    %v1029 = vpack.c.b16 %v837, %v831
    %v1030 = vpack.c.b16 %v838, %v832
    %v1031 = vpack.c.b16 %v839, %v833
    %1224 = vmatpush.bf16.msra.mxu0 %v882
    %1225 = vmatpush.bf16.msra.mxu0 %v876
    %1226 = vmatpush.bf16.msra.mxu0 %v870
    %1227 = vmatpush.bf16.msra.mxu0 %v864
    %1228 = vmatpush.bf16.msra.mxu0 %v858
    %1229 = vmatpush.bf16.msra.mxu0 %v852
    %1230 = vmatpush.bf16.msra.mxu0 %v846
    %1231 = vmatpush.bf16.msra.mxu0 %v840
    %1232 = vmatmul.bf16.gmra.mxu0 %v54
    %v1233 = vpop.f32.mrf.mxu0
    %v1234 = vadd.f32 %v252, %v1233
    %v1235 = vpop.f32.mrf.mxu0
    %v1236 = vadd.f32 %v252, %v1235
    %1237 = vdwg.mxu0
    %1238 = vmatpush.bf16.msra.mxu0 %v930
    %1239 = vmatpush.bf16.msra.mxu0 %v924
    %1240 = vmatpush.bf16.msra.mxu0 %v918
    %1241 = vmatpush.bf16.msra.mxu0 %v912
    %1242 = vmatpush.bf16.msra.mxu0 %v906
    %1243 = vmatpush.bf16.msra.mxu0 %v900
    %1244 = vmatpush.bf16.msra.mxu0 %v894
    %1245 = vmatpush.bf16.msra.mxu0 %v888
    %1246 = vmatmul.bf16.gmra.mxu0 %v55
    %v1247 = vpop.f32.mrf.mxu0
    %v1248 = vadd.f32 %v1234, %v1247
    %v1249 = vpop.f32.mrf.mxu0
    %v1250 = vadd.f32 %v1236, %v1249
    %1251 = vdwg.mxu0
    %1252 = vmatpush.bf16.msra.mxu0 %v978
    %1253 = vmatpush.bf16.msra.mxu0 %v972
    %1254 = vmatpush.bf16.msra.mxu0 %v966
    %1255 = vmatpush.bf16.msra.mxu0 %v960
    %1256 = vmatpush.bf16.msra.mxu0 %v954
    %1257 = vmatpush.bf16.msra.mxu0 %v948
    %1258 = vmatpush.bf16.msra.mxu0 %v942
    %1259 = vmatpush.bf16.msra.mxu0 %v936
    %1260 = vmatmul.bf16.gmra.mxu0 %v56
    %v1261 = vpop.f32.mrf.mxu0
    %v1262 = vadd.f32 %v1248, %v1261
    %v1263 = vpop.f32.mrf.mxu0
    %v1264 = vadd.f32 %v1250, %v1263
    %1265 = vdwg.mxu0
    %1266 = vmatpush.bf16.msra.mxu0 %v1026
    %1267 = vmatpush.bf16.msra.mxu0 %v1020
    %1268 = vmatpush.bf16.msra.mxu0 %v1014
    %1269 = vmatpush.bf16.msra.mxu0 %v1008
    %1270 = vmatpush.bf16.msra.mxu0 %v1002
    %1271 = vmatpush.bf16.msra.mxu0 %v996
    %1272 = vmatpush.bf16.msra.mxu0 %v990
    %1273 = vmatpush.bf16.msra.mxu0 %v984
    %1274 = vmatmul.bf16.gmra.mxu0 %v57
    %v1275 = vpop.f32.mrf.mxu0
    %v1276 = vadd.f32 %v1262, %v1275
    %v1277 = vpop.f32.mrf.mxu0
    %v1278 = vadd.f32 %v1264, %v1277
    %1279 = vdwg.mxu0
    %1280 = vmatpush.bf16.msra.mxu0 %v883
    %1281 = vmatpush.bf16.msra.mxu0 %v877
    %1282 = vmatpush.bf16.msra.mxu0 %v871
    %1283 = vmatpush.bf16.msra.mxu0 %v865
    %1284 = vmatpush.bf16.msra.mxu0 %v859
    %1285 = vmatpush.bf16.msra.mxu0 %v853
    %1286 = vmatpush.bf16.msra.mxu0 %v847
    %1287 = vmatpush.bf16.msra.mxu0 %v841
    %1288 = vmatmul.bf16.gmra.mxu0 %v54
    %v1289 = vpop.f32.mrf.mxu0
    %v1290 = vadd.f32 %v253, %v1289
    %v1291 = vpop.f32.mrf.mxu0
    %v1292 = vadd.f32 %v253, %v1291
    %1293 = vdwg.mxu0
    %1294 = vmatpush.bf16.msra.mxu0 %v931
    %1295 = vmatpush.bf16.msra.mxu0 %v925
    %1296 = vmatpush.bf16.msra.mxu0 %v919
    %1297 = vmatpush.bf16.msra.mxu0 %v913
    %1298 = vmatpush.bf16.msra.mxu0 %v907
    %1299 = vmatpush.bf16.msra.mxu0 %v901
    %1300 = vmatpush.bf16.msra.mxu0 %v895
    %1301 = vmatpush.bf16.msra.mxu0 %v889
    %1302 = vmatmul.bf16.gmra.mxu0 %v55
    %v1303 = vpop.f32.mrf.mxu0
    %v1304 = vadd.f32 %v1290, %v1303
    %v1305 = vpop.f32.mrf.mxu0
    %v1306 = vadd.f32 %v1292, %v1305
    %1307 = vdwg.mxu0
    %1308 = vmatpush.bf16.msra.mxu0 %v979
    %1309 = vmatpush.bf16.msra.mxu0 %v973
    %1310 = vmatpush.bf16.msra.mxu0 %v967
    %1311 = vmatpush.bf16.msra.mxu0 %v961
    %1312 = vmatpush.bf16.msra.mxu0 %v955
    %1313 = vmatpush.bf16.msra.mxu0 %v949
    %1314 = vmatpush.bf16.msra.mxu0 %v943
    %1315 = vmatpush.bf16.msra.mxu0 %v937
    %1316 = vmatmul.bf16.gmra.mxu0 %v56
    %v1317 = vpop.f32.mrf.mxu0
    %v1318 = vadd.f32 %v1304, %v1317
    %v1319 = vpop.f32.mrf.mxu0
    %v1320 = vadd.f32 %v1306, %v1319
    %1321 = vdwg.mxu0
    %1322 = vmatpush.bf16.msra.mxu0 %v1027
    %1323 = vmatpush.bf16.msra.mxu0 %v1021
    %1324 = vmatpush.bf16.msra.mxu0 %v1015
    %1325 = vmatpush.bf16.msra.mxu0 %v1009
    %1326 = vmatpush.bf16.msra.mxu0 %v1003
    %1327 = vmatpush.bf16.msra.mxu0 %v997
    %1328 = vmatpush.bf16.msra.mxu0 %v991
    %1329 = vmatpush.bf16.msra.mxu0 %v985
    %1330 = vmatmul.bf16.gmra.mxu0 %v57
    %v1331 = vpop.f32.mrf.mxu0
    %v1332 = vadd.f32 %v1318, %v1331
    %v1333 = vpop.f32.mrf.mxu0
    %v1334 = vadd.f32 %v1320, %v1333
    %1335 = vdwg.mxu0
    %1336 = vmatpush.bf16.msra.mxu0 %v884
    %1337 = vmatpush.bf16.msra.mxu0 %v878
    %1338 = vmatpush.bf16.msra.mxu0 %v872
    %1339 = vmatpush.bf16.msra.mxu0 %v866
    %1340 = vmatpush.bf16.msra.mxu0 %v860
    %1341 = vmatpush.bf16.msra.mxu0 %v854
    %1342 = vmatpush.bf16.msra.mxu0 %v848
    %1343 = vmatpush.bf16.msra.mxu0 %v842
    %1344 = vmatmul.bf16.gmra.mxu0 %v54
    %v1345 = vpop.f32.mrf.mxu0
    %v1346 = vadd.f32 %v254, %v1345
    %v1347 = vpop.f32.mrf.mxu0
    %v1348 = vadd.f32 %v254, %v1347
    %1349 = vdwg.mxu0
    %1350 = vmatpush.bf16.msra.mxu0 %v932
    %1351 = vmatpush.bf16.msra.mxu0 %v926
    %1352 = vmatpush.bf16.msra.mxu0 %v920
    %1353 = vmatpush.bf16.msra.mxu0 %v914
    %1354 = vmatpush.bf16.msra.mxu0 %v908
    %1355 = vmatpush.bf16.msra.mxu0 %v902
    %1356 = vmatpush.bf16.msra.mxu0 %v896
    %1357 = vmatpush.bf16.msra.mxu0 %v890
    %1358 = vmatmul.bf16.gmra.mxu0 %v55
    %v1359 = vpop.f32.mrf.mxu0
    %v1360 = vadd.f32 %v1346, %v1359
    %v1361 = vpop.f32.mrf.mxu0
    %v1362 = vadd.f32 %v1348, %v1361
    %1363 = vdwg.mxu0
    %1364 = vmatpush.bf16.msra.mxu0 %v980
    %1365 = vmatpush.bf16.msra.mxu0 %v974
    %1366 = vmatpush.bf16.msra.mxu0 %v968
    %1367 = vmatpush.bf16.msra.mxu0 %v962
    %1368 = vmatpush.bf16.msra.mxu0 %v956
    %1369 = vmatpush.bf16.msra.mxu0 %v950
    %1370 = vmatpush.bf16.msra.mxu0 %v944
    %1371 = vmatpush.bf16.msra.mxu0 %v938
    %1372 = vmatmul.bf16.gmra.mxu0 %v56
    %v1373 = vpop.f32.mrf.mxu0
    %v1374 = vadd.f32 %v1360, %v1373
    %v1375 = vpop.f32.mrf.mxu0
    %v1376 = vadd.f32 %v1362, %v1375
    %1377 = vdwg.mxu0
    %1378 = vmatpush.bf16.msra.mxu0 %v1028
    %1379 = vmatpush.bf16.msra.mxu0 %v1022
    %1380 = vmatpush.bf16.msra.mxu0 %v1016
    %1381 = vmatpush.bf16.msra.mxu0 %v1010
    %1382 = vmatpush.bf16.msra.mxu0 %v1004
    %1383 = vmatpush.bf16.msra.mxu0 %v998
    %1384 = vmatpush.bf16.msra.mxu0 %v992
    %1385 = vmatpush.bf16.msra.mxu0 %v986
    %1386 = vmatmul.bf16.gmra.mxu0 %v57
    %v1387 = vpop.f32.mrf.mxu0
    %v1388 = vadd.f32 %v1374, %v1387
    %v1389 = vpop.f32.mrf.mxu0
    %v1390 = vadd.f32 %v1376, %v1389
    %1391 = vdwg.mxu0
    %1392 = vmatpush.bf16.msra.mxu0 %v885
    %1393 = vmatpush.bf16.msra.mxu0 %v879
    %1394 = vmatpush.bf16.msra.mxu0 %v873
    %1395 = vmatpush.bf16.msra.mxu0 %v867
    %1396 = vmatpush.bf16.msra.mxu0 %v861
    %1397 = vmatpush.bf16.msra.mxu0 %v855
    %1398 = vmatpush.bf16.msra.mxu0 %v849
    %1399 = vmatpush.bf16.msra.mxu0 %v843
    %1400 = vmatmul.bf16.gmra.mxu0 %v54
    %v1401 = vpop.f32.mrf.mxu0
    %v1402 = vadd.f32 %v255, %v1401
    %v1403 = vpop.f32.mrf.mxu0
    %v1404 = vadd.f32 %v255, %v1403
    %1405 = vdwg.mxu0
    %1406 = vmatpush.bf16.msra.mxu0 %v933
    %1407 = vmatpush.bf16.msra.mxu0 %v927
    %1408 = vmatpush.bf16.msra.mxu0 %v921
    %1409 = vmatpush.bf16.msra.mxu0 %v915
    %1410 = vmatpush.bf16.msra.mxu0 %v909
    %1411 = vmatpush.bf16.msra.mxu0 %v903
    %1412 = vmatpush.bf16.msra.mxu0 %v897
    %1413 = vmatpush.bf16.msra.mxu0 %v891
    %1414 = vmatmul.bf16.gmra.mxu0 %v55
    %v1415 = vpop.f32.mrf.mxu0
    %v1416 = vadd.f32 %v1402, %v1415
    %v1417 = vpop.f32.mrf.mxu0
    %v1418 = vadd.f32 %v1404, %v1417
    %1419 = vdwg.mxu0
    %1420 = vmatpush.bf16.msra.mxu0 %v981
    %1421 = vmatpush.bf16.msra.mxu0 %v975
    %1422 = vmatpush.bf16.msra.mxu0 %v969
    %1423 = vmatpush.bf16.msra.mxu0 %v963
    %1424 = vmatpush.bf16.msra.mxu0 %v957
    %1425 = vmatpush.bf16.msra.mxu0 %v951
    %1426 = vmatpush.bf16.msra.mxu0 %v945
    %1427 = vmatpush.bf16.msra.mxu0 %v939
    %1428 = vmatmul.bf16.gmra.mxu0 %v56
    %v1429 = vpop.f32.mrf.mxu0
    %v1430 = vadd.f32 %v1416, %v1429
    %v1431 = vpop.f32.mrf.mxu0
    %v1432 = vadd.f32 %v1418, %v1431
    %1433 = vdwg.mxu0
    %1434 = vmatpush.bf16.msra.mxu0 %v1029
    %1435 = vmatpush.bf16.msra.mxu0 %v1023
    %1436 = vmatpush.bf16.msra.mxu0 %v1017
    %1437 = vmatpush.bf16.msra.mxu0 %v1011
    %1438 = vmatpush.bf16.msra.mxu0 %v1005
    %1439 = vmatpush.bf16.msra.mxu0 %v999
    %1440 = vmatpush.bf16.msra.mxu0 %v993
    %1441 = vmatpush.bf16.msra.mxu0 %v987
    %1442 = vmatmul.bf16.gmra.mxu0 %v57
    %v1443 = vpop.f32.mrf.mxu0
    %v1444 = vadd.f32 %v1430, %v1443
    %v1445 = vpop.f32.mrf.mxu0
    %v1446 = vadd.f32 %v1432, %v1445
    %1447 = vdwg.mxu0
    %1448 = vmatpush.bf16.msra.mxu0 %v886
    %1449 = vmatpush.bf16.msra.mxu0 %v880
    %1450 = vmatpush.bf16.msra.mxu0 %v874
    %1451 = vmatpush.bf16.msra.mxu0 %v868
    %1452 = vmatpush.bf16.msra.mxu0 %v862
    %1453 = vmatpush.bf16.msra.mxu0 %v856
    %1454 = vmatpush.bf16.msra.mxu0 %v850
    %1455 = vmatpush.bf16.msra.mxu0 %v844
    %1456 = vmatmul.bf16.gmra.mxu0 %v54
    %v1457 = vpop.f32.mrf.mxu0
    %v1458 = vadd.f32 %v256, %v1457
    %v1459 = vpop.f32.mrf.mxu0
    %v1460 = vadd.f32 %v256, %v1459
    %1461 = vdwg.mxu0
    %1462 = vmatpush.bf16.msra.mxu0 %v934
    %1463 = vmatpush.bf16.msra.mxu0 %v928
    %1464 = vmatpush.bf16.msra.mxu0 %v922
    %1465 = vmatpush.bf16.msra.mxu0 %v916
    %1466 = vmatpush.bf16.msra.mxu0 %v910
    %1467 = vmatpush.bf16.msra.mxu0 %v904
    %1468 = vmatpush.bf16.msra.mxu0 %v898
    %1469 = vmatpush.bf16.msra.mxu0 %v892
    %1470 = vmatmul.bf16.gmra.mxu0 %v55
    %v1471 = vpop.f32.mrf.mxu0
    %v1472 = vadd.f32 %v1458, %v1471
    %v1473 = vpop.f32.mrf.mxu0
    %v1474 = vadd.f32 %v1460, %v1473
    %1475 = vdwg.mxu0
    %1476 = vmatpush.bf16.msra.mxu0 %v982
    %1477 = vmatpush.bf16.msra.mxu0 %v976
    %1478 = vmatpush.bf16.msra.mxu0 %v970
    %1479 = vmatpush.bf16.msra.mxu0 %v964
    %1480 = vmatpush.bf16.msra.mxu0 %v958
    %1481 = vmatpush.bf16.msra.mxu0 %v952
    %1482 = vmatpush.bf16.msra.mxu0 %v946
    %1483 = vmatpush.bf16.msra.mxu0 %v940
    %1484 = vmatmul.bf16.gmra.mxu0 %v56
    %v1485 = vpop.f32.mrf.mxu0
    %v1486 = vadd.f32 %v1472, %v1485
    %v1487 = vpop.f32.mrf.mxu0
    %v1488 = vadd.f32 %v1474, %v1487
    %1489 = vdwg.mxu0
    %1490 = vmatpush.bf16.msra.mxu0 %v1030
    %1491 = vmatpush.bf16.msra.mxu0 %v1024
    %1492 = vmatpush.bf16.msra.mxu0 %v1018
    %1493 = vmatpush.bf16.msra.mxu0 %v1012
    %1494 = vmatpush.bf16.msra.mxu0 %v1006
    %1495 = vmatpush.bf16.msra.mxu0 %v1000
    %1496 = vmatpush.bf16.msra.mxu0 %v994
    %1497 = vmatpush.bf16.msra.mxu0 %v988
    %1498 = vmatmul.bf16.gmra.mxu0 %v57
    %v1499 = vpop.f32.mrf.mxu0
    %v1500 = vadd.f32 %v1486, %v1499
    %v1501 = vpop.f32.mrf.mxu0
    %v1502 = vadd.f32 %v1488, %v1501
    %1503 = vdwg.mxu0
    %1504 = vmatpush.bf16.msra.mxu0 %v887
    %1505 = vmatpush.bf16.msra.mxu0 %v881
    %1506 = vmatpush.bf16.msra.mxu0 %v875
    %1507 = vmatpush.bf16.msra.mxu0 %v869
    %1508 = vmatpush.bf16.msra.mxu0 %v863
    %1509 = vmatpush.bf16.msra.mxu0 %v857
    %1510 = vmatpush.bf16.msra.mxu0 %v851
    %1511 = vmatpush.bf16.msra.mxu0 %v845
    %1512 = vmatmul.bf16.gmra.mxu0 %v54
    %v1513 = vpop.f32.mrf.mxu0
    %v1514 = vadd.f32 %v257, %v1513
    %v1515 = vpop.f32.mrf.mxu0
    %v1516 = vadd.f32 %v257, %v1515
    %1517 = vdwg.mxu0
    %1518 = vmatpush.bf16.msra.mxu0 %v935
    %1519 = vmatpush.bf16.msra.mxu0 %v929
    %1520 = vmatpush.bf16.msra.mxu0 %v923
    %1521 = vmatpush.bf16.msra.mxu0 %v917
    %1522 = vmatpush.bf16.msra.mxu0 %v911
    %1523 = vmatpush.bf16.msra.mxu0 %v905
    %1524 = vmatpush.bf16.msra.mxu0 %v899
    %1525 = vmatpush.bf16.msra.mxu0 %v893
    %1526 = vmatmul.bf16.gmra.mxu0 %v55
    %v1527 = vpop.f32.mrf.mxu0
    %v1528 = vadd.f32 %v1514, %v1527
    %v1529 = vpop.f32.mrf.mxu0
    %v1530 = vadd.f32 %v1516, %v1529
    %1531 = vdwg.mxu0
    %1532 = vmatpush.bf16.msra.mxu0 %v983
    %1533 = vmatpush.bf16.msra.mxu0 %v977
    %1534 = vmatpush.bf16.msra.mxu0 %v971
    %1535 = vmatpush.bf16.msra.mxu0 %v965
    %1536 = vmatpush.bf16.msra.mxu0 %v959
    %1537 = vmatpush.bf16.msra.mxu0 %v953
    %1538 = vmatpush.bf16.msra.mxu0 %v947
    %1539 = vmatpush.bf16.msra.mxu0 %v941
    %1540 = vmatmul.bf16.gmra.mxu0 %v56
    %v1541 = vpop.f32.mrf.mxu0
    %v1542 = vadd.f32 %v1528, %v1541
    %v1543 = vpop.f32.mrf.mxu0
    %v1544 = vadd.f32 %v1530, %v1543
    %1545 = vdwg.mxu0
    %1546 = vmatpush.bf16.msra.mxu0 %v1031
    %1547 = vmatpush.bf16.msra.mxu0 %v1025
    %1548 = vmatpush.bf16.msra.mxu0 %v1019
    %1549 = vmatpush.bf16.msra.mxu0 %v1013
    %1550 = vmatpush.bf16.msra.mxu0 %v1007
    %1551 = vmatpush.bf16.msra.mxu0 %v1001
    %1552 = vmatpush.bf16.msra.mxu0 %v995
    %1553 = vmatpush.bf16.msra.mxu0 %v989
    %1554 = vmatmul.bf16.gmra.mxu0 %v57
    %v1555 = vpop.f32.mrf.mxu0
    %v1556 = vadd.f32 %v1542, %v1555
    %v1557 = vpop.f32.mrf.mxu0
    %v1558 = vadd.f32 %v1544, %v1557
    %1559 = vdwg.mxu0
    %1560 = vst [vmem:[%s3] sm:$0xff] %v1276
    %1561 = vst [vmem:[%s3 + $0x8] sm:$0xff] %v1332
    %1562 = vst [vmem:[%s3 + $0x10] sm:$0xff] %v1388
    %1563 = vst [vmem:[%s3 + $0x18] sm:$0xff] %v1444
    %1564 = vst [vmem:[%s3 + $0x20] sm:$0xff] %v1500
    %1565 = vst [vmem:[%s3 + $0x28] sm:$0xff] %v1556
    %1566 = vst [vmem:[%s3 + $0x30] sm:$0xff] %v1278
    %1567 = vst [vmem:[%s3 + $0x38] sm:$0xff] %v1334
    %1568 = vst [vmem:[%s3 + $0x40] sm:$0xff] %v1390
    %1569 = vst [vmem:[%s3 + $0x48] sm:$0xff] %v1446
    %1570 = vst [vmem:[%s3 + $0x50] sm:$0xff] %v1502
    %1571 = vst [vmem:[%s3 + $0x58] sm:$0xff] %v1558
    // Predicated region
    $region22: #{joint_entity_relation_forward.5} parent=1 // pred_check
      _
    $region23: #{joint_entity_relation_forward.5} parent=1 // pred_check_branch
      %1573 = sbr.rel (0) target = $region25
    $region24: #{joint_entity_relation_forward.5} parent=1 // pred_region
      _
    $region25: #{joint_entity_relation_forward.5} parent=1 // pred_fallthru
      _
    // Predicated region
    $region26: #{joint_entity_relation_forward.5} parent=1 // pred_check
      _
    $region27: #{joint_entity_relation_forward.5} parent=1 // pred_check_branch
      %1575 = sbr.rel (0) target = $region29
    $region28: #{joint_entity_relation_forward.5} parent=1 // pred_region
      _
    $region29: #{joint_entity_relation_forward.5} parent=1 // pred_fallthru
      _
    %1576 = vsyncpa [#allocation3], 1
    %1577 = vsyncpa [#allocation5], 1

// kernel: joint_entity_relation_forward.9
$region0: #{joint_entity_relation_forward.9}
  #allocation0 [shape = 'u32[]', space=smem, size = 0x4, offset = 0x4, fixed_abs, tag = 'smem constant byte address 0x4 - core index']
  #allocation1 [shape = 'u32[72,128]{1,0:T(1,128)}', space=vmem, size = 0x9000, scoped, tag = 'internal scratch']
  %s0 = inlined_call_operand.vmem [shape: f32[2,16,128], index: 0, kind: input, shape index: {}]
  %s1 = inlined_call_operand.hbm [shape: bf16[128,256], index: 1, kind: input, shape index: {}]
  %s2 = inlined_call_operand.hbm [shape: bf16[128,256], index: 2, kind: input, shape index: {}]
  %s3 = inlined_call_operand.vmem [shape: f32[1,256], index: 3, kind: input, shape index: {}]
  %s4 = inlined_call_operand.hbm [shape: bf16[256,128], index: 4, kind: input, shape index: {}]
  %s5 = inlined_call_operand.vmem [shape: f32[1,128], index: 5, kind: input, shape index: {}]
  %s6 = inlined_call_operand.vmem [shape: f32[16,128], index: 6, kind: output, shape index: {}]
  %s7 = sld [smem:[#allocation0]]
  $region46: #{joint_entity_relation_forward.9} parent=0
    _
  %s9 = ssub.s32 1, %s7
  %s10 = scalar_select 0, %s9, %s7
  $region1: #{joint_entity_relation_forward.9} parent=0
    #allocation2 [shape = 'u8[65536]{0}', space=vmem, size = 0x10000, scoped, tag = 'input window, operand 1, single buffered']
    #allocation3 [shape = 's32[1]{0}', space=sflag, size = 0x4, scoped, tag = 'scoped memory for joint_entity_relation_forward.9']
    #allocation4 [shape = 'u8[65536]{0}', space=vmem, size = 0x10000, scoped, tag = 'input window, operand 2, single buffered']
    #allocation5 [shape = 's32[1]{0}', space=sflag, size = 0x4, scoped, tag = 'scoped memory for joint_entity_relation_forward.9']
    #allocation6 [shape = 'u8[65536]{0}', space=vmem, size = 0x10000, scoped, tag = 'input window, operand 4, single buffered']
    %11 = vsyncpa [#allocation3], 0
    %12 = vsyncpa [#allocation5], 0
    // Predicated region
    $region2: #{joint_entity_relation_forward.9} parent=1 // pred_check
      _
    $region3: #{joint_entity_relation_forward.9} parent=1 // pred_check_branch
      %14 = sbr.rel (0) target = $region5
    $region4: #{joint_entity_relation_forward.9} parent=1 // pred_region
      _
    $region5: #{joint_entity_relation_forward.9} parent=1 // pred_fallthru
      _
    // Predicated region
    $region6: #{joint_entity_relation_forward.9} parent=1 // pred_check
      _
    $region7: #{joint_entity_relation_forward.9} parent=1 // pred_check_branch
      %16 = sbr.rel (0) target = $region9
    $region8: #{joint_entity_relation_forward.9} parent=1 // pred_region
      %18 = vsyncadd [#allocation3], 0
      %s19 = sshll.u32 %s1, 4
      %s20 = int_to_ptr.hbm [resolvable:$true] %s19
      %s21 = sshll.u32 [#allocation2], 4
      %s22 = int_to_ptr.vmem [resolvable:$true] %s21
      %27 = dma.hbm_to_vmem [thread:$0]  %s20, 2048, %s22, [#allocation3], 128, 128, 8
    $region9: #{joint_entity_relation_forward.9} parent=1 // pred_fallthru
      _
    // Predicated region
    $region10: #{joint_entity_relation_forward.9} parent=1 // pred_check
      _
    $region11: #{joint_entity_relation_forward.9} parent=1 // pred_check_branch
      %29 = sbr.rel (0) target = $region13
    $region12: #{joint_entity_relation_forward.9} parent=1 // pred_region
      %31 = vsyncadd [#allocation5], 0
      %s32 = sshll.u32 %s2, 4
      %s33 = int_to_ptr.hbm [resolvable:$true] %s32
      %s34 = sshll.u32 [#allocation4], 4
      %s35 = int_to_ptr.vmem [resolvable:$true] %s34
      %40 = dma.hbm_to_vmem [thread:$0]  %s33, 2048, %s35, [#allocation5], 128, 128, 8
    $region13: #{joint_entity_relation_forward.9} parent=1 // pred_fallthru
      _
    // Predicated region
    $region14: #{joint_entity_relation_forward.9} parent=1 // pred_check
      _
    $region15: #{joint_entity_relation_forward.9} parent=1 // pred_check_branch
      %42 = sbr.rel (0) target = $region17
    $region16: #{joint_entity_relation_forward.9} parent=1 // pred_region
      _
    $region17: #{joint_entity_relation_forward.9} parent=1 // pred_fallthru
      _
    // Predicated region
    $region18: #{joint_entity_relation_forward.9} parent=1 // pred_check
      _
    $region19: #{joint_entity_relation_forward.9} parent=1 // pred_check_branch
      %44 = sbr.rel (0) target = $region21
    $region20: #{joint_entity_relation_forward.9} parent=1 // pred_region
      %46 = vsyncadd [#allocation5], 0
      %s47 = sshll.u32 %s4, 4
      %s48 = int_to_ptr.hbm [resolvable:$true] %s47
      %s49 = sshll.u32 [#allocation6], 4
      %s50 = int_to_ptr.vmem [resolvable:$true] %s49
      %55 = dma.hbm_to_vmem [thread:$0]  %s48, 2048, %s50, [#allocation5], 64, 64, 4
    $region21: #{joint_entity_relation_forward.9} parent=1 // pred_fallthru
      _
    // Predicated region
    $region22: #{joint_entity_relation_forward.9} parent=1 // pred_check
      _
    $region23: #{joint_entity_relation_forward.9} parent=1 // pred_check_branch
      %57 = sbr.rel (0) target = $region25
    $region24: #{joint_entity_relation_forward.9} parent=1 // pred_region
      _
    $region25: #{joint_entity_relation_forward.9} parent=1 // pred_fallthru
      _
    // Predicated region
    $region26: #{joint_entity_relation_forward.9} parent=1 // pred_check
      _
    $region27: #{joint_entity_relation_forward.9} parent=1 // pred_check_branch
      %59 = sbr.rel (0) target = $region29
    $region28: #{joint_entity_relation_forward.9} parent=1 // pred_region
      %61 = dma.done [#allocation3], 2048
    $region29: #{joint_entity_relation_forward.9} parent=1 // pred_fallthru
      _
    // Predicated region
    $region30: #{joint_entity_relation_forward.9} parent=1 // pred_check
      _
    $region31: #{joint_entity_relation_forward.9} parent=1 // pred_check_branch
      %63 = sbr.rel (0) target = $region33
    $region32: #{joint_entity_relation_forward.9} parent=1 // pred_region
      %65 = dma.done [#allocation5], 2048
    $region33: #{joint_entity_relation_forward.9} parent=1 // pred_fallthru
      _
    // Predicated region
    $region34: #{joint_entity_relation_forward.9} parent=1 // pred_check
      _
    $region35: #{joint_entity_relation_forward.9} parent=1 // pred_check_branch
      %67 = sbr.rel (0) target = $region37
    $region36: #{joint_entity_relation_forward.9} parent=1 // pred_region
      %69 = dma.done [#allocation5], 2048
    $region37: #{joint_entity_relation_forward.9} parent=1 // pred_fallthru
      _
    %v70 = vld [vmem:[%s0] sm:$0xff]
    %v71 = vld [vmem:[%s0 + $0x8] sm:$0xff]
    %v72 = vpack.c.bf16 %v71, %v70
    %v73 = vld [vmem:[#allocation2] sm:$0xff]
    %v74 = vld [vmem:[#allocation2 + $0x8] sm:$0xff]
    %v75 = vld [vmem:[#allocation2 + $0x10] sm:$0xff]
    %v76 = vld [vmem:[#allocation2 + $0x18] sm:$0xff]
    %v77 = vld [vmem:[#allocation2 + $0x20] sm:$0xff]
    %v78 = vld [vmem:[#allocation2 + $0x28] sm:$0xff]
    %v79 = vld [vmem:[#allocation2 + $0x30] sm:$0xff]
    %v80 = vld [vmem:[#allocation2 + $0x38] sm:$0xff]
    %v81 = vld [vmem:[#allocation2 + $0x40] sm:$0xff]
    %v82 = vld [vmem:[#allocation2 + $0x48] sm:$0xff]
    %v83 = vld [vmem:[#allocation2 + $0x50] sm:$0xff]
    %v84 = vld [vmem:[#allocation2 + $0x58] sm:$0xff]
    %v85 = vld [vmem:[#allocation2 + $0x60] sm:$0xff]
    %v86 = vld [vmem:[#allocation2 + $0x68] sm:$0xff]
    %v87 = vld [vmem:[#allocation2 + $0x70] sm:$0xff]
    %v88 = vld [vmem:[#allocation2 + $0x78] sm:$0xff]
    %s89 = scalar_lea.vmem %s0, 16
    %v90 = vld [vmem:[%s89] sm:$0xff]
    %v91 = vld [vmem:[%s89 + $0x8] sm:$0xff]
    %v92 = vpack.c.bf16 %v91, %v90
    %v93 = vld [vmem:[#allocation4] sm:$0xff]
    %v94 = vld [vmem:[#allocation4 + $0x8] sm:$0xff]
    %v95 = vld [vmem:[#allocation4 + $0x10] sm:$0xff]
    %v96 = vld [vmem:[#allocation4 + $0x18] sm:$0xff]
    %v97 = vld [vmem:[#allocation4 + $0x20] sm:$0xff]
    %v98 = vld [vmem:[#allocation4 + $0x28] sm:$0xff]
    %v99 = vld [vmem:[#allocation4 + $0x30] sm:$0xff]
    %v100 = vld [vmem:[#allocation4 + $0x38] sm:$0xff]
    %v101 = vld [vmem:[#allocation4 + $0x40] sm:$0xff]
    %v102 = vld [vmem:[#allocation4 + $0x48] sm:$0xff]
    %v103 = vld [vmem:[#allocation4 + $0x50] sm:$0xff]
    %v104 = vld [vmem:[#allocation4 + $0x58] sm:$0xff]
    %v105 = vld [vmem:[#allocation4 + $0x60] sm:$0xff]
    %v106 = vld [vmem:[#allocation4 + $0x68] sm:$0xff]
    %v107 = vld [vmem:[#allocation4 + $0x70] sm:$0xff]
    %v108 = vld [vmem:[#allocation4 + $0x78] sm:$0xff]
    %v125 = vunpack.c.l.b16 %v93
    %v126 = vunpack.c.h.b16 %v93
    %v127 = vunpack.c.l.b16 %v94
    %v128 = vunpack.c.h.b16 %v94
    %v129 = vunpack.c.l.b16 %v95
    %v130 = vunpack.c.h.b16 %v95
    %v131 = vunpack.c.l.b16 %v96
    %v132 = vunpack.c.h.b16 %v96
    %v133 = vunpack.c.l.b16 %v97
    %v134 = vunpack.c.h.b16 %v97
    %v135 = vunpack.c.l.b16 %v98
    %v136 = vunpack.c.h.b16 %v98
    %v137 = vunpack.c.l.b16 %v99
    %v138 = vunpack.c.h.b16 %v99
    %v139 = vunpack.c.l.b16 %v100
    %v140 = vunpack.c.h.b16 %v100
    %v141 = vunpack.c.l.b16 %v101
    %v142 = vunpack.c.h.b16 %v101
    %v143 = vunpack.c.l.b16 %v102
    %v144 = vunpack.c.h.b16 %v102
    %v145 = vunpack.c.l.b16 %v103
    %v146 = vunpack.c.h.b16 %v103
    %v147 = vunpack.c.l.b16 %v104
    %v148 = vunpack.c.h.b16 %v104
    %v149 = vunpack.c.l.b16 %v105
    %v150 = vunpack.c.h.b16 %v105
    %v151 = vunpack.c.l.b16 %v106
    %v152 = vunpack.c.h.b16 %v106
    %v153 = vunpack.c.l.b16 %v107
    %v154 = vunpack.c.h.b16 %v107
    %v155 = vunpack.c.l.b16 %v108
    %v156 = vunpack.c.h.b16 %v108
    %v157 = vpack.c.b16 %v127, %v125
    %v158 = vpack.c.b16 %v128, %v126
    %v159 = vpack.c.b16 %v131, %v129
    %v160 = vpack.c.b16 %v132, %v130
    %v161 = vpack.c.b16 %v135, %v133
    %v162 = vpack.c.b16 %v136, %v134
    %v163 = vpack.c.b16 %v139, %v137
    %v164 = vpack.c.b16 %v140, %v138
    %v165 = vpack.c.b16 %v143, %v141
    %v166 = vpack.c.b16 %v144, %v142
    %v167 = vpack.c.b16 %v147, %v145
    %v168 = vpack.c.b16 %v148, %v146
    %v169 = vpack.c.b16 %v151, %v149
    %v170 = vpack.c.b16 %v152, %v150
    %v171 = vpack.c.b16 %v155, %v153
    %v172 = vpack.c.b16 %v156, %v154
    %189 = vmatpush.bf16.msra.mxu0 %v171
    %190 = vmatpush.bf16.msra.mxu0 %v169
    %191 = vmatpush.bf16.msra.mxu0 %v167
    %192 = vmatpush.bf16.msra.mxu0 %v165
    %193 = vmatpush.bf16.msra.mxu0 %v163
    %194 = vmatpush.bf16.msra.mxu0 %v161
    %195 = vmatpush.bf16.msra.mxu0 %v159
    %196 = vmatpush.bf16.msra.mxu0 %v157
    %197 = vmatmul.bf16.gmra.mxu0 %v92
    %v198 = vpop.f32.mrf.mxu0
    %v199 = vadd.f32 0.0, %v198
    %v200 = vpop.f32.mrf.mxu0
    %v201 = vadd.f32 0.0, %v200
    %202 = vdwg.mxu0
    %203 = vmatpush.bf16.msra.mxu0 %v172
    %204 = vmatpush.bf16.msra.mxu0 %v170
    %205 = vmatpush.bf16.msra.mxu0 %v168
    %206 = vmatpush.bf16.msra.mxu0 %v166
    %207 = vmatpush.bf16.msra.mxu0 %v164
    %208 = vmatpush.bf16.msra.mxu0 %v162
    %209 = vmatpush.bf16.msra.mxu0 %v160
    %210 = vmatpush.bf16.msra.mxu0 %v158
    %211 = vmatmul.bf16.gmra.mxu0 %v92
    %v212 = vpop.f32.mrf.mxu0
    %v213 = vadd.f32 0.0, %v212
    %v214 = vpop.f32.mrf.mxu0
    %v215 = vadd.f32 0.0, %v214
    %216 = vdwg.mxu0
    %v233 = vunpack.c.l.b16 %v73
    %v234 = vunpack.c.h.b16 %v73
    %v235 = vunpack.c.l.b16 %v74
    %v236 = vunpack.c.h.b16 %v74
    %v237 = vunpack.c.l.b16 %v75
    %v238 = vunpack.c.h.b16 %v75
    %v239 = vunpack.c.l.b16 %v76
    %v240 = vunpack.c.h.b16 %v76
    %v241 = vunpack.c.l.b16 %v77
    %v242 = vunpack.c.h.b16 %v77
    %v243 = vunpack.c.l.b16 %v78
    %v244 = vunpack.c.h.b16 %v78
    %v245 = vunpack.c.l.b16 %v79
    %v246 = vunpack.c.h.b16 %v79
    %v247 = vunpack.c.l.b16 %v80
    %v248 = vunpack.c.h.b16 %v80
    %v249 = vunpack.c.l.b16 %v81
    %v250 = vunpack.c.h.b16 %v81
    %v251 = vunpack.c.l.b16 %v82
    %v252 = vunpack.c.h.b16 %v82
    %v253 = vunpack.c.l.b16 %v83
    %v254 = vunpack.c.h.b16 %v83
    %v255 = vunpack.c.l.b16 %v84
    %v256 = vunpack.c.h.b16 %v84
    %v257 = vunpack.c.l.b16 %v85
    %v258 = vunpack.c.h.b16 %v85
    %v259 = vunpack.c.l.b16 %v86
    %v260 = vunpack.c.h.b16 %v86
    %v261 = vunpack.c.l.b16 %v87
    %v262 = vunpack.c.h.b16 %v87
    %v263 = vunpack.c.l.b16 %v88
    %v264 = vunpack.c.h.b16 %v88
    %v265 = vpack.c.b16 %v235, %v233
    %v266 = vpack.c.b16 %v236, %v234
    %v267 = vpack.c.b16 %v239, %v237
    %v268 = vpack.c.b16 %v240, %v238
    %v269 = vpack.c.b16 %v243, %v241
    %v270 = vpack.c.b16 %v244, %v242
    %v271 = vpack.c.b16 %v247, %v245
    %v272 = vpack.c.b16 %v248, %v246
    %v273 = vpack.c.b16 %v251, %v249
    %v274 = vpack.c.b16 %v252, %v250
    %v275 = vpack.c.b16 %v255, %v253
    %v276 = vpack.c.b16 %v256, %v254
    %v277 = vpack.c.b16 %v259, %v257
    %v278 = vpack.c.b16 %v260, %v258
    %v279 = vpack.c.b16 %v263, %v261
    %v280 = vpack.c.b16 %v264, %v262
    %297 = vmatpush.bf16.msra.mxu0 %v279
    %298 = vmatpush.bf16.msra.mxu0 %v277
    %299 = vmatpush.bf16.msra.mxu0 %v275
    %300 = vmatpush.bf16.msra.mxu0 %v273
    %301 = vmatpush.bf16.msra.mxu0 %v271
    %302 = vmatpush.bf16.msra.mxu0 %v269
    %303 = vmatpush.bf16.msra.mxu0 %v267
    %304 = vmatpush.bf16.msra.mxu0 %v265
    %305 = vmatmul.bf16.gmra.mxu0 %v72
    %v306 = vpop.f32.mrf.mxu0
    %v307 = vadd.f32 %v199, %v306
    %v308 = vpop.f32.mrf.mxu0
    %v309 = vadd.f32 %v201, %v308
    %310 = vdwg.mxu0
    %311 = vmatpush.bf16.msra.mxu0 %v280
    %312 = vmatpush.bf16.msra.mxu0 %v278
    %313 = vmatpush.bf16.msra.mxu0 %v276
    %314 = vmatpush.bf16.msra.mxu0 %v274
    %315 = vmatpush.bf16.msra.mxu0 %v272
    %316 = vmatpush.bf16.msra.mxu0 %v270
    %317 = vmatpush.bf16.msra.mxu0 %v268
    %318 = vmatpush.bf16.msra.mxu0 %v266
    %319 = vmatmul.bf16.gmra.mxu0 %v72
    %v320 = vpop.f32.mrf.mxu0
    %v321 = vadd.f32 %v213, %v320
    %v322 = vpop.f32.mrf.mxu0
    %v323 = vadd.f32 %v215, %v322
    %324 = vdwg.mxu0
    %v325 = vld [vmem:[%s3] sm:$0x3]
    %v327 = vperm.slane %v325, 0
    %v328 = vperm.slane %v325, 1
    %v331 = vadd.f32 %v307, %v327
    %v332 = vadd.f32 %v321, %v328
    %v333 = vadd.f32 %v309, %v327
    %v334 = vadd.f32 %v323, %v328
    %vm335 = vcmp.gt.f32.partialorder %v331, 20.0
    %vm336 = vcmp.gt.f32.partialorder %v332, 20.0
    %vm337 = vcmp.gt.f32.partialorder %v333, 20.0
    %vm338 = vcmp.gt.f32.partialorder %v334, 20.0
    %v339 = vmin.f32 %v331, 20.0
    %v340 = vmin.f32 %v332, 20.0
    %v341 = vmin.f32 %v333, 20.0
    %v342 = vmin.f32 %v334, 20.0
    %v343 = vmul.f32 %v339, 1.442695
    %v344 = vpow.pop %v343
    %v345 = vmul.f32 %v340, 1.442695
    %v346 = vpow.pop %v345
    %v347 = vmul.f32 %v341, 1.442695
    %v348 = vpow.pop %v347
    %v349 = vmul.f32 %v342, 1.442695
    %v350 = vpow.pop %v349
    %v351 = vadd.f32 %v344, 1.0
    %v352 = vlog2.pop %v351
    %v353 = vmul.f32 %v352, 0.6931472
    %v354 = vmul.f32 -0.5, %v344
    %v355 = vadd.f32 %v354, 1.0
    %v356 = vmul.f32 %v355, %v344
    %v357 = vand.u32 2147483647, %v344
    %vm358 = vcmp.lt.f32.partialorder %v357, 0.0004427343
    %v359 = vsel %vm358, %v356, %v353
    %v360 = vadd.f32 %v346, 1.0
    %v361 = vlog2.pop %v360
    %v362 = vmul.f32 %v361, 0.6931472
    %v363 = vmul.f32 -0.5, %v346
    %v364 = vadd.f32 %v363, 1.0
    %v365 = vmul.f32 %v364, %v346
    %v366 = vand.u32 2147483647, %v346
    %vm367 = vcmp.lt.f32.partialorder %v366, 0.0004427343
    %v368 = vsel %vm367, %v365, %v362
    %v369 = vadd.f32 %v348, 1.0
    %v370 = vlog2.pop %v369
    %v371 = vmul.f32 %v370, 0.6931472
    %v372 = vmul.f32 -0.5, %v348
    %v373 = vadd.f32 %v372, 1.0
    %v374 = vmul.f32 %v373, %v348
    %v375 = vand.u32 2147483647, %v348
    %vm376 = vcmp.lt.f32.partialorder %v375, 0.0004427343
    %v377 = vsel %vm376, %v374, %v371
    %v378 = vadd.f32 %v350, 1.0
    %v379 = vlog2.pop %v378
    %v380 = vmul.f32 %v379, 0.6931472
    %v381 = vmul.f32 -0.5, %v350
    %v382 = vadd.f32 %v381, 1.0
    %v383 = vmul.f32 %v382, %v350
    %v384 = vand.u32 2147483647, %v350
    %vm385 = vcmp.lt.f32.partialorder %v384, 0.0004427343
    %v386 = vsel %vm385, %v383, %v380
    %v387 = vsel %vm335, %v331, %v359
    %v388 = vsel %vm336, %v332, %v368
    %v389 = vsel %vm337, %v333, %v377
    %v390 = vsel %vm338, %v334, %v386
    %v391 = vtanh.pop %v387
    %v392 = vtanh.pop %v388
    %v393 = vtanh.pop %v389
    %v394 = vtanh.pop %v390
    %v395 = vmul.f32 %v331, %v391
    %v396 = vmul.f32 %v332, %v392
    %v397 = vmul.f32 %v333, %v393
    %v398 = vmul.f32 %v334, %v394
    %v399 = vpack.c.bf16 %v397, %v395
    %v400 = vpack.c.bf16 %v398, %v396
    %v401 = vld [vmem:[#allocation6] sm:$0xf]
    %v402 = vld [vmem:[#allocation6 + $0x4] sm:$0xf]
    %v403 = vld [vmem:[#allocation6 + $0x8] sm:$0xf]
    %v404 = vld [vmem:[#allocation6 + $0xc] sm:$0xf]
    %v405 = vld [vmem:[#allocation6 + $0x10] sm:$0xf]
    %v406 = vld [vmem:[#allocation6 + $0x14] sm:$0xf]
    %v407 = vld [vmem:[#allocation6 + $0x18] sm:$0xf]
    %v408 = vld [vmem:[#allocation6 + $0x1c] sm:$0xf]
    %v409 = vld [vmem:[#allocation6 + $0x20] sm:$0xf]
    %v410 = vld [vmem:[#allocation6 + $0x24] sm:$0xf]
    %v411 = vld [vmem:[#allocation6 + $0x28] sm:$0xf]
    %v412 = vld [vmem:[#allocation6 + $0x2c] sm:$0xf]
    %v413 = vld [vmem:[#allocation6 + $0x30] sm:$0xf]
    %v414 = vld [vmem:[#allocation6 + $0x34] sm:$0xf]
    %v415 = vld [vmem:[#allocation6 + $0x38] sm:$0xf]
    %v416 = vld [vmem:[#allocation6 + $0x3c] sm:$0xf]
    %v417 = vld [vmem:[#allocation6 + $0x40] sm:$0xf]
    %v418 = vld [vmem:[#allocation6 + $0x44] sm:$0xf]
    %v419 = vld [vmem:[#allocation6 + $0x48] sm:$0xf]
    %v420 = vld [vmem:[#allocation6 + $0x4c] sm:$0xf]
    %v421 = vld [vmem:[#allocation6 + $0x50] sm:$0xf]
    %v422 = vld [vmem:[#allocation6 + $0x54] sm:$0xf]
    %v423 = vld [vmem:[#allocation6 + $0x58] sm:$0xf]
    %v424 = vld [vmem:[#allocation6 + $0x5c] sm:$0xf]
    %v425 = vld [vmem:[#allocation6 + $0x60] sm:$0xf]
    %v426 = vld [vmem:[#allocation6 + $0x64] sm:$0xf]
    %v427 = vld [vmem:[#allocation6 + $0x68] sm:$0xf]
    %v428 = vld [vmem:[#allocation6 + $0x6c] sm:$0xf]
    %v429 = vld [vmem:[#allocation6 + $0x70] sm:$0xf]
    %v430 = vld [vmem:[#allocation6 + $0x74] sm:$0xf]
    %v431 = vld [vmem:[#allocation6 + $0x78] sm:$0xf]
    %v432 = vld [vmem:[#allocation6 + $0x7c] sm:$0xf]
    %v433 = vld [vmem:[%s5] sm:$0x1]
    %v435 = vperm.slane %v433, 0
    %v469 = vunpack.c.l.b16 %v401
    %v470 = vunpack.c.l.b16 %v402
    %v471 = vunpack.c.l.b16 %v403
    %v472 = vunpack.c.l.b16 %v404
    %v473 = vunpack.c.l.b16 %v405
    %v474 = vunpack.c.l.b16 %v406
    %v475 = vunpack.c.l.b16 %v407
    %v476 = vunpack.c.l.b16 %v408
    %v477 = vunpack.c.l.b16 %v409
    %v478 = vunpack.c.l.b16 %v410
    %v479 = vunpack.c.l.b16 %v411
    %v480 = vunpack.c.l.b16 %v412
    %v481 = vunpack.c.l.b16 %v413
    %v482 = vunpack.c.l.b16 %v414
    %v483 = vunpack.c.l.b16 %v415
    %v484 = vunpack.c.l.b16 %v416
    %v485 = vunpack.c.l.b16 %v417
    %v486 = vunpack.c.l.b16 %v418
    %v487 = vunpack.c.l.b16 %v419
    %v488 = vunpack.c.l.b16 %v420
    %v489 = vunpack.c.l.b16 %v421
    %v490 = vunpack.c.l.b16 %v422
    %v491 = vunpack.c.l.b16 %v423
    %v492 = vunpack.c.l.b16 %v424
    %v493 = vunpack.c.l.b16 %v425
    %v494 = vunpack.c.l.b16 %v426
    %v495 = vunpack.c.l.b16 %v427
    %v496 = vunpack.c.l.b16 %v428
    %v497 = vunpack.c.l.b16 %v429
    %v498 = vunpack.c.l.b16 %v430
    %v499 = vunpack.c.l.b16 %v431
    %v500 = vunpack.c.l.b16 %v432
    %v501 = vpack.c.b16 %v470, %v469
    %v502 = vpack.c.b16 %v472, %v471
    %v503 = vpack.c.b16 %v474, %v473
    %v504 = vpack.c.b16 %v476, %v475
    %v505 = vpack.c.b16 %v478, %v477
    %v506 = vpack.c.b16 %v480, %v479
    %v507 = vpack.c.b16 %v482, %v481
    %v508 = vpack.c.b16 %v484, %v483
    %v509 = vpack.c.b16 %v486, %v485
    %v510 = vpack.c.b16 %v488, %v487
    %v511 = vpack.c.b16 %v490, %v489
    %v512 = vpack.c.b16 %v492, %v491
    %v513 = vpack.c.b16 %v494, %v493
    %v514 = vpack.c.b16 %v496, %v495
    %v515 = vpack.c.b16 %v498, %v497
    %v516 = vpack.c.b16 %v500, %v499
    %533 = vmatpush.bf16.msra.mxu0 %v508
    %534 = vmatpush.bf16.msra.mxu0 %v507
    %535 = vmatpush.bf16.msra.mxu0 %v506
    %536 = vmatpush.bf16.msra.mxu0 %v505
    %537 = vmatpush.bf16.msra.mxu0 %v504
    %538 = vmatpush.bf16.msra.mxu0 %v503
    %539 = vmatpush.bf16.msra.mxu0 %v502
    %540 = vmatpush.bf16.msra.mxu0 %v501
    %541 = vmatmul.bf16.gmra.mxu0 %v399
    %v542 = vpop.f32.mrf.mxu0
    %v543 = vadd.f32 %v435, %v542
    %v544 = vpop.f32.mrf.mxu0
    %v545 = vadd.f32 %v435, %v544
    %546 = vdwg.mxu0
    %547 = vmatpush.bf16.msra.mxu0 %v516
    %548 = vmatpush.bf16.msra.mxu0 %v515
    %549 = vmatpush.bf16.msra.mxu0 %v514
    %550 = vmatpush.bf16.msra.mxu0 %v513
    %551 = vmatpush.bf16.msra.mxu0 %v512
    %552 = vmatpush.bf16.msra.mxu0 %v511
    %553 = vmatpush.bf16.msra.mxu0 %v510
    %554 = vmatpush.bf16.msra.mxu0 %v509
    %555 = vmatmul.bf16.gmra.mxu0 %v400
    %v556 = vpop.f32.mrf.mxu0
    %v557 = vadd.f32 %v543, %v556
    %v558 = vpop.f32.mrf.mxu0
    %v559 = vadd.f32 %v545, %v558
    %560 = vdwg.mxu0
    %561 = vmax.xlane.f32.xlu0 %v557
    %v562 = vpop.xlane.xlu0 %561
    %563 = vmax.xlane.f32.xlu0 %v559
    %v564 = vpop.xlane.xlu0 %563
    %v565 = vsub.f32 %v557, %v562
    %v566 = vsub.f32 %v559, %v564
    %v567 = vmul.f32 %v565, 1.442695
    %v568 = vpow.pop %v567
    %v569 = vmul.f32 %v566, 1.442695
    %v570 = vpow.pop %v569
    %571 = vadd.xlane.f32.xlu0 %v568
    %v572 = vpop.xlane.xlu0 %571
    %573 = vadd.xlane.f32.xlu0 %v570
    %v574 = vpop.xlane.xlu0 %573
    %v575 = vlog2.pop %v572
    %v576 = vmul.f32 %v575, 0.6931472
    %v577 = vlog2.pop %v574
    %v578 = vmul.f32 %v577, 0.6931472
    %v579 = vsub.f32 %v565, %v576
    %v580 = vsub.f32 %v566, %v578
    %581 = vst [vmem:[%s6] sm:$0xff] %v579
    %582 = vst [vmem:[%s6 + $0x8] sm:$0xff] %v580
    // Predicated region
    $region38: #{joint_entity_relation_forward.9} parent=1 // pred_check
      _
    $region39: #{joint_entity_relation_forward.9} parent=1 // pred_check_branch
      %584 = sbr.rel (0) target = $region41
    $region40: #{joint_entity_relation_forward.9} parent=1 // pred_region
      _
    $region41: #{joint_entity_relation_forward.9} parent=1 // pred_fallthru
      _
    // Predicated region
    $region42: #{joint_entity_relation_forward.9} parent=1 // pred_check
      _
    $region43: #{joint_entity_relation_forward.9} parent=1 // pred_check_branch
      %586 = sbr.rel (0) target = $region45
    $region44: #{joint_entity_relation_forward.9} parent=1 // pred_region
      _
    $region45: #{joint_entity_relation_forward.9} parent=1 // pred_fallthru
      _
    %587 = vsyncpa [#allocation3], 1
    %588 = vsyncpa [#allocation5], 1

</llo_original>
